<compile_context>
chip_gen: v7x
topology: tpu7x:2x2x1
jax: 0.10.0
libtpu: 0.0.40
codegen_flags: <defaults>
</compile_context>

<pallas_src>
import math

import jax
import jax.numpy as jnp
from jax.experimental import pallas as pl
from jax.experimental.pallas import tpu as pltpu


def _embed_bilinear_kernel(x1_ref, x2_ref, w1_ref, w2_ref, r_ref, s_ref,
                           wf_ref, out_ref):
    # Left / right embeddings (MXU).
    e1 = jnp.dot(x1_ref[...], w1_ref[...], preferred_element_type=jnp.float32)
    e2 = jnp.dot(x2_ref[...], w2_ref[...], preferred_element_type=jnp.float32)

    # Flattened outer product g[b, i*E+j] = e1[b, i] * e2[b, j], built with two
    # 0/1 expansion matmuls (MXU, no relayout-prone repeat/tile/reshape).
    e1_rep = jnp.dot(e1, r_ref[...], preferred_element_type=jnp.float32)
    e2_rep = jnp.dot(e2, s_ref[...], preferred_element_type=jnp.float32)
    g = e1_rep * e2_rep

    # Bilinear contraction as one big-K matmul; lane-dense (O_pad) store.
    out_ref[...] = jnp.dot(g, wf_ref[...], preferred_element_type=jnp.float32)


def _round_up(x, m):
    return ((x + m - 1) // m) * m


def embed_bilinear(in1, in2, w_left, w_right, w_bil, *, block_b=128):
    """EmbedBilinear forward (bias=False).

    in1: (B, F1), in2: (B, F2)
    w_left: (E, F1), w_right: (E, F2)   (PyTorch nn.Linear weight layout)
    w_bil : (O, E, E)                   (PyTorch nn.Bilinear weight layout)
    returns (B, O) float32
    """
    in1 = jnp.asarray(in1, jnp.float32)
    in2 = jnp.asarray(in2, jnp.float32)
    B, F1 = in1.shape
    B2, F2 = in2.shape
    assert B == B2
    O, E, E2 = w_bil.shape
    assert E == E2
    assert w_left.shape == (E, F1) and w_right.shape == (E, F2)

    # ---- Host-side (plain JAX) weight preprocessing: exact 0/1 expansions. ----
    w1t = jnp.asarray(w_left, jnp.float32).T            # (F1, E)
    w2t = jnp.asarray(w_right, jnp.float32).T            # (F2, E)
    eye = jnp.eye(E, dtype=jnp.float32)
    r_mat = jnp.repeat(eye, E, axis=1)                    # (E, E*E): repeat e1
    s_mat = jnp.tile(eye, (1, E))                         # (E, E*E): tile   e2
    wf = jnp.transpose(jnp.asarray(w_bil, jnp.float32),
                       (1, 2, 0)).reshape(E * E, O)       # Wf[i*E+j, o]

    # Lane-dense output: pad O up to a multiple of 128 (zero columns).
    o_pad = _round_up(O, 128)
    if o_pad != O:
        wf = jnp.pad(wf, ((0, 0), (0, o_pad - O)))

    # Pad batch to a multiple of the row-block size (zero rows, sliced later).
    tb = min(block_b, max(8, _round_up(B, 8)))
    b_pad = _round_up(B, tb)
    if b_pad != B:
        in1 = jnp.pad(in1, ((0, b_pad - B), (0, 0)))
        in2 = jnp.pad(in2, ((0, b_pad - B), (0, 0)))

    grid = (b_pad // tb,)

    out_padded = pl.pallas_call(
        _embed_bilinear_kernel,
        out_shape=jax.ShapeDtypeStruct((b_pad, o_pad), jnp.float32),
        grid=grid,
        in_specs=[
            pl.BlockSpec((tb, F1), lambda i: (i, 0)),        # in1 tile (streams)
            pl.BlockSpec((tb, F2), lambda i: (i, 0)),        # in2 tile (streams)
            pl.BlockSpec((F1, E), lambda i: (0, 0)),         # W_left^T (resident)
            pl.BlockSpec((F2, E), lambda i: (0, 0)),         # W_right^T
            pl.BlockSpec((E, E * E), lambda i: (0, 0)),      # R
            pl.BlockSpec((E, E * E), lambda i: (0, 0)),      # S
            pl.BlockSpec((E * E, o_pad), lambda i: (0, 0)),  # Wf (padded)
        ],
        out_specs=pl.BlockSpec((tb, o_pad), lambda i: (i, 0)),
        compiler_params=pltpu.CompilerParams(
            dimension_semantics=("parallel",)),
    )(in1, in2, w1t, w2t, r_mat, s_mat, wf)

    return out_padded[:B, :O]


if __name__ == "__main__":
    # Module config: in1_features=48, in2_features=64, embed_size=32,
    # out_features=96, bias=False; batch=256 (2 row-blocks -> 2 grid steps).
    B = 256
    in1_features, in2_features = 48, 64
    embed_size, out_features = 32, 96

    key = jax.random.PRNGKey(0)
    k_wl, k_wr, k_wb, k_x1, k_x2 = jax.random.split(key, 5)

    def _uniform(k, shape, fan_in):
        bound = 1.0 / math.sqrt(fan_in)
        return jax.random.uniform(k, shape, jnp.float32, -bound, bound)

    # Mimic PyTorch reset_parameters (uniform in +/- 1/sqrt(fan_in)).
    w_left = _uniform(k_wl, (embed_size, in1_features), in1_features)
    w_right = _uniform(k_wr, (embed_size, in2_features), in2_features)
    w_bil = _uniform(k_wb, (out_features, embed_size, embed_size), embed_size)

    in1 = jax.random.normal(k_x1, (B, in1_features), jnp.float32)
    in2 = jax.random.normal(k_x2, (B, in2_features), jnp.float32)

    out = embed_bilinear(in1, in2, w_left, w_right, w_bil)
    jax.block_until_ready(out)
    assert out.shape == (B, out_features)

    # Reference: same math as the PyTorch module forward (bias=False).
    e1 = in1 @ w_left.T
    e2 = in2 @ w_right.T
    ref = jnp.einsum("bi,oij,bj->bo", e1, w_bil, e2)

    max_err = float(jnp.max(jnp.abs(out - ref)))
    assert jnp.allclose(out, ref, atol=2e-3, rtol=2e-3), max_err

    print("KERNEL_OK")
</pallas_src>

<mosaic_0001>
module attributes {stable_mosaic.version = 11 : i64} {
  func.func @_embed_bilinear_kernel(%arg0: i32, %arg1: memref<128x48xf32, #tpu.memory_space<vmem>>, %arg2: memref<128x64xf32, #tpu.memory_space<vmem>>, %arg3: memref<48x32xf32, #tpu.memory_space<vmem>>, %arg4: memref<64x32xf32, #tpu.memory_space<vmem>>, %arg5: memref<32x1024xf32, #tpu.memory_space<vmem>>, %arg6: memref<32x1024xf32, #tpu.memory_space<vmem>>, %arg7: memref<1024x128xf32, #tpu.memory_space<vmem>>, %arg8: memref<128x128xf32, #tpu.memory_space<vmem>>) attributes {dimension_semantics = [#tpu.dimension_semantics<parallel>], iteration_bounds = array<i64: 2>, scalar_prefetch = 0 : i64, scratch_operands = 0 : i64, tpu.core_type = #tpu.core_type<tc>, window_params = [{transform_indices = @transform_0, window_bounds = array<i64: 128, 48>}, {transform_indices = @transform_1, window_bounds = array<i64: 128, 64>}, {pipeline_mode = #tpu.pipeline_mode<synchronous>, transform_indices = @transform_2, window_bounds = array<i64: 48, 32>}, {pipeline_mode = #tpu.pipeline_mode<synchronous>, transform_indices = @transform_3, window_bounds = array<i64: 64, 32>}, {pipeline_mode = #tpu.pipeline_mode<synchronous>, transform_indices = @transform_4, window_bounds = array<i64: 32, 1024>}, {pipeline_mode = #tpu.pipeline_mode<synchronous>, transform_indices = @transform_5, window_bounds = array<i64: 32, 1024>}, {pipeline_mode = #tpu.pipeline_mode<synchronous>, transform_indices = @transform_6, window_bounds = array<i64: 1024, 128>}, {transform_indices = @transform_7, window_bounds = array<i64: 128, 128>}]} {
    %c0 = arith.constant 0 : index
    %c0_0 = arith.constant 0 : index
    %0 = vector.load %arg1[%c0, %c0_0] : memref<128x48xf32, #tpu.memory_space<vmem>>, vector<128x48xf32>
    %c0_1 = arith.constant 0 : index
    %c0_2 = arith.constant 0 : index
    %1 = vector.load %arg3[%c0_1, %c0_2] : memref<48x32xf32, #tpu.memory_space<vmem>>, vector<48x32xf32>
    %cst = arith.constant dense<0.000000e+00> : vector<128x32xf32>
    %2 = tpu.matmul %0, %1, %cst {dimension_numbers = #tpu.dot_dimension_numbers<[1], [0], [0], [1], [0, 0, 1, 1], [], []>} : vector<128x48xf32>, vector<48x32xf32>, vector<128x32xf32> -> vector<128x32xf32>
    %c0_3 = arith.constant 0 : index
    %c0_4 = arith.constant 0 : index
    %3 = vector.load %arg2[%c0_3, %c0_4] : memref<128x64xf32, #tpu.memory_space<vmem>>, vector<128x64xf32>
    %c0_5 = arith.constant 0 : index
    %c0_6 = arith.constant 0 : index
    %4 = vector.load %arg4[%c0_5, %c0_6] : memref<64x32xf32, #tpu.memory_space<vmem>>, vector<64x32xf32>
    %cst_7 = arith.constant dense<0.000000e+00> : vector<128x32xf32>
    %5 = tpu.matmul %3, %4, %cst_7 {dimension_numbers = #tpu.dot_dimension_numbers<[1], [0], [0], [1], [0, 0, 1, 1], [], []>} : vector<128x64xf32>, vector<64x32xf32>, vector<128x32xf32> -> vector<128x32xf32>
    %c0_8 = arith.constant 0 : index
    %c0_9 = arith.constant 0 : index
    %6 = vector.load %arg5[%c0_8, %c0_9] : memref<32x1024xf32, #tpu.memory_space<vmem>>, vector<32x1024xf32>
    %cst_10 = arith.constant dense<0.000000e+00> : vector<128x1024xf32>
    %7 = tpu.matmul %2, %6, %cst_10 {dimension_numbers = #tpu.dot_dimension_numbers<[1], [0], [0], [1], [0, 0, 1, 1], [], []>} : vector<128x32xf32>, vector<32x1024xf32>, vector<128x1024xf32> -> vector<128x1024xf32>
    %c0_11 = arith.constant 0 : index
    %c0_12 = arith.constant 0 : index
    %8 = vector.load %arg6[%c0_11, %c0_12] : memref<32x1024xf32, #tpu.memory_space<vmem>>, vector<32x1024xf32>
    %cst_13 = arith.constant dense<0.000000e+00> : vector<128x1024xf32>
    %9 = tpu.matmul %5, %8, %cst_13 {dimension_numbers = #tpu.dot_dimension_numbers<[1], [0], [0], [1], [0, 0, 1, 1], [], []>} : vector<128x32xf32>, vector<32x1024xf32>, vector<128x1024xf32> -> vector<128x1024xf32>
    %10 = arith.mulf %7, %9 : vector<128x1024xf32>
    %c0_14 = arith.constant 0 : index
    %c0_15 = arith.constant 0 : index
    %11 = vector.load %arg7[%c0_14, %c0_15] : memref<1024x128xf32, #tpu.memory_space<vmem>>, vector<1024x128xf32>
    %cst_16 = arith.constant dense<0.000000e+00> : vector<128x128xf32>
    %12 = tpu.matmul %10, %11, %cst_16 {dimension_numbers = #tpu.dot_dimension_numbers<[1], [0], [0], [1], [0, 0, 1, 1], [], []>} : vector<128x1024xf32>, vector<1024x128xf32>, vector<128x128xf32> -> vector<128x128xf32>
    %c0_17 = arith.constant 0 : index
    %c0_18 = arith.constant 0 : index
    %13 = vector.load %arg8[%c0_17, %c0_18] : memref<128x128xf32, #tpu.memory_space<vmem>>, vector<128x128xf32>
    tpu.vector_store %arg8[%c0_17, %c0_18], %12 {strides = array<i32>} : memref<128x128xf32, #tpu.memory_space<vmem>>, vector<128x128xf32>,
    return
  }
  func.func @transform_0(%arg0: i32) -> (i32, i32) {
    %c0_i32 = arith.constant 0 : i32
    %c0_i32_0 = arith.constant 0 : i32
    return %arg0, %c0_i32 : i32, i32
  }
  func.func @transform_1(%arg0: i32) -> (i32, i32) {
    %c0_i32 = arith.constant 0 : i32
    %c0_i32_0 = arith.constant 0 : i32
    return %arg0, %c0_i32 : i32, i32
  }
  func.func @transform_2(%arg0: i32) -> (i32, i32) {
    %c0_i32 = arith.constant 0 : i32
    %c0_i32_0 = arith.constant 0 : i32
    %c0_i32_1 = arith.constant 0 : i32
    return %c0_i32, %c0_i32_0 : i32, i32
  }
  func.func @transform_3(%arg0: i32) -> (i32, i32) {
    %c0_i32 = arith.constant 0 : i32
    %c0_i32_0 = arith.constant 0 : i32
    %c0_i32_1 = arith.constant 0 : i32
    return %c0_i32, %c0_i32_0 : i32, i32
  }
  func.func @transform_4(%arg0: i32) -> (i32, i32) {
    %c0_i32 = arith.constant 0 : i32
    %c0_i32_0 = arith.constant 0 : i32
    %c0_i32_1 = arith.constant 0 : i32
    return %c0_i32, %c0_i32_0 : i32, i32
  }
  func.func @transform_5(%arg0: i32) -> (i32, i32) {
    %c0_i32 = arith.constant 0 : i32
    %c0_i32_0 = arith.constant 0 : i32
    %c0_i32_1 = arith.constant 0 : i32
    return %c0_i32, %c0_i32_0 : i32, i32
  }
  func.func @transform_6(%arg0: i32) -> (i32, i32) {
    %c0_i32 = arith.constant 0 : i32
    %c0_i32_0 = arith.constant 0 : i32
    %c0_i32_1 = arith.constant 0 : i32
    return %c0_i32, %c0_i32_0 : i32, i32
  }
  func.func @transform_7(%arg0: i32) -> (i32, i32) {
    %c0_i32 = arith.constant 0 : i32
    %c0_i32_0 = arith.constant 0 : i32
    return %arg0, %c0_i32 : i32, i32
  }
}

</mosaic_0001>

<llo_original>
// kernel: tpu_custom_call.1
$region0: #{tpu_custom_call.1}
  #allocation0 [shape = 'u32[]', space=smem, size = 0x4, offset = 0x4, fixed_abs, tag = 'smem constant byte address 0x4 - core index']
  #allocation1 [shape = 'u32[144,128]{1,0:T(1,128)}', space=vmem, size = 0x12000, scoped, tag = 'internal scratch']
  %s0 = inlined_call_operand.vmem [shape: f32[256,48], index: 0, kind: input, shape index: {}]
  %s1 = inlined_call_operand.vmem [shape: f32[256,64], index: 1, kind: input, shape index: {}]
  %s2 = inlined_call_operand.vmem [shape: f32[48,32], index: 2, kind: input, shape index: {}]
  %s3 = inlined_call_operand.vmem [shape: f32[64,32], index: 3, kind: input, shape index: {}]
  %s4 = inlined_call_operand.vmem [shape: f32[32,1024], index: 4, kind: input, shape index: {}]
  %s5 = inlined_call_operand.vmem [shape: f32[32,1024], index: 5, kind: input, shape index: {}]
  %s6 = inlined_call_operand.hbm [shape: f32[1024,128], index: 6, kind: input, shape index: {}]
  %s7 = inlined_call_operand.hbm [shape: f32[256,128], index: 7, kind: output, shape index: {}]
  %s8 = sld [smem:[#allocation0]]
  $region65: #{tpu_custom_call.1} parent=0
    _
  %s10 = ssub.s32 1, %s8
  %s11 = scalar_select 0, %s10, %s8
  $region1: #{tpu_custom_call.1} parent=0
    #allocation2 [shape = 'u8[524288]{0}', space=vmem, size = 0x80000, scoped, tag = 'input window, operand 6, single buffered']
    #allocation3 [shape = 's32[2]{0}', space=sflag, size = 0x8, scoped, tag = 'scoped memory for tpu_custom_call.1']
    #allocation4 [shape = 's32[2]{0}', space=sflag, size = 0x8, scoped, tag = 'scoped memory for tpu_custom_call.1']
    #allocation5 [shape = 'u8[131072]{0}', space=vmem, size = 0x20000, scoped, tag = 'output window, operand 0']
    %12 = vsyncpa [#allocation3], 0
    %13 = vsyncpa [#allocation4], 0
    %s14 = scalar_lea.sflag [#allocation4], 1
    %15 = vsyncpa %s14, 0
    loop: start=0, step=1, limit=4
    $region2: #{tpu_custom_call.1} parent=1 // loop_pre_header
      _
    $region3: #{tpu_custom_call.1} parent=1 // loop_header
      %s17 = sphi 0, %s21
      %p18 = scmp.ge.s32.totalorder %s17, 4
      %s27 = sphi 0, %s29
      %s30 = sphi 0, %s27
      %s31 = sphi 0, %s30
      %s47 = sphi 0, %s31
      %s53 = sphi 0, %s55
      %s56 = sphi 0, %s53
      %s57 = sphi 0, %s56
      %s73 = sphi 0, %s57
      %s77 = sphi 0, %s77
      %s79 = sphi 0, %s77
      %s80 = sphi 0, %s79
      %s94 = sphi 0, %s80
      %s98 = sphi 0, %s98
      %s100 = sphi 0, %s98
      %s101 = sphi 0, %s100
      %s115 = sphi 0, %s101
      %s119 = sphi 0, %s119
      %s121 = sphi 0, %s119
      %s122 = sphi 0, %s121
      %s136 = sphi 0, %s122
      %s140 = sphi 0, %s140
      %s142 = sphi 0, %s140
      %s143 = sphi 0, %s142
      %s157 = sphi 0, %s143
      %s161 = sphi 0, %s161
      %s163 = sphi 0, %s161
      %s164 = sphi 0, %s163
      %s178 = sphi 0, %s164
      %s184 = sphi 0, %s186
      %s187 = sphi 0, %s184
      %s188 = sphi 0, %s187
      %s204 = sphi 0, %s188
    $region4: #{tpu_custom_call.1} parent=1 // loop_header_branch
      %20 = sbr.rel (%p18) target = $region8
    $region5: #{tpu_custom_call.1} parent=1 // loop_body
      %s22 = ssub.s32 %s17, 1
      %s23 = ssub.s32 %s17, 2
      %s24 = sadd.s32 %s17, 1
      %s25 = ssub.s32 %s17, %s24
      %p26 = scmp.eq.s32.totalorder %s25, 0
      %s28 = sadd.s32 %s27, 1
      %s29 = scalar_select %p26, %s27, %s28
      %p32 = pneg %p26
      %p33 = scmp.eq.s32.totalorder %s17, 1
      %p34 = por %p32, %p33
      %p35 = scmp.ne.s32.totalorder %s27, %s30
      %p36 = scmp.eq.s32.totalorder %s17, 0
      %p37 = por %p35, %p36
      %p38 = scmp.ne.s32.totalorder %s27, %s30
      %p39 = scmp.eq.s32.totalorder %s22, 1
      %p40 = por %p38, %p39
      %p41 = scmp.ne.s32.totalorder %s30, %s31
      %p42 = scmp.eq.s32.totalorder %s22, 0
      %p43 = por %p41, %p42
      %p44 = scmp.ne.s32.totalorder %s30, %s31
      %p45 = scmp.eq.s32.totalorder %s23, 1
      %p46 = por %p44, %p45
      %p48 = scmp.ne.s32.totalorder %s31, %s47
      %p49 = scmp.eq.s32.totalorder %s23, 0
      %p50 = por %p48, %p49
      %s51 = ssub.s32 %s17, %s24
      %p52 = scmp.eq.s32.totalorder %s51, 0
      %s54 = sadd.s32 %s53, 1
      %s55 = scalar_select %p52, %s53, %s54
      %p58 = pneg %p52
      %p59 = scmp.eq.s32.totalorder %s17, 1
      %p60 = por %p58, %p59
      %p61 = scmp.ne.s32.totalorder %s53, %s56
      %p62 = scmp.eq.s32.totalorder %s17, 0
      %p63 = por %p61, %p62
      %p64 = scmp.ne.s32.totalorder %s53, %s56
      %p65 = scmp.eq.s32.totalorder %s22, 1
      %p66 = por %p64, %p65
      %p67 = scmp.ne.s32.totalorder %s56, %s57
      %p68 = scmp.eq.s32.totalorder %s22, 0
      %p69 = por %p67, %p68
      %p70 = scmp.ne.s32.totalorder %s56, %s57
      %p71 = scmp.eq.s32.totalorder %s23, 1
      %p72 = por %p70, %p71
      %p74 = scmp.ne.s32.totalorder %s57, %s73
      %p75 = scmp.eq.s32.totalorder %s23, 0
      %p76 = por %p74, %p75
      %s78 = sadd.s32 %s77, 1
      %p81 = scmp.eq.s32.totalorder %s17, 1
      %p82 = scmp.ne.s32.totalorder %s77, %s79
      %p83 = scmp.eq.s32.totalorder %s17, 0
      %p84 = por %p82, %p83
      %p85 = scmp.ne.s32.totalorder %s77, %s79
      %p86 = scmp.eq.s32.totalorder %s22, 1
      %p87 = por %p85, %p86
      %p88 = scmp.ne.s32.totalorder %s79, %s80
      %p89 = scmp.eq.s32.totalorder %s22, 0
      %p90 = por %p88, %p89
      %p91 = scmp.ne.s32.totalorder %s79, %s80
      %p92 = scmp.eq.s32.totalorder %s23, 1
      %p93 = por %p91, %p92
      %p95 = scmp.ne.s32.totalorder %s80, %s94
      %p96 = scmp.eq.s32.totalorder %s23, 0
      %p97 = por %p95, %p96
      %s99 = sadd.s32 %s98, 1
      %p102 = scmp.eq.s32.totalorder %s17, 1
      %p103 = scmp.ne.s32.totalorder %s98, %s100
      %p104 = scmp.eq.s32.totalorder %s17, 0
      %p105 = por %p103, %p104
      %p106 = scmp.ne.s32.totalorder %s98, %s100
      %p107 = scmp.eq.s32.totalorder %s22, 1
      %p108 = por %p106, %p107
      %p109 = scmp.ne.s32.totalorder %s100, %s101
      %p110 = scmp.eq.s32.totalorder %s22, 0
      %p111 = por %p109, %p110
      %p112 = scmp.ne.s32.totalorder %s100, %s101
      %p113 = scmp.eq.s32.totalorder %s23, 1
      %p114 = por %p112, %p113
      %p116 = scmp.ne.s32.totalorder %s101, %s115
      %p117 = scmp.eq.s32.totalorder %s23, 0
      %p118 = por %p116, %p117
      %s120 = sadd.s32 %s119, 1
      %p123 = scmp.eq.s32.totalorder %s17, 1
      %p124 = scmp.ne.s32.totalorder %s119, %s121
      %p125 = scmp.eq.s32.totalorder %s17, 0
      %p126 = por %p124, %p125
      %p127 = scmp.ne.s32.totalorder %s119, %s121
      %p128 = scmp.eq.s32.totalorder %s22, 1
      %p129 = por %p127, %p128
      %p130 = scmp.ne.s32.totalorder %s121, %s122
      %p131 = scmp.eq.s32.totalorder %s22, 0
      %p132 = por %p130, %p131
      %p133 = scmp.ne.s32.totalorder %s121, %s122
      %p134 = scmp.eq.s32.totalorder %s23, 1
      %p135 = por %p133, %p134
      %p137 = scmp.ne.s32.totalorder %s122, %s136
      %p138 = scmp.eq.s32.totalorder %s23, 0
      %p139 = por %p137, %p138
      %s141 = sadd.s32 %s140, 1
      %p144 = scmp.eq.s32.totalorder %s17, 1
      %p145 = scmp.ne.s32.totalorder %s140, %s142
      %p146 = scmp.eq.s32.totalorder %s17, 0
      %p147 = por %p145, %p146
      %p148 = scmp.ne.s32.totalorder %s140, %s142
      %p149 = scmp.eq.s32.totalorder %s22, 1
      %p150 = por %p148, %p149
      %p151 = scmp.ne.s32.totalorder %s142, %s143
      %p152 = scmp.eq.s32.totalorder %s22, 0
      %p153 = por %p151, %p152
      %p154 = scmp.ne.s32.totalorder %s142, %s143
      %p155 = scmp.eq.s32.totalorder %s23, 1
      %p156 = por %p154, %p155
      %p158 = scmp.ne.s32.totalorder %s143, %s157
      %p159 = scmp.eq.s32.totalorder %s23, 0
      %p160 = por %p158, %p159
      %s162 = sadd.s32 %s161, 1
      %p165 = scmp.eq.s32.totalorder %s17, 1
      %p166 = scmp.ne.s32.totalorder %s161, %s163
      %p167 = scmp.eq.s32.totalorder %s17, 0
      %p168 = por %p166, %p167
      %p169 = scmp.ne.s32.totalorder %s161, %s163
      %p170 = scmp.eq.s32.totalorder %s22, 1
      %p171 = por %p169, %p170
      %p172 = scmp.ne.s32.totalorder %s163, %s164
      %p173 = scmp.eq.s32.totalorder %s22, 0
      %p174 = por %p172, %p173
      %p175 = scmp.ne.s32.totalorder %s163, %s164
      %p176 = scmp.eq.s32.totalorder %s23, 1
      %p177 = por %p175, %p176
      %p179 = scmp.ne.s32.totalorder %s164, %s178
      %p180 = scmp.eq.s32.totalorder %s23, 0
      %p181 = por %p179, %p180
      %s182 = ssub.s32 %s17, %s24
      %p183 = scmp.eq.s32.totalorder %s182, 0
      %s185 = sadd.s32 %s184, 1
      %s186 = scalar_select %p183, %s184, %s185
      %p189 = pneg %p183
      %p190 = scmp.eq.s32.totalorder %s17, 1
      %p191 = por %p189, %p190
      %p192 = scmp.ne.s32.totalorder %s184, %s187
      %p193 = scmp.eq.s32.totalorder %s17, 0
      %p194 = por %p192, %p193
      %p195 = scmp.ne.s32.totalorder %s184, %s187
      %p196 = scmp.eq.s32.totalorder %s22, 1
      %p197 = por %p195, %p196
      %p198 = scmp.ne.s32.totalorder %s187, %s188
      %p199 = scmp.eq.s32.totalorder %s22, 0
      %p200 = por %p198, %p199
      %p201 = scmp.ne.s32.totalorder %s187, %s188
      %p202 = scmp.eq.s32.totalorder %s23, 1
      %p203 = por %p201, %p202
      %p205 = scmp.ne.s32.totalorder %s188, %s204
      %p206 = scmp.eq.s32.totalorder %s23, 0
      %p207 = por %p205, %p206
      %p208 = scmp.le.s32.totalorder 1, %s17
      %p209 = scmp.lt.s32.totalorder %s17, 3
      %p210 = pnand %p208, %p209
      %p211 = pneg %p210
      // Predicated region
      $region9: #{tpu_custom_call.1} parent=5 // pred_check
        _
      $region10: #{tpu_custom_call.1} parent=5 // pred_check_branch
        %213 = sbr.rel (%p210) target = $region12
      $region11: #{tpu_custom_call.1} parent=5 // pred_region
        %s214 = ssub.s32 %s17, 1
        // Predicated region
        $region13: #{tpu_custom_call.1} parent=11 // pred_check
          %p215 = pneg %p90
        $region14: #{tpu_custom_call.1} parent=11 // pred_check_branch
          %217 = sbr.rel (%p215) target = $region16
        $region15: #{tpu_custom_call.1} parent=11 // pred_region
          _
        $region16: #{tpu_custom_call.1} parent=11 // pred_fallthru
          _
        // Predicated region
        $region17: #{tpu_custom_call.1} parent=11 // pred_check
          %p218 = pneg %p111
        $region18: #{tpu_custom_call.1} parent=11 // pred_check_branch
          %220 = sbr.rel (%p218) target = $region20
        $region19: #{tpu_custom_call.1} parent=11 // pred_region
          _
        $region20: #{tpu_custom_call.1} parent=11 // pred_fallthru
          _
        // Predicated region
        $region21: #{tpu_custom_call.1} parent=11 // pred_check
          %p221 = pneg %p132
        $region22: #{tpu_custom_call.1} parent=11 // pred_check_branch
          %223 = sbr.rel (%p221) target = $region24
        $region23: #{tpu_custom_call.1} parent=11 // pred_region
          _
        $region24: #{tpu_custom_call.1} parent=11 // pred_fallthru
          _
        // Predicated region
        $region25: #{tpu_custom_call.1} parent=11 // pred_check
          %p224 = pneg %p153
        $region26: #{tpu_custom_call.1} parent=11 // pred_check_branch
          %226 = sbr.rel (%p224) target = $region28
        $region27: #{tpu_custom_call.1} parent=11 // pred_region
          _
        $region28: #{tpu_custom_call.1} parent=11 // pred_fallthru
          _
        // Predicated region
        $region29: #{tpu_custom_call.1} parent=11 // pred_check
          %p227 = pneg %p174
        $region30: #{tpu_custom_call.1} parent=11 // pred_check_branch
          %229 = sbr.rel (%p227) target = $region32
        $region31: #{tpu_custom_call.1} parent=11 // pred_region
          %s231 = ssub.s32 16384, 16384
          %232 = vsyncadd [#allocation3], %s231
          %s233 = sshll.u32 [#allocation2], 4
          %s234 = int_to_ptr.vmem [resolvable:$true] %s233
          %239 = dma.hbm_to_vmem [thread:$0]  %s6, 16384, %s234, [#allocation3], 128, 128, 8
        $region32: #{tpu_custom_call.1} parent=11 // pred_fallthru
          _
      $region12: #{tpu_custom_call.1} parent=5 // pred_fallthru
        _
      %p240 = scmp.lt.s32.totalorder %s17, 2
      // Predicated region
      $region33: #{tpu_custom_call.1} parent=5 // pred_check
        %p241 = pneg %p240
      $region34: #{tpu_custom_call.1} parent=5 // pred_check_branch
        %243 = sbr.rel (%p241) target = $region36
      $region35: #{tpu_custom_call.1} parent=5 // pred_region
        // Predicated region
        $region37: #{tpu_custom_call.1} parent=35 // pred_check
          %p244 = pneg %p37
        $region38: #{tpu_custom_call.1} parent=35 // pred_check_branch
          %246 = sbr.rel (%p244) target = $region40
        $region39: #{tpu_custom_call.1} parent=35 // pred_region
          %s247 = smul.u32 16, %s17
          %p248 = scmp.lt.s32.totalorder %s247, 31
          %s249 = scalar_select %p248, %s247, 31
          %s250 = smul.addr %s249, 8
          %s251 = scalar_lea.vmem %s0, %s250
          %s252 = smul.u32 16, %s17
        $region40: #{tpu_custom_call.1} parent=35 // pred_fallthru
          _
        // Predicated region
        $region41: #{tpu_custom_call.1} parent=35 // pred_check
          %p253 = pneg %p63
        $region42: #{tpu_custom_call.1} parent=35 // pred_check_branch
          %255 = sbr.rel (%p253) target = $region44
        $region43: #{tpu_custom_call.1} parent=35 // pred_region
          %s256 = smul.u32 16, %s17
          %p257 = scmp.lt.s32.totalorder %s256, 31
          %s258 = scalar_select %p257, %s256, 31
          %s259 = smul.addr %s258, 8
          %s260 = scalar_lea.vmem %s1, %s259
          %s261 = smul.u32 16, %s17
        $region44: #{tpu_custom_call.1} parent=35 // pred_fallthru
          _
      $region36: #{tpu_custom_call.1} parent=5 // pred_fallthru
        _
      %p262 = scmp.le.s32.totalorder 1, %s17
      %p263 = scmp.lt.s32.totalorder %s17, 3
      %p264 = pnand %p262, %p263
      %p265 = pneg %p264
      // Predicated region
      $region45: #{tpu_custom_call.1} parent=5 // pred_check
        _
      $region46: #{tpu_custom_call.1} parent=5 // pred_check_branch
        %267 = sbr.rel (%p264) target = $region48
      $region47: #{tpu_custom_call.1} parent=5 // pred_region
        %s268 = ssub.s32 %s17, 1
        // Predicated region
        $region49: #{tpu_custom_call.1} parent=47 // pred_check
          %p269 = pneg %p174
        $region50: #{tpu_custom_call.1} parent=47 // pred_check_branch
          %271 = sbr.rel (%p269) target = $region52
        $region51: #{tpu_custom_call.1} parent=47 // pred_region
          %272 = dma.done [#allocation3], 16384
        $region52: #{tpu_custom_call.1} parent=47 // pred_fallthru
          _
        %s273 = smul.u32 16, %s22
        %p274 = scmp.lt.s32.totalorder %s273, 31
        %s275 = scalar_select %p274, %s273, 31
        %s276 = smul.addr %s275, 8
        %s277 = scalar_lea.vmem %s0, %s276
        %p278 = pneg %p43
        %p279 = pneg %p40
        %s280 = smul.u32 16, %s22
        %p281 = scmp.lt.s32.totalorder %s280, 31
        %s282 = scalar_select %p281, %s280, 31
        %s283 = smul.addr %s282, 8
        %s284 = scalar_lea.vmem %s1, %s283
        %p285 = pneg %p69
        %p286 = pneg %p66
        %p287 = pneg %p90
        %p288 = pneg %p87
        %p289 = pneg %p111
        %p290 = pneg %p108
        %p291 = pneg %p132
        %p292 = pneg %p129
        %p293 = pneg %p153
        %p294 = pneg %p150
        %p295 = pneg %p174
        %p296 = pneg %p171
        %p297 = pneg %p200
        %p298 = pneg %p197
        %s299 = sand.u32 %s187, 1
        %s300 = scalar_lea.sflag [#allocation4], %s299
        %s301 = sand.u32 %s187, 1
        %s302 = smul.addr %s301, 128
        %s303 = scalar_lea.vmem [#allocation5], %s302
        %s304 = smul.u32 16, %s22
        %p305 = scmp.lt.s32.totalorder %s304, 31
        %s306 = scalar_select %p305, %s304, 31
        %s307 = smul.addr %s306, 8
        %s308 = scalar_lea.vmem %s0, %s307
        %s309 = smul.u32 16, %s22
        %s310 = smul.u32 16, %s22
        %p311 = scmp.lt.s32.totalorder %s310, 31
        %s312 = scalar_select %p311, %s310, 31
        %s313 = smul.addr %s312, 8
        %s314 = scalar_lea.vmem %s1, %s313
        %s315 = smul.u32 16, %s22
        %s316 = smul.u32 16, %s22
        %v317 = vld [vmem:[%s308] sm:$0xff]
        %v318 = vld [vmem:[%s308 + $0x8] sm:$0xff]
        %v319 = vld [vmem:[%s308 + $0x10] sm:$0xff]
        %v320 = vld [vmem:[%s308 + $0x18] sm:$0xff]
        %v321 = vld [vmem:[%s308 + $0x20] sm:$0xff]
        %v322 = vld [vmem:[%s308 + $0x28] sm:$0xff]
        %v323 = vld [vmem:[%s308 + $0x30] sm:$0xff]
        %v324 = vld [vmem:[%s308 + $0x38] sm:$0xff]
        %v325 = vld [vmem:[%s308 + $0x40] sm:$0xff]
        %v326 = vld [vmem:[%s308 + $0x48] sm:$0xff]
        %v327 = vld [vmem:[%s308 + $0x50] sm:$0xff]
        %v328 = vld [vmem:[%s308 + $0x58] sm:$0xff]
        %v329 = vld [vmem:[%s308 + $0x60] sm:$0xff]
        %v330 = vld [vmem:[%s308 + $0x68] sm:$0xff]
        %v331 = vld [vmem:[%s308 + $0x70] sm:$0xff]
        %v332 = vld [vmem:[%s308 + $0x78] sm:$0xff]
        %v333 = vld [vmem:[%s2] sm:$0xff]
        %v334 = vld [vmem:[%s2 + $0x8] sm:$0xff]
        %v335 = vld [vmem:[%s2 + $0x10] sm:$0xff]
        %v336 = vld [vmem:[%s2 + $0x18] sm:$0xff]
        %v337 = vld [vmem:[%s2 + $0x20] sm:$0xff]
        %v338 = vld [vmem:[%s2 + $0x28] sm:$0xff]
        %vm339 = vcmask 392192
        %v341 = vsel %vm339, %v317, 0
        %v344 = vsel %vm339, %v318, 0
        %v347 = vsel %vm339, %v319, 0
        %v350 = vsel %vm339, %v320, 0
        %v353 = vsel %vm339, %v321, 0
        %v356 = vsel %vm339, %v322, 0
        %v359 = vsel %vm339, %v323, 0
        %v362 = vsel %vm339, %v324, 0
        %v365 = vsel %vm339, %v325, 0
        %v368 = vsel %vm339, %v326, 0
        %v371 = vsel %vm339, %v327, 0
        %v374 = vsel %vm339, %v328, 0
        %v377 = vsel %vm339, %v329, 0
        %v380 = vsel %vm339, %v330, 0
        %v383 = vsel %vm339, %v331, 0
        %v386 = vsel %vm339, %v332, 0
        %388 = vmatprep.subr.mxu0 0.0
        %389 = vmatpush1.msra.mxu0 %v333
        %390 = vmatprep.subr.mxu0 0.0
        %391 = vmatpush1.msra.mxu0 %v334
        %392 = vmatprep.subr.mxu0 0.0
        %393 = vmatpush1.msra.mxu0 %v335
        %394 = vmatprep.subr.mxu0 0.0
        %395 = vmatpush1.msra.mxu0 %v336
        %396 = vmatprep.subr.mxu0 0.0
        %397 = vmatpush1.msra.mxu0 %v337
        %398 = vmatprep.subr.mxu0 0.0
        %399 = vmatpush1.msra.mxu0 %v338
        %400 = vmatprep.subr.mxu0 0.0
        %401 = vmatpush1.msra.mxu0 0.0
        %402 = vmatprep.subr.mxu0 0.0
        %403 = vmatpush1.msra.mxu0 0.0
        %404 = vmatprep.subr.mxu0 0.0
        %405 = vmatpush1.msra.mxu0 0.0
        %406 = vmatprep.subr.mxu0 0.0
        %407 = vmatpush1.msra.mxu0 0.0
        %408 = vmatprep.subr.mxu0 0.0
        %409 = vmatpush1.msra.mxu0 0.0
        %410 = vmatprep.subr.mxu0 0.0
        %411 = vmatpush1.msra.mxu0 0.0
        %412 = vmatprep.subr.mxu0 0.0
        %413 = vmatpush1.msra.mxu0 0.0
        %414 = vmatprep.subr.mxu0 0.0
        %415 = vmatpush1.msra.mxu0 0.0
        %416 = vmatprep.subr.mxu0 0.0
        %417 = vmatpush1.msra.mxu0 0.0
        %418 = vmatprep.subr.mxu0 0.0
        %419 = vmatpush1.msra.mxu0 0.0
        %420 = vmatprep.subr.mxu0 0.0
        %421 = vmatpush1.msra.mxu0 0.0
        %422 = vmatprep.subr.mxu0 0.0
        %423 = vmatpush1.msra.mxu0 0.0
        %424 = vmatprep.subr.mxu0 0.0
        %425 = vmatpush1.msra.mxu0 0.0
        %426 = vmatprep.subr.mxu0 0.0
        %427 = vmatpush1.msra.mxu0 0.0
        %428 = vmatprep.subr.mxu0 0.0
        %429 = vmatpush1.msra.mxu0 0.0
        %430 = vmatprep.subr.mxu0 0.0
        %431 = vmatpush1.msra.mxu0 0.0
        %432 = vmatprep.subr.mxu0 0.0
        %433 = vmatpush1.msra.mxu0 0.0
        %434 = vmatprep.subr.mxu0 0.0
        %435 = vmatpush1.msra.mxu0 0.0
        %436 = vmatprep.subr.mxu0 0.0
        %437 = vmatpush1.msra.mxu0 0.0
        %438 = vmatprep.subr.mxu0 0.0
        %439 = vmatpush1.msra.mxu0 0.0
        %440 = vmatprep.subr.mxu0 0.0
        %441 = vmatpush1.msra.mxu0 0.0
        %442 = vmatprep.subr.mxu0 0.0
        %443 = vmatpush1.msra.mxu0 0.0
        %444 = vmatprep.subr.mxu0 0.0
        %445 = vmatpush1.msra.mxu0 0.0
        %446 = vmatprep.subr.mxu0 0.0
        %447 = vmatpush1.msra.mxu0 0.0
        %448 = vmatprep.subr.mxu0 0.0
        %449 = vmatpush1.msra.mxu0 0.0
        %450 = vmatprep.subr.mxu0 0.0
        %451 = vmatpush1.msra.mxu0 0.0
        %452 = vmatprep.mubr.f32.mxu0 0.0
        %453 = vmatmul.mubr.f32.gmra.mrb[0].mxu0 %v341
        %v454 = vpop.f32.mrb[0].mxu0
        %v455 = vadd.f32 0.0, %v454
        %v456 = vpop.f32.mrb[0].mxu0
        %457 = vmatprep.mubr.f32.mxu0 0.0
        %458 = vmatmul.mubr.f32.gmra.mrb[0].mxu0 %v344
        %v459 = vpop.f32.mrb[0].mxu0
        %v460 = vadd.f32 0.0, %v459
        %v461 = vpop.f32.mrb[0].mxu0
        %462 = vmatprep.mubr.f32.mxu0 0.0
        %463 = vmatmul.mubr.f32.gmra.mrb[0].mxu0 %v347
        %v464 = vpop.f32.mrb[0].mxu0
        %v465 = vadd.f32 0.0, %v464
        %v466 = vpop.f32.mrb[0].mxu0
        %467 = vmatprep.mubr.f32.mxu0 0.0
        %468 = vmatmul.mubr.f32.gmra.mrb[0].mxu0 %v350
        %v469 = vpop.f32.mrb[0].mxu0
        %v470 = vadd.f32 0.0, %v469
        %v471 = vpop.f32.mrb[0].mxu0
        %472 = vmatprep.mubr.f32.mxu0 0.0
        %473 = vmatmul.mubr.f32.gmra.mrb[0].mxu0 %v353
        %v474 = vpop.f32.mrb[0].mxu0
        %v475 = vadd.f32 0.0, %v474
        %v476 = vpop.f32.mrb[0].mxu0
        %477 = vmatprep.mubr.f32.mxu0 0.0
        %478 = vmatmul.mubr.f32.gmra.mrb[0].mxu0 %v356
        %v479 = vpop.f32.mrb[0].mxu0
        %v480 = vadd.f32 0.0, %v479
        %v481 = vpop.f32.mrb[0].mxu0
        %482 = vmatprep.mubr.f32.mxu0 0.0
        %483 = vmatmul.mubr.f32.gmra.mrb[0].mxu0 %v359
        %v484 = vpop.f32.mrb[0].mxu0
        %v485 = vadd.f32 0.0, %v484
        %v486 = vpop.f32.mrb[0].mxu0
        %487 = vmatprep.mubr.f32.mxu0 0.0
        %488 = vmatmul.mubr.f32.gmra.mrb[0].mxu0 %v362
        %v489 = vpop.f32.mrb[0].mxu0
        %v490 = vadd.f32 0.0, %v489
        %v491 = vpop.f32.mrb[0].mxu0
        %492 = vmatprep.mubr.f32.mxu0 0.0
        %493 = vmatmul.mubr.f32.gmra.mrb[0].mxu0 %v365
        %v494 = vpop.f32.mrb[0].mxu0
        %v495 = vadd.f32 0.0, %v494
        %v496 = vpop.f32.mrb[0].mxu0
        %497 = vmatprep.mubr.f32.mxu0 0.0
        %498 = vmatmul.mubr.f32.gmra.mrb[0].mxu0 %v368
        %v499 = vpop.f32.mrb[0].mxu0
        %v500 = vadd.f32 0.0, %v499
        %v501 = vpop.f32.mrb[0].mxu0
        %502 = vmatprep.mubr.f32.mxu0 0.0
        %503 = vmatmul.mubr.f32.gmra.mrb[0].mxu0 %v371
        %v504 = vpop.f32.mrb[0].mxu0
        %v505 = vadd.f32 0.0, %v504
        %v506 = vpop.f32.mrb[0].mxu0
        %507 = vmatprep.mubr.f32.mxu0 0.0
        %508 = vmatmul.mubr.f32.gmra.mrb[0].mxu0 %v374
        %v509 = vpop.f32.mrb[0].mxu0
        %v510 = vadd.f32 0.0, %v509
        %v511 = vpop.f32.mrb[0].mxu0
        %512 = vmatprep.mubr.f32.mxu0 0.0
        %513 = vmatmul.mubr.f32.gmra.mrb[0].mxu0 %v377
        %v514 = vpop.f32.mrb[0].mxu0
        %v515 = vadd.f32 0.0, %v514
        %v516 = vpop.f32.mrb[0].mxu0
        %517 = vmatprep.mubr.f32.mxu0 0.0
        %518 = vmatmul.mubr.f32.gmra.mrb[0].mxu0 %v380
        %v519 = vpop.f32.mrb[0].mxu0
        %v520 = vadd.f32 0.0, %v519
        %v521 = vpop.f32.mrb[0].mxu0
        %522 = vmatprep.mubr.f32.mxu0 0.0
        %523 = vmatmul.mubr.f32.gmra.mrb[0].mxu0 %v383
        %v524 = vpop.f32.mrb[0].mxu0
        %v525 = vadd.f32 0.0, %v524
        %v526 = vpop.f32.mrb[0].mxu0
        %527 = vmatprep.mubr.f32.mxu0 0.0
        %528 = vmatmul.mubr.f32.gmra.mrb[0].mxu0 %v386
        %v529 = vpop.f32.mrb[0].mxu0
        %v530 = vadd.f32 0.0, %v529
        %v531 = vpop.f32.mrb[0].mxu0
        %532 = vdwg.mxu0
        %v533 = vld [vmem:[%s314] sm:$0xff]
        %v534 = vld [vmem:[%s314 + $0x8] sm:$0xff]
        %v535 = vld [vmem:[%s314 + $0x10] sm:$0xff]
        %v536 = vld [vmem:[%s314 + $0x18] sm:$0xff]
        %v537 = vld [vmem:[%s314 + $0x20] sm:$0xff]
        %v538 = vld [vmem:[%s314 + $0x28] sm:$0xff]
        %v539 = vld [vmem:[%s314 + $0x30] sm:$0xff]
        %v540 = vld [vmem:[%s314 + $0x38] sm:$0xff]
        %v541 = vld [vmem:[%s314 + $0x40] sm:$0xff]
        %v542 = vld [vmem:[%s314 + $0x48] sm:$0xff]
        %v543 = vld [vmem:[%s314 + $0x50] sm:$0xff]
        %v544 = vld [vmem:[%s314 + $0x58] sm:$0xff]
        %v545 = vld [vmem:[%s314 + $0x60] sm:$0xff]
        %v546 = vld [vmem:[%s314 + $0x68] sm:$0xff]
        %v547 = vld [vmem:[%s314 + $0x70] sm:$0xff]
        %v548 = vld [vmem:[%s314 + $0x78] sm:$0xff]
        %v549 = vld [vmem:[%s3] sm:$0xff]
        %v550 = vld [vmem:[%s3 + $0x8] sm:$0xff]
        %v551 = vld [vmem:[%s3 + $0x10] sm:$0xff]
        %v552 = vld [vmem:[%s3 + $0x18] sm:$0xff]
        %v553 = vld [vmem:[%s3 + $0x20] sm:$0xff]
        %v554 = vld [vmem:[%s3 + $0x28] sm:$0xff]
        %v555 = vld [vmem:[%s3 + $0x30] sm:$0xff]
        %v556 = vld [vmem:[%s3 + $0x38] sm:$0xff]
        %vm557 = vcmask 523264
        %v559 = vsel %vm557, %v533, 0
        %v562 = vsel %vm557, %v534, 0
        %v565 = vsel %vm557, %v535, 0
        %v568 = vsel %vm557, %v536, 0
        %v571 = vsel %vm557, %v537, 0
        %v574 = vsel %vm557, %v538, 0
        %v577 = vsel %vm557, %v539, 0
        %v580 = vsel %vm557, %v540, 0
        %v583 = vsel %vm557, %v541, 0
        %v586 = vsel %vm557, %v542, 0
        %v589 = vsel %vm557, %v543, 0
        %v592 = vsel %vm557, %v544, 0
        %v595 = vsel %vm557, %v545, 0
        %v598 = vsel %vm557, %v546, 0
        %v601 = vsel %vm557, %v547, 0
        %v604 = vsel %vm557, %v548, 0
        %606 = vmatprep.subr.mxu0 0.0
        %607 = vmatpush1.msra.mxu0 %v549
        %608 = vmatprep.subr.mxu0 0.0
        %609 = vmatpush1.msra.mxu0 %v550
        %610 = vmatprep.subr.mxu0 0.0
        %611 = vmatpush1.msra.mxu0 %v551
        %612 = vmatprep.subr.mxu0 0.0
        %613 = vmatpush1.msra.mxu0 %v552
        %614 = vmatprep.subr.mxu0 0.0
        %615 = vmatpush1.msra.mxu0 %v553
        %616 = vmatprep.subr.mxu0 0.0
        %617 = vmatpush1.msra.mxu0 %v554
        %618 = vmatprep.subr.mxu0 0.0
        %619 = vmatpush1.msra.mxu0 %v555
        %620 = vmatprep.subr.mxu0 0.0
        %621 = vmatpush1.msra.mxu0 %v556
        %622 = vmatprep.subr.mxu0 0.0
        %623 = vmatpush1.msra.mxu0 0.0
        %624 = vmatprep.subr.mxu0 0.0
        %625 = vmatpush1.msra.mxu0 0.0
        %626 = vmatprep.subr.mxu0 0.0
        %627 = vmatpush1.msra.mxu0 0.0
        %628 = vmatprep.subr.mxu0 0.0
        %629 = vmatpush1.msra.mxu0 0.0
        %630 = vmatprep.subr.mxu0 0.0
        %631 = vmatpush1.msra.mxu0 0.0
        %632 = vmatprep.subr.mxu0 0.0
        %633 = vmatpush1.msra.mxu0 0.0
        %634 = vmatprep.subr.mxu0 0.0
        %635 = vmatpush1.msra.mxu0 0.0
        %636 = vmatprep.subr.mxu0 0.0
        %637 = vmatpush1.msra.mxu0 0.0
        %638 = vmatprep.subr.mxu0 0.0
        %639 = vmatpush1.msra.mxu0 0.0
        %640 = vmatprep.subr.mxu0 0.0
        %641 = vmatpush1.msra.mxu0 0.0
        %642 = vmatprep.subr.mxu0 0.0
        %643 = vmatpush1.msra.mxu0 0.0
        %644 = vmatprep.subr.mxu0 0.0
        %645 = vmatpush1.msra.mxu0 0.0
        %646 = vmatprep.subr.mxu0 0.0
        %647 = vmatpush1.msra.mxu0 0.0
        %648 = vmatprep.subr.mxu0 0.0
        %649 = vmatpush1.msra.mxu0 0.0
        %650 = vmatprep.subr.mxu0 0.0
        %651 = vmatpush1.msra.mxu0 0.0
        %652 = vmatprep.subr.mxu0 0.0
        %653 = vmatpush1.msra.mxu0 0.0
        %654 = vmatprep.subr.mxu0 0.0
        %655 = vmatpush1.msra.mxu0 0.0
        %656 = vmatprep.subr.mxu0 0.0
        %657 = vmatpush1.msra.mxu0 0.0
        %658 = vmatprep.subr.mxu0 0.0
        %659 = vmatpush1.msra.mxu0 0.0
        %660 = vmatprep.subr.mxu0 0.0
        %661 = vmatpush1.msra.mxu0 0.0
        %662 = vmatprep.subr.mxu0 0.0
        %663 = vmatpush1.msra.mxu0 0.0
        %664 = vmatprep.subr.mxu0 0.0
        %665 = vmatpush1.msra.mxu0 0.0
        %666 = vmatprep.subr.mxu0 0.0
        %667 = vmatpush1.msra.mxu0 0.0
        %668 = vmatprep.subr.mxu0 0.0
        %669 = vmatpush1.msra.mxu0 0.0
        %670 = vmatprep.mubr.f32.mxu0 0.0
        %671 = vmatmul.mubr.f32.gmra.mrb[0].mxu0 %v559
        %v672 = vpop.f32.mrb[0].mxu0
        %v673 = vadd.f32 0.0, %v672
        %v674 = vpop.f32.mrb[0].mxu0
        %675 = vmatprep.mubr.f32.mxu0 0.0
        %676 = vmatmul.mubr.f32.gmra.mrb[0].mxu0 %v562
        %v677 = vpop.f32.mrb[0].mxu0
        %v678 = vadd.f32 0.0, %v677
        %v679 = vpop.f32.mrb[0].mxu0
        %680 = vmatprep.mubr.f32.mxu0 0.0
        %681 = vmatmul.mubr.f32.gmra.mrb[0].mxu0 %v565
        %v682 = vpop.f32.mrb[0].mxu0
        %v683 = vadd.f32 0.0, %v682
        %v684 = vpop.f32.mrb[0].mxu0
        %685 = vmatprep.mubr.f32.mxu0 0.0
        %686 = vmatmul.mubr.f32.gmra.mrb[0].mxu0 %v568
        %v687 = vpop.f32.mrb[0].mxu0
        %v688 = vadd.f32 0.0, %v687
        %v689 = vpop.f32.mrb[0].mxu0
        %690 = vmatprep.mubr.f32.mxu0 0.0
        %691 = vmatmul.mubr.f32.gmra.mrb[0].mxu0 %v571
        %v692 = vpop.f32.mrb[0].mxu0
        %v693 = vadd.f32 0.0, %v692
        %v694 = vpop.f32.mrb[0].mxu0
        %695 = vmatprep.mubr.f32.mxu0 0.0
        %696 = vmatmul.mubr.f32.gmra.mrb[0].mxu0 %v574
        %v697 = vpop.f32.mrb[0].mxu0
        %v698 = vadd.f32 0.0, %v697
        %v699 = vpop.f32.mrb[0].mxu0
        %700 = vmatprep.mubr.f32.mxu0 0.0
        %701 = vmatmul.mubr.f32.gmra.mrb[0].mxu0 %v577
        %v702 = vpop.f32.mrb[0].mxu0
        %v703 = vadd.f32 0.0, %v702
        %v704 = vpop.f32.mrb[0].mxu0
        %705 = vmatprep.mubr.f32.mxu0 0.0
        %706 = vmatmul.mubr.f32.gmra.mrb[0].mxu0 %v580
        %v707 = vpop.f32.mrb[0].mxu0
        %v708 = vadd.f32 0.0, %v707
        %v709 = vpop.f32.mrb[0].mxu0
        %710 = vmatprep.mubr.f32.mxu0 0.0
        %711 = vmatmul.mubr.f32.gmra.mrb[0].mxu0 %v583
        %v712 = vpop.f32.mrb[0].mxu0
        %v713 = vadd.f32 0.0, %v712
        %v714 = vpop.f32.mrb[0].mxu0
        %715 = vmatprep.mubr.f32.mxu0 0.0
        %716 = vmatmul.mubr.f32.gmra.mrb[0].mxu0 %v586
        %v717 = vpop.f32.mrb[0].mxu0
        %v718 = vadd.f32 0.0, %v717
        %v719 = vpop.f32.mrb[0].mxu0
        %720 = vmatprep.mubr.f32.mxu0 0.0
        %721 = vmatmul.mubr.f32.gmra.mrb[0].mxu0 %v589
        %v722 = vpop.f32.mrb[0].mxu0
        %v723 = vadd.f32 0.0, %v722
        %v724 = vpop.f32.mrb[0].mxu0
        %725 = vmatprep.mubr.f32.mxu0 0.0
        %726 = vmatmul.mubr.f32.gmra.mrb[0].mxu0 %v592
        %v727 = vpop.f32.mrb[0].mxu0
        %v728 = vadd.f32 0.0, %v727
        %v729 = vpop.f32.mrb[0].mxu0
        %730 = vmatprep.mubr.f32.mxu0 0.0
        %731 = vmatmul.mubr.f32.gmra.mrb[0].mxu0 %v595
        %v732 = vpop.f32.mrb[0].mxu0
        %v733 = vadd.f32 0.0, %v732
        %v734 = vpop.f32.mrb[0].mxu0
        %735 = vmatprep.mubr.f32.mxu0 0.0
        %736 = vmatmul.mubr.f32.gmra.mrb[0].mxu0 %v598
        %v737 = vpop.f32.mrb[0].mxu0
        %v738 = vadd.f32 0.0, %v737
        %v739 = vpop.f32.mrb[0].mxu0
        %740 = vmatprep.mubr.f32.mxu0 0.0
        %741 = vmatmul.mubr.f32.gmra.mrb[0].mxu0 %v601
        %v742 = vpop.f32.mrb[0].mxu0
        %v743 = vadd.f32 0.0, %v742
        %v744 = vpop.f32.mrb[0].mxu0
        %745 = vmatprep.mubr.f32.mxu0 0.0
        %746 = vmatmul.mubr.f32.gmra.mrb[0].mxu0 %v604
        %v747 = vpop.f32.mrb[0].mxu0
        %v748 = vadd.f32 0.0, %v747
        %v749 = vpop.f32.mrb[0].mxu0
        %750 = vdwg.mxu0
        %v751 = vld [vmem:[%s4] sm:$0xff]
        %v752 = vld [vmem:[%s4 + $0x8] sm:$0xff]
        %v753 = vld [vmem:[%s4 + $0x10] sm:$0xff]
        %v754 = vld [vmem:[%s4 + $0x18] sm:$0xff]
        %v755 = vld [vmem:[%s4 + $0x20] sm:$0xff]
        %v756 = vld [vmem:[%s4 + $0x28] sm:$0xff]
        %v757 = vld [vmem:[%s4 + $0x30] sm:$0xff]
        %v758 = vld [vmem:[%s4 + $0x38] sm:$0xff]
        %v759 = vld [vmem:[%s4 + $0x40] sm:$0xff]
        %v760 = vld [vmem:[%s4 + $0x48] sm:$0xff]
        %v761 = vld [vmem:[%s4 + $0x50] sm:$0xff]
        %v762 = vld [vmem:[%s4 + $0x58] sm:$0xff]
        %v763 = vld [vmem:[%s4 + $0x60] sm:$0xff]
        %v764 = vld [vmem:[%s4 + $0x68] sm:$0xff]
        %v765 = vld [vmem:[%s4 + $0x70] sm:$0xff]
        %v766 = vld [vmem:[%s4 + $0x78] sm:$0xff]
        %v767 = vld [vmem:[%s4 + $0x80] sm:$0xff]
        %v768 = vld [vmem:[%s4 + $0x88] sm:$0xff]
        %v769 = vld [vmem:[%s4 + $0x90] sm:$0xff]
        %v770 = vld [vmem:[%s4 + $0x98] sm:$0xff]
        %v771 = vld [vmem:[%s4 + $0xa0] sm:$0xff]
        %v772 = vld [vmem:[%s4 + $0xa8] sm:$0xff]
        %v773 = vld [vmem:[%s4 + $0xb0] sm:$0xff]
        %v774 = vld [vmem:[%s4 + $0xb8] sm:$0xff]
        %v775 = vld [vmem:[%s4 + $0xc0] sm:$0xff]
        %v776 = vld [vmem:[%s4 + $0xc8] sm:$0xff]
        %v777 = vld [vmem:[%s4 + $0xd0] sm:$0xff]
        %v778 = vld [vmem:[%s4 + $0xd8] sm:$0xff]
        %v779 = vld [vmem:[%s4 + $0xe0] sm:$0xff]
        %v780 = vld [vmem:[%s4 + $0xe8] sm:$0xff]
        %v781 = vld [vmem:[%s4 + $0xf0] sm:$0xff]
        %v782 = vld [vmem:[%s4 + $0xf8] sm:$0xff]
        %vm783 = vcmask 261120
        %v785 = vsel %vm783, %v455, 0
        %v788 = vsel %vm783, %v460, 0
        %v791 = vsel %vm783, %v465, 0
        %v794 = vsel %vm783, %v470, 0
        %v797 = vsel %vm783, %v475, 0
        %v800 = vsel %vm783, %v480, 0
        %v803 = vsel %vm783, %v485, 0
        %v806 = vsel %vm783, %v490, 0
        %v809 = vsel %vm783, %v495, 0
        %v812 = vsel %vm783, %v500, 0
        %v815 = vsel %vm783, %v505, 0
        %v818 = vsel %vm783, %v510, 0
        %v821 = vsel %vm783, %v515, 0
        %v824 = vsel %vm783, %v520, 0
        %v827 = vsel %vm783, %v525, 0
        %v830 = vsel %vm783, %v530, 0
        %832 = vmatprep.subr.mxu0 %v752
        %833 = vmatpush1.msra.mxu0 %v751
        %834 = vmatprep.subr.mxu0 %v760
        %835 = vmatpush1.msra.mxu0 %v759
        %836 = vmatprep.subr.mxu0 %v768
        %837 = vmatpush1.msra.mxu0 %v767
        %838 = vmatprep.subr.mxu0 %v776
        %839 = vmatpush1.msra.mxu0 %v775
        %840 = vmatprep.subr.mxu0 0.0
        %841 = vmatpush1.msra.mxu0 0.0
        %842 = vmatprep.subr.mxu0 0.0
        %843 = vmatpush1.msra.mxu0 0.0
        %844 = vmatprep.subr.mxu0 0.0
        %845 = vmatpush1.msra.mxu0 0.0
        %846 = vmatprep.subr.mxu0 0.0
        %847 = vmatpush1.msra.mxu0 0.0
        %848 = vmatprep.subr.mxu0 0.0
        %849 = vmatpush1.msra.mxu0 0.0
        %850 = vmatprep.subr.mxu0 0.0
        %851 = vmatpush1.msra.mxu0 0.0
        %852 = vmatprep.subr.mxu0 0.0
        %853 = vmatpush1.msra.mxu0 0.0
        %854 = vmatprep.subr.mxu0 0.0
        %855 = vmatpush1.msra.mxu0 0.0
        %856 = vmatprep.subr.mxu0 0.0
        %857 = vmatpush1.msra.mxu0 0.0
        %858 = vmatprep.subr.mxu0 0.0
        %859 = vmatpush1.msra.mxu0 0.0
        %860 = vmatprep.subr.mxu0 0.0
        %861 = vmatpush1.msra.mxu0 0.0
        %862 = vmatprep.subr.mxu0 0.0
        %863 = vmatpush1.msra.mxu0 0.0
        %864 = vmatprep.subr.mxu0 0.0
        %865 = vmatpush1.msra.mxu0 0.0
        %866 = vmatprep.subr.mxu0 0.0
        %867 = vmatpush1.msra.mxu0 0.0
        %868 = vmatprep.subr.mxu0 0.0
        %869 = vmatpush1.msra.mxu0 0.0
        %870 = vmatprep.subr.mxu0 0.0
        %871 = vmatpush1.msra.mxu0 0.0
        %872 = vmatprep.subr.mxu0 0.0
        %873 = vmatpush1.msra.mxu0 0.0
        %874 = vmatprep.subr.mxu0 0.0
        %875 = vmatpush1.msra.mxu0 0.0
        %876 = vmatprep.subr.mxu0 0.0
        %877 = vmatpush1.msra.mxu0 0.0
        %878 = vmatprep.subr.mxu0 0.0
        %879 = vmatpush1.msra.mxu0 0.0
        %880 = vmatprep.subr.mxu0 0.0
        %881 = vmatpush1.msra.mxu0 0.0
        %882 = vmatprep.subr.mxu0 0.0
        %883 = vmatpush1.msra.mxu0 0.0
        %884 = vmatprep.subr.mxu0 0.0
        %885 = vmatpush1.msra.mxu0 0.0
        %886 = vmatprep.subr.mxu0 0.0
        %887 = vmatpush1.msra.mxu0 0.0
        %888 = vmatprep.subr.mxu0 0.0
        %889 = vmatpush1.msra.mxu0 0.0
        %890 = vmatprep.subr.mxu0 0.0
        %891 = vmatpush1.msra.mxu0 0.0
        %892 = vmatprep.subr.mxu0 0.0
        %893 = vmatpush1.msra.mxu0 0.0
        %894 = vmatprep.subr.mxu0 0.0
        %895 = vmatpush1.msra.mxu0 0.0
        %896 = vmatprep.mubr.f32.mxu0 0.0
        %897 = vmatmul.mubr.f32.gmra.mrb[0].mxu0 %v785
        %v898 = vpop.f32.mrb[0].mxu0
        %v899 = vadd.f32 0.0, %v898
        %v900 = vpop.f32.mrb[0].mxu0
        %v901 = vadd.f32 0.0, %v900
        %902 = vmatprep.mubr.f32.mxu0 0.0
        %903 = vmatmul.mubr.f32.gmra.mrb[0].mxu0 %v788
        %v904 = vpop.f32.mrb[0].mxu0
        %v905 = vadd.f32 0.0, %v904
        %v906 = vpop.f32.mrb[0].mxu0
        %v907 = vadd.f32 0.0, %v906
        %908 = vmatprep.mubr.f32.mxu0 0.0
        %909 = vmatmul.mubr.f32.gmra.mrb[0].mxu0 %v791
        %v910 = vpop.f32.mrb[0].mxu0
        %v911 = vadd.f32 0.0, %v910
        %v912 = vpop.f32.mrb[0].mxu0
        %v913 = vadd.f32 0.0, %v912
        %914 = vmatprep.mubr.f32.mxu0 0.0
        %915 = vmatmul.mubr.f32.gmra.mrb[0].mxu0 %v794
        %v916 = vpop.f32.mrb[0].mxu0
        %v917 = vadd.f32 0.0, %v916
        %v918 = vpop.f32.mrb[0].mxu0
        %v919 = vadd.f32 0.0, %v918
        %920 = vmatprep.mubr.f32.mxu0 0.0
        %921 = vmatmul.mubr.f32.gmra.mrb[0].mxu0 %v797
        %v922 = vpop.f32.mrb[0].mxu0
        %v923 = vadd.f32 0.0, %v922
        %v924 = vpop.f32.mrb[0].mxu0
        %v925 = vadd.f32 0.0, %v924
        %926 = vmatprep.mubr.f32.mxu0 0.0
        %927 = vmatmul.mubr.f32.gmra.mrb[0].mxu0 %v800
        %v928 = vpop.f32.mrb[0].mxu0
        %v929 = vadd.f32 0.0, %v928
        %v930 = vpop.f32.mrb[0].mxu0
        %v931 = vadd.f32 0.0, %v930
        %932 = vmatprep.mubr.f32.mxu0 0.0
        %933 = vmatmul.mubr.f32.gmra.mrb[0].mxu0 %v803
        %v934 = vpop.f32.mrb[0].mxu0
        %v935 = vadd.f32 0.0, %v934
        %v936 = vpop.f32.mrb[0].mxu0
        %v937 = vadd.f32 0.0, %v936
        %938 = vmatprep.mubr.f32.mxu0 0.0
        %939 = vmatmul.mubr.f32.gmra.mrb[0].mxu0 %v806
        %v940 = vpop.f32.mrb[0].mxu0
        %v941 = vadd.f32 0.0, %v940
        %v942 = vpop.f32.mrb[0].mxu0
        %v943 = vadd.f32 0.0, %v942
        %944 = vmatprep.mubr.f32.mxu0 0.0
        %945 = vmatmul.mubr.f32.gmra.mrb[0].mxu0 %v809
        %v946 = vpop.f32.mrb[0].mxu0
        %v947 = vadd.f32 0.0, %v946
        %v948 = vpop.f32.mrb[0].mxu0
        %v949 = vadd.f32 0.0, %v948
        %950 = vmatprep.mubr.f32.mxu0 0.0
        %951 = vmatmul.mubr.f32.gmra.mrb[0].mxu0 %v812
        %v952 = vpop.f32.mrb[0].mxu0
        %v953 = vadd.f32 0.0, %v952
        %v954 = vpop.f32.mrb[0].mxu0
        %v955 = vadd.f32 0.0, %v954
        %956 = vmatprep.mubr.f32.mxu0 0.0
        %957 = vmatmul.mubr.f32.gmra.mrb[0].mxu0 %v815
        %v958 = vpop.f32.mrb[0].mxu0
        %v959 = vadd.f32 0.0, %v958
        %v960 = vpop.f32.mrb[0].mxu0
        %v961 = vadd.f32 0.0, %v960
        %962 = vmatprep.mubr.f32.mxu0 0.0
        %963 = vmatmul.mubr.f32.gmra.mrb[0].mxu0 %v818
        %v964 = vpop.f32.mrb[0].mxu0
        %v965 = vadd.f32 0.0, %v964
        %v966 = vpop.f32.mrb[0].mxu0
        %v967 = vadd.f32 0.0, %v966
        %968 = vmatprep.mubr.f32.mxu0 0.0
        %969 = vmatmul.mubr.f32.gmra.mrb[0].mxu0 %v821
        %v970 = vpop.f32.mrb[0].mxu0
        %v971 = vadd.f32 0.0, %v970
        %v972 = vpop.f32.mrb[0].mxu0
        %v973 = vadd.f32 0.0, %v972
        %974 = vmatprep.mubr.f32.mxu0 0.0
        %975 = vmatmul.mubr.f32.gmra.mrb[0].mxu0 %v824
        %v976 = vpop.f32.mrb[0].mxu0
        %v977 = vadd.f32 0.0, %v976
        %v978 = vpop.f32.mrb[0].mxu0
        %v979 = vadd.f32 0.0, %v978
        %980 = vmatprep.mubr.f32.mxu0 0.0
        %981 = vmatmul.mubr.f32.gmra.mrb[0].mxu0 %v827
        %v982 = vpop.f32.mrb[0].mxu0
        %v983 = vadd.f32 0.0, %v982
        %v984 = vpop.f32.mrb[0].mxu0
        %v985 = vadd.f32 0.0, %v984
        %986 = vmatprep.mubr.f32.mxu0 0.0
        %987 = vmatmul.mubr.f32.gmra.mrb[0].mxu0 %v830
        %v988 = vpop.f32.mrb[0].mxu0
        %v989 = vadd.f32 0.0, %v988
        %v990 = vpop.f32.mrb[0].mxu0
        %v991 = vadd.f32 0.0, %v990
        %992 = vdwg.mxu0
        %993 = vmatprep.subr.mxu0 %v754
        %994 = vmatpush1.msra.mxu0 %v753
        %995 = vmatprep.subr.mxu0 %v762
        %996 = vmatpush1.msra.mxu0 %v761
        %997 = vmatprep.subr.mxu0 %v770
        %998 = vmatpush1.msra.mxu0 %v769
        %999 = vmatprep.subr.mxu0 %v778
        %1000 = vmatpush1.msra.mxu0 %v777
        %1001 = vmatprep.subr.mxu0 0.0
        %1002 = vmatpush1.msra.mxu0 0.0
        %1003 = vmatprep.subr.mxu0 0.0
        %1004 = vmatpush1.msra.mxu0 0.0
        %1005 = vmatprep.subr.mxu0 0.0
        %1006 = vmatpush1.msra.mxu0 0.0
        %1007 = vmatprep.subr.mxu0 0.0
        %1008 = vmatpush1.msra.mxu0 0.0
        %1009 = vmatprep.subr.mxu0 0.0
        %1010 = vmatpush1.msra.mxu0 0.0
        %1011 = vmatprep.subr.mxu0 0.0
        %1012 = vmatpush1.msra.mxu0 0.0
        %1013 = vmatprep.subr.mxu0 0.0
        %1014 = vmatpush1.msra.mxu0 0.0
        %1015 = vmatprep.subr.mxu0 0.0
        %1016 = vmatpush1.msra.mxu0 0.0
        %1017 = vmatprep.subr.mxu0 0.0
        %1018 = vmatpush1.msra.mxu0 0.0
        %1019 = vmatprep.subr.mxu0 0.0
        %1020 = vmatpush1.msra.mxu0 0.0
        %1021 = vmatprep.subr.mxu0 0.0
        %1022 = vmatpush1.msra.mxu0 0.0
        %1023 = vmatprep.subr.mxu0 0.0
        %1024 = vmatpush1.msra.mxu0 0.0
        %1025 = vmatprep.subr.mxu0 0.0
        %1026 = vmatpush1.msra.mxu0 0.0
        %1027 = vmatprep.subr.mxu0 0.0
        %1028 = vmatpush1.msra.mxu0 0.0
        %1029 = vmatprep.subr.mxu0 0.0
        %1030 = vmatpush1.msra.mxu0 0.0
        %1031 = vmatprep.subr.mxu0 0.0
        %1032 = vmatpush1.msra.mxu0 0.0
        %1033 = vmatprep.subr.mxu0 0.0
        %1034 = vmatpush1.msra.mxu0 0.0
        %1035 = vmatprep.subr.mxu0 0.0
        %1036 = vmatpush1.msra.mxu0 0.0
        %1037 = vmatprep.subr.mxu0 0.0
        %1038 = vmatpush1.msra.mxu0 0.0
        %1039 = vmatprep.subr.mxu0 0.0
        %1040 = vmatpush1.msra.mxu0 0.0
        %1041 = vmatprep.subr.mxu0 0.0
        %1042 = vmatpush1.msra.mxu0 0.0
        %1043 = vmatprep.subr.mxu0 0.0
        %1044 = vmatpush1.msra.mxu0 0.0
        %1045 = vmatprep.subr.mxu0 0.0
        %1046 = vmatpush1.msra.mxu0 0.0
        %1047 = vmatprep.subr.mxu0 0.0
        %1048 = vmatpush1.msra.mxu0 0.0
        %1049 = vmatprep.subr.mxu0 0.0
        %1050 = vmatpush1.msra.mxu0 0.0
        %1051 = vmatprep.subr.mxu0 0.0
        %1052 = vmatpush1.msra.mxu0 0.0
        %1053 = vmatprep.subr.mxu0 0.0
        %1054 = vmatpush1.msra.mxu0 0.0
        %1055 = vmatprep.subr.mxu0 0.0
        %1056 = vmatpush1.msra.mxu0 0.0
        %1057 = vmatprep.mubr.f32.mxu0 0.0
        %1058 = vmatmul.mubr.f32.gmra.mrb[0].mxu0 %v785
        %v1059 = vpop.f32.mrb[0].mxu0
        %v1060 = vadd.f32 0.0, %v1059
        %v1061 = vpop.f32.mrb[0].mxu0
        %v1062 = vadd.f32 0.0, %v1061
        %1063 = vmatprep.mubr.f32.mxu0 0.0
        %1064 = vmatmul.mubr.f32.gmra.mrb[0].mxu0 %v788
        %v1065 = vpop.f32.mrb[0].mxu0
        %v1066 = vadd.f32 0.0, %v1065
        %v1067 = vpop.f32.mrb[0].mxu0
        %v1068 = vadd.f32 0.0, %v1067
        %1069 = vmatprep.mubr.f32.mxu0 0.0
        %1070 = vmatmul.mubr.f32.gmra.mrb[0].mxu0 %v791
        %v1071 = vpop.f32.mrb[0].mxu0
        %v1072 = vadd.f32 0.0, %v1071
        %v1073 = vpop.f32.mrb[0].mxu0
        %v1074 = vadd.f32 0.0, %v1073
        %1075 = vmatprep.mubr.f32.mxu0 0.0
        %1076 = vmatmul.mubr.f32.gmra.mrb[0].mxu0 %v794
        %v1077 = vpop.f32.mrb[0].mxu0
        %v1078 = vadd.f32 0.0, %v1077
        %v1079 = vpop.f32.mrb[0].mxu0
        %v1080 = vadd.f32 0.0, %v1079
        %1081 = vmatprep.mubr.f32.mxu0 0.0
        %1082 = vmatmul.mubr.f32.gmra.mrb[0].mxu0 %v797
        %v1083 = vpop.f32.mrb[0].mxu0
        %v1084 = vadd.f32 0.0, %v1083
        %v1085 = vpop.f32.mrb[0].mxu0
        %v1086 = vadd.f32 0.0, %v1085
        %1087 = vmatprep.mubr.f32.mxu0 0.0
        %1088 = vmatmul.mubr.f32.gmra.mrb[0].mxu0 %v800
        %v1089 = vpop.f32.mrb[0].mxu0
        %v1090 = vadd.f32 0.0, %v1089
        %v1091 = vpop.f32.mrb[0].mxu0
        %v1092 = vadd.f32 0.0, %v1091
        %1093 = vmatprep.mubr.f32.mxu0 0.0
        %1094 = vmatmul.mubr.f32.gmra.mrb[0].mxu0 %v803
        %v1095 = vpop.f32.mrb[0].mxu0
        %v1096 = vadd.f32 0.0, %v1095
        %v1097 = vpop.f32.mrb[0].mxu0
        %v1098 = vadd.f32 0.0, %v1097
        %1099 = vmatprep.mubr.f32.mxu0 0.0
        %1100 = vmatmul.mubr.f32.gmra.mrb[0].mxu0 %v806
        %v1101 = vpop.f32.mrb[0].mxu0
        %v1102 = vadd.f32 0.0, %v1101
        %v1103 = vpop.f32.mrb[0].mxu0
        %v1104 = vadd.f32 0.0, %v1103
        %1105 = vmatprep.mubr.f32.mxu0 0.0
        %1106 = vmatmul.mubr.f32.gmra.mrb[0].mxu0 %v809
        %v1107 = vpop.f32.mrb[0].mxu0
        %v1108 = vadd.f32 0.0, %v1107
        %v1109 = vpop.f32.mrb[0].mxu0
        %v1110 = vadd.f32 0.0, %v1109
        %1111 = vmatprep.mubr.f32.mxu0 0.0
        %1112 = vmatmul.mubr.f32.gmra.mrb[0].mxu0 %v812
        %v1113 = vpop.f32.mrb[0].mxu0
        %v1114 = vadd.f32 0.0, %v1113
        %v1115 = vpop.f32.mrb[0].mxu0
        %v1116 = vadd.f32 0.0, %v1115
        %1117 = vmatprep.mubr.f32.mxu0 0.0
        %1118 = vmatmul.mubr.f32.gmra.mrb[0].mxu0 %v815
        %v1119 = vpop.f32.mrb[0].mxu0
        %v1120 = vadd.f32 0.0, %v1119
        %v1121 = vpop.f32.mrb[0].mxu0
        %v1122 = vadd.f32 0.0, %v1121
        %1123 = vmatprep.mubr.f32.mxu0 0.0
        %1124 = vmatmul.mubr.f32.gmra.mrb[0].mxu0 %v818
        %v1125 = vpop.f32.mrb[0].mxu0
        %v1126 = vadd.f32 0.0, %v1125
        %v1127 = vpop.f32.mrb[0].mxu0
        %v1128 = vadd.f32 0.0, %v1127
        %1129 = vmatprep.mubr.f32.mxu0 0.0
        %1130 = vmatmul.mubr.f32.gmra.mrb[0].mxu0 %v821
        %v1131 = vpop.f32.mrb[0].mxu0
        %v1132 = vadd.f32 0.0, %v1131
        %v1133 = vpop.f32.mrb[0].mxu0
        %v1134 = vadd.f32 0.0, %v1133
        %1135 = vmatprep.mubr.f32.mxu0 0.0
        %1136 = vmatmul.mubr.f32.gmra.mrb[0].mxu0 %v824
        %v1137 = vpop.f32.mrb[0].mxu0
        %v1138 = vadd.f32 0.0, %v1137
        %v1139 = vpop.f32.mrb[0].mxu0
        %v1140 = vadd.f32 0.0, %v1139
        %1141 = vmatprep.mubr.f32.mxu0 0.0
        %1142 = vmatmul.mubr.f32.gmra.mrb[0].mxu0 %v827
        %v1143 = vpop.f32.mrb[0].mxu0
        %v1144 = vadd.f32 0.0, %v1143
        %v1145 = vpop.f32.mrb[0].mxu0
        %v1146 = vadd.f32 0.0, %v1145
        %1147 = vmatprep.mubr.f32.mxu0 0.0
        %1148 = vmatmul.mubr.f32.gmra.mrb[0].mxu0 %v830
        %v1149 = vpop.f32.mrb[0].mxu0
        %v1150 = vadd.f32 0.0, %v1149
        %v1151 = vpop.f32.mrb[0].mxu0
        %v1152 = vadd.f32 0.0, %v1151
        %1153 = vdwg.mxu0
        %1154 = vmatprep.subr.mxu0 %v756
        %1155 = vmatpush1.msra.mxu0 %v755
        %1156 = vmatprep.subr.mxu0 %v764
        %1157 = vmatpush1.msra.mxu0 %v763
        %1158 = vmatprep.subr.mxu0 %v772
        %1159 = vmatpush1.msra.mxu0 %v771
        %1160 = vmatprep.subr.mxu0 %v780
        %1161 = vmatpush1.msra.mxu0 %v779
        %1162 = vmatprep.subr.mxu0 0.0
        %1163 = vmatpush1.msra.mxu0 0.0
        %1164 = vmatprep.subr.mxu0 0.0
        %1165 = vmatpush1.msra.mxu0 0.0
        %1166 = vmatprep.subr.mxu0 0.0
        %1167 = vmatpush1.msra.mxu0 0.0
        %1168 = vmatprep.subr.mxu0 0.0
        %1169 = vmatpush1.msra.mxu0 0.0
        %1170 = vmatprep.subr.mxu0 0.0
        %1171 = vmatpush1.msra.mxu0 0.0
        %1172 = vmatprep.subr.mxu0 0.0
        %1173 = vmatpush1.msra.mxu0 0.0
        %1174 = vmatprep.subr.mxu0 0.0
        %1175 = vmatpush1.msra.mxu0 0.0
        %1176 = vmatprep.subr.mxu0 0.0
        %1177 = vmatpush1.msra.mxu0 0.0
        %1178 = vmatprep.subr.mxu0 0.0
        %1179 = vmatpush1.msra.mxu0 0.0
        %1180 = vmatprep.subr.mxu0 0.0
        %1181 = vmatpush1.msra.mxu0 0.0
        %1182 = vmatprep.subr.mxu0 0.0
        %1183 = vmatpush1.msra.mxu0 0.0
        %1184 = vmatprep.subr.mxu0 0.0
        %1185 = vmatpush1.msra.mxu0 0.0
        %1186 = vmatprep.subr.mxu0 0.0
        %1187 = vmatpush1.msra.mxu0 0.0
        %1188 = vmatprep.subr.mxu0 0.0
        %1189 = vmatpush1.msra.mxu0 0.0
        %1190 = vmatprep.subr.mxu0 0.0
        %1191 = vmatpush1.msra.mxu0 0.0
        %1192 = vmatprep.subr.mxu0 0.0
        %1193 = vmatpush1.msra.mxu0 0.0
        %1194 = vmatprep.subr.mxu0 0.0
        %1195 = vmatpush1.msra.mxu0 0.0
        %1196 = vmatprep.subr.mxu0 0.0
        %1197 = vmatpush1.msra.mxu0 0.0
        %1198 = vmatprep.subr.mxu0 0.0
        %1199 = vmatpush1.msra.mxu0 0.0
        %1200 = vmatprep.subr.mxu0 0.0
        %1201 = vmatpush1.msra.mxu0 0.0
        %1202 = vmatprep.subr.mxu0 0.0
        %1203 = vmatpush1.msra.mxu0 0.0
        %1204 = vmatprep.subr.mxu0 0.0
        %1205 = vmatpush1.msra.mxu0 0.0
        %1206 = vmatprep.subr.mxu0 0.0
        %1207 = vmatpush1.msra.mxu0 0.0
        %1208 = vmatprep.subr.mxu0 0.0
        %1209 = vmatpush1.msra.mxu0 0.0
        %1210 = vmatprep.subr.mxu0 0.0
        %1211 = vmatpush1.msra.mxu0 0.0
        %1212 = vmatprep.subr.mxu0 0.0
        %1213 = vmatpush1.msra.mxu0 0.0
        %1214 = vmatprep.subr.mxu0 0.0
        %1215 = vmatpush1.msra.mxu0 0.0
        %1216 = vmatprep.subr.mxu0 0.0
        %1217 = vmatpush1.msra.mxu0 0.0
        %1218 = vmatprep.mubr.f32.mxu0 0.0
        %1219 = vmatmul.mubr.f32.gmra.mrb[0].mxu0 %v785
        %v1220 = vpop.f32.mrb[0].mxu0
        %v1221 = vadd.f32 0.0, %v1220
        %v1222 = vpop.f32.mrb[0].mxu0
        %v1223 = vadd.f32 0.0, %v1222
        %1224 = vmatprep.mubr.f32.mxu0 0.0
        %1225 = vmatmul.mubr.f32.gmra.mrb[0].mxu0 %v788
        %v1226 = vpop.f32.mrb[0].mxu0
        %v1227 = vadd.f32 0.0, %v1226
        %v1228 = vpop.f32.mrb[0].mxu0
        %v1229 = vadd.f32 0.0, %v1228
        %1230 = vmatprep.mubr.f32.mxu0 0.0
        %1231 = vmatmul.mubr.f32.gmra.mrb[0].mxu0 %v791
        %v1232 = vpop.f32.mrb[0].mxu0
        %v1233 = vadd.f32 0.0, %v1232
        %v1234 = vpop.f32.mrb[0].mxu0
        %v1235 = vadd.f32 0.0, %v1234
        %1236 = vmatprep.mubr.f32.mxu0 0.0
        %1237 = vmatmul.mubr.f32.gmra.mrb[0].mxu0 %v794
        %v1238 = vpop.f32.mrb[0].mxu0
        %v1239 = vadd.f32 0.0, %v1238
        %v1240 = vpop.f32.mrb[0].mxu0
        %v1241 = vadd.f32 0.0, %v1240
        %1242 = vmatprep.mubr.f32.mxu0 0.0
        %1243 = vmatmul.mubr.f32.gmra.mrb[0].mxu0 %v797
        %v1244 = vpop.f32.mrb[0].mxu0
        %v1245 = vadd.f32 0.0, %v1244
        %v1246 = vpop.f32.mrb[0].mxu0
        %v1247 = vadd.f32 0.0, %v1246
        %1248 = vmatprep.mubr.f32.mxu0 0.0
        %1249 = vmatmul.mubr.f32.gmra.mrb[0].mxu0 %v800
        %v1250 = vpop.f32.mrb[0].mxu0
        %v1251 = vadd.f32 0.0, %v1250
        %v1252 = vpop.f32.mrb[0].mxu0
        %v1253 = vadd.f32 0.0, %v1252
        %1254 = vmatprep.mubr.f32.mxu0 0.0
        %1255 = vmatmul.mubr.f32.gmra.mrb[0].mxu0 %v803
        %v1256 = vpop.f32.mrb[0].mxu0
        %v1257 = vadd.f32 0.0, %v1256
        %v1258 = vpop.f32.mrb[0].mxu0
        %v1259 = vadd.f32 0.0, %v1258
        %1260 = vmatprep.mubr.f32.mxu0 0.0
        %1261 = vmatmul.mubr.f32.gmra.mrb[0].mxu0 %v806
        %v1262 = vpop.f32.mrb[0].mxu0
        %v1263 = vadd.f32 0.0, %v1262
        %v1264 = vpop.f32.mrb[0].mxu0
        %v1265 = vadd.f32 0.0, %v1264
        %1266 = vmatprep.mubr.f32.mxu0 0.0
        %1267 = vmatmul.mubr.f32.gmra.mrb[0].mxu0 %v809
        %v1268 = vpop.f32.mrb[0].mxu0
        %v1269 = vadd.f32 0.0, %v1268
        %v1270 = vpop.f32.mrb[0].mxu0
        %v1271 = vadd.f32 0.0, %v1270
        %1272 = vmatprep.mubr.f32.mxu0 0.0
        %1273 = vmatmul.mubr.f32.gmra.mrb[0].mxu0 %v812
        %v1274 = vpop.f32.mrb[0].mxu0
        %v1275 = vadd.f32 0.0, %v1274
        %v1276 = vpop.f32.mrb[0].mxu0
        %v1277 = vadd.f32 0.0, %v1276
        %1278 = vmatprep.mubr.f32.mxu0 0.0
        %1279 = vmatmul.mubr.f32.gmra.mrb[0].mxu0 %v815
        %v1280 = vpop.f32.mrb[0].mxu0
        %v1281 = vadd.f32 0.0, %v1280
        %v1282 = vpop.f32.mrb[0].mxu0
        %v1283 = vadd.f32 0.0, %v1282
        %1284 = vmatprep.mubr.f32.mxu0 0.0
        %1285 = vmatmul.mubr.f32.gmra.mrb[0].mxu0 %v818
        %v1286 = vpop.f32.mrb[0].mxu0
        %v1287 = vadd.f32 0.0, %v1286
        %v1288 = vpop.f32.mrb[0].mxu0
        %v1289 = vadd.f32 0.0, %v1288
        %1290 = vmatprep.mubr.f32.mxu0 0.0
        %1291 = vmatmul.mubr.f32.gmra.mrb[0].mxu0 %v821
        %v1292 = vpop.f32.mrb[0].mxu0
        %v1293 = vadd.f32 0.0, %v1292
        %v1294 = vpop.f32.mrb[0].mxu0
        %v1295 = vadd.f32 0.0, %v1294
        %1296 = vmatprep.mubr.f32.mxu0 0.0
        %1297 = vmatmul.mubr.f32.gmra.mrb[0].mxu0 %v824
        %v1298 = vpop.f32.mrb[0].mxu0
        %v1299 = vadd.f32 0.0, %v1298
        %v1300 = vpop.f32.mrb[0].mxu0
        %v1301 = vadd.f32 0.0, %v1300
        %1302 = vmatprep.mubr.f32.mxu0 0.0
        %1303 = vmatmul.mubr.f32.gmra.mrb[0].mxu0 %v827
        %v1304 = vpop.f32.mrb[0].mxu0
        %v1305 = vadd.f32 0.0, %v1304
        %v1306 = vpop.f32.mrb[0].mxu0
        %v1307 = vadd.f32 0.0, %v1306
        %1308 = vmatprep.mubr.f32.mxu0 0.0
        %1309 = vmatmul.mubr.f32.gmra.mrb[0].mxu0 %v830
        %v1310 = vpop.f32.mrb[0].mxu0
        %v1311 = vadd.f32 0.0, %v1310
        %v1312 = vpop.f32.mrb[0].mxu0
        %v1313 = vadd.f32 0.0, %v1312
        %1314 = vdwg.mxu0
        %1315 = vmatprep.subr.mxu0 %v758
        %1316 = vmatpush1.msra.mxu0 %v757
        %1317 = vmatprep.subr.mxu0 %v766
        %1318 = vmatpush1.msra.mxu0 %v765
        %1319 = vmatprep.subr.mxu0 %v774
        %1320 = vmatpush1.msra.mxu0 %v773
        %1321 = vmatprep.subr.mxu0 %v782
        %1322 = vmatpush1.msra.mxu0 %v781
        %1323 = vmatprep.subr.mxu0 0.0
        %1324 = vmatpush1.msra.mxu0 0.0
        %1325 = vmatprep.subr.mxu0 0.0
        %1326 = vmatpush1.msra.mxu0 0.0
        %1327 = vmatprep.subr.mxu0 0.0
        %1328 = vmatpush1.msra.mxu0 0.0
        %1329 = vmatprep.subr.mxu0 0.0
        %1330 = vmatpush1.msra.mxu0 0.0
        %1331 = vmatprep.subr.mxu0 0.0
        %1332 = vmatpush1.msra.mxu0 0.0
        %1333 = vmatprep.subr.mxu0 0.0
        %1334 = vmatpush1.msra.mxu0 0.0
        %1335 = vmatprep.subr.mxu0 0.0
        %1336 = vmatpush1.msra.mxu0 0.0
        %1337 = vmatprep.subr.mxu0 0.0
        %1338 = vmatpush1.msra.mxu0 0.0
        %1339 = vmatprep.subr.mxu0 0.0
        %1340 = vmatpush1.msra.mxu0 0.0
        %1341 = vmatprep.subr.mxu0 0.0
        %1342 = vmatpush1.msra.mxu0 0.0
        %1343 = vmatprep.subr.mxu0 0.0
        %1344 = vmatpush1.msra.mxu0 0.0
        %1345 = vmatprep.subr.mxu0 0.0
        %1346 = vmatpush1.msra.mxu0 0.0
        %1347 = vmatprep.subr.mxu0 0.0
        %1348 = vmatpush1.msra.mxu0 0.0
        %1349 = vmatprep.subr.mxu0 0.0
        %1350 = vmatpush1.msra.mxu0 0.0
        %1351 = vmatprep.subr.mxu0 0.0
        %1352 = vmatpush1.msra.mxu0 0.0
        %1353 = vmatprep.subr.mxu0 0.0
        %1354 = vmatpush1.msra.mxu0 0.0
        %1355 = vmatprep.subr.mxu0 0.0
        %1356 = vmatpush1.msra.mxu0 0.0
        %1357 = vmatprep.subr.mxu0 0.0
        %1358 = vmatpush1.msra.mxu0 0.0
        %1359 = vmatprep.subr.mxu0 0.0
        %1360 = vmatpush1.msra.mxu0 0.0
        %1361 = vmatprep.subr.mxu0 0.0
        %1362 = vmatpush1.msra.mxu0 0.0
        %1363 = vmatprep.subr.mxu0 0.0
        %1364 = vmatpush1.msra.mxu0 0.0
        %1365 = vmatprep.subr.mxu0 0.0
        %1366 = vmatpush1.msra.mxu0 0.0
        %1367 = vmatprep.subr.mxu0 0.0
        %1368 = vmatpush1.msra.mxu0 0.0
        %1369 = vmatprep.subr.mxu0 0.0
        %1370 = vmatpush1.msra.mxu0 0.0
        %1371 = vmatprep.subr.mxu0 0.0
        %1372 = vmatpush1.msra.mxu0 0.0
        %1373 = vmatprep.subr.mxu0 0.0
        %1374 = vmatpush1.msra.mxu0 0.0
        %1375 = vmatprep.subr.mxu0 0.0
        %1376 = vmatpush1.msra.mxu0 0.0
        %1377 = vmatprep.subr.mxu0 0.0
        %1378 = vmatpush1.msra.mxu0 0.0
        %1379 = vmatprep.mubr.f32.mxu0 0.0
        %1380 = vmatmul.mubr.f32.gmra.mrb[0].mxu0 %v785
        %v1381 = vpop.f32.mrb[0].mxu0
        %v1382 = vadd.f32 0.0, %v1381
        %v1383 = vpop.f32.mrb[0].mxu0
        %v1384 = vadd.f32 0.0, %v1383
        %1385 = vmatprep.mubr.f32.mxu0 0.0
        %1386 = vmatmul.mubr.f32.gmra.mrb[0].mxu0 %v788
        %v1387 = vpop.f32.mrb[0].mxu0
        %v1388 = vadd.f32 0.0, %v1387
        %v1389 = vpop.f32.mrb[0].mxu0
        %v1390 = vadd.f32 0.0, %v1389
        %1391 = vmatprep.mubr.f32.mxu0 0.0
        %1392 = vmatmul.mubr.f32.gmra.mrb[0].mxu0 %v791
        %v1393 = vpop.f32.mrb[0].mxu0
        %v1394 = vadd.f32 0.0, %v1393
        %v1395 = vpop.f32.mrb[0].mxu0
        %v1396 = vadd.f32 0.0, %v1395
        %1397 = vmatprep.mubr.f32.mxu0 0.0
        %1398 = vmatmul.mubr.f32.gmra.mrb[0].mxu0 %v794
        %v1399 = vpop.f32.mrb[0].mxu0
        %v1400 = vadd.f32 0.0, %v1399
        %v1401 = vpop.f32.mrb[0].mxu0
        %v1402 = vadd.f32 0.0, %v1401
        %1403 = vmatprep.mubr.f32.mxu0 0.0
        %1404 = vmatmul.mubr.f32.gmra.mrb[0].mxu0 %v797
        %v1405 = vpop.f32.mrb[0].mxu0
        %v1406 = vadd.f32 0.0, %v1405
        %v1407 = vpop.f32.mrb[0].mxu0
        %v1408 = vadd.f32 0.0, %v1407
        %1409 = vmatprep.mubr.f32.mxu0 0.0
        %1410 = vmatmul.mubr.f32.gmra.mrb[0].mxu0 %v800
        %v1411 = vpop.f32.mrb[0].mxu0
        %v1412 = vadd.f32 0.0, %v1411
        %v1413 = vpop.f32.mrb[0].mxu0
        %v1414 = vadd.f32 0.0, %v1413
        %1415 = vmatprep.mubr.f32.mxu0 0.0
        %1416 = vmatmul.mubr.f32.gmra.mrb[0].mxu0 %v803
        %v1417 = vpop.f32.mrb[0].mxu0
        %v1418 = vadd.f32 0.0, %v1417
        %v1419 = vpop.f32.mrb[0].mxu0
        %v1420 = vadd.f32 0.0, %v1419
        %1421 = vmatprep.mubr.f32.mxu0 0.0
        %1422 = vmatmul.mubr.f32.gmra.mrb[0].mxu0 %v806
        %v1423 = vpop.f32.mrb[0].mxu0
        %v1424 = vadd.f32 0.0, %v1423
        %v1425 = vpop.f32.mrb[0].mxu0
        %v1426 = vadd.f32 0.0, %v1425
        %1427 = vmatprep.mubr.f32.mxu0 0.0
        %1428 = vmatmul.mubr.f32.gmra.mrb[0].mxu0 %v809
        %v1429 = vpop.f32.mrb[0].mxu0
        %v1430 = vadd.f32 0.0, %v1429
        %v1431 = vpop.f32.mrb[0].mxu0
        %v1432 = vadd.f32 0.0, %v1431
        %1433 = vmatprep.mubr.f32.mxu0 0.0
        %1434 = vmatmul.mubr.f32.gmra.mrb[0].mxu0 %v812
        %v1435 = vpop.f32.mrb[0].mxu0
        %v1436 = vadd.f32 0.0, %v1435
        %v1437 = vpop.f32.mrb[0].mxu0
        %v1438 = vadd.f32 0.0, %v1437
        %1439 = vmatprep.mubr.f32.mxu0 0.0
        %1440 = vmatmul.mubr.f32.gmra.mrb[0].mxu0 %v815
        %v1441 = vpop.f32.mrb[0].mxu0
        %v1442 = vadd.f32 0.0, %v1441
        %v1443 = vpop.f32.mrb[0].mxu0
        %v1444 = vadd.f32 0.0, %v1443
        %1445 = vmatprep.mubr.f32.mxu0 0.0
        %1446 = vmatmul.mubr.f32.gmra.mrb[0].mxu0 %v818
        %v1447 = vpop.f32.mrb[0].mxu0
        %v1448 = vadd.f32 0.0, %v1447
        %v1449 = vpop.f32.mrb[0].mxu0
        %v1450 = vadd.f32 0.0, %v1449
        %1451 = vmatprep.mubr.f32.mxu0 0.0
        %1452 = vmatmul.mubr.f32.gmra.mrb[0].mxu0 %v821
        %v1453 = vpop.f32.mrb[0].mxu0
        %v1454 = vadd.f32 0.0, %v1453
        %v1455 = vpop.f32.mrb[0].mxu0
        %v1456 = vadd.f32 0.0, %v1455
        %1457 = vmatprep.mubr.f32.mxu0 0.0
        %1458 = vmatmul.mubr.f32.gmra.mrb[0].mxu0 %v824
        %v1459 = vpop.f32.mrb[0].mxu0
        %v1460 = vadd.f32 0.0, %v1459
        %v1461 = vpop.f32.mrb[0].mxu0
        %v1462 = vadd.f32 0.0, %v1461
        %1463 = vmatprep.mubr.f32.mxu0 0.0
        %1464 = vmatmul.mubr.f32.gmra.mrb[0].mxu0 %v827
        %v1465 = vpop.f32.mrb[0].mxu0
        %v1466 = vadd.f32 0.0, %v1465
        %v1467 = vpop.f32.mrb[0].mxu0
        %v1468 = vadd.f32 0.0, %v1467
        %1469 = vmatprep.mubr.f32.mxu0 0.0
        %1470 = vmatmul.mubr.f32.gmra.mrb[0].mxu0 %v830
        %v1471 = vpop.f32.mrb[0].mxu0
        %v1472 = vadd.f32 0.0, %v1471
        %v1473 = vpop.f32.mrb[0].mxu0
        %v1474 = vadd.f32 0.0, %v1473
        %1475 = vdwg.mxu0
        %v1476 = vld [vmem:[%s5] sm:$0xff]
        %v1477 = vld [vmem:[%s5 + $0x8] sm:$0xff]
        %v1478 = vld [vmem:[%s5 + $0x10] sm:$0xff]
        %v1479 = vld [vmem:[%s5 + $0x18] sm:$0xff]
        %v1480 = vld [vmem:[%s5 + $0x20] sm:$0xff]
        %v1481 = vld [vmem:[%s5 + $0x28] sm:$0xff]
        %v1482 = vld [vmem:[%s5 + $0x30] sm:$0xff]
        %v1483 = vld [vmem:[%s5 + $0x38] sm:$0xff]
        %v1484 = vld [vmem:[%s5 + $0x40] sm:$0xff]
        %v1485 = vld [vmem:[%s5 + $0x48] sm:$0xff]
        %v1486 = vld [vmem:[%s5 + $0x50] sm:$0xff]
        %v1487 = vld [vmem:[%s5 + $0x58] sm:$0xff]
        %v1488 = vld [vmem:[%s5 + $0x60] sm:$0xff]
        %v1489 = vld [vmem:[%s5 + $0x68] sm:$0xff]
        %v1490 = vld [vmem:[%s5 + $0x70] sm:$0xff]
        %v1491 = vld [vmem:[%s5 + $0x78] sm:$0xff]
        %v1492 = vld [vmem:[%s5 + $0x80] sm:$0xff]
        %v1493 = vld [vmem:[%s5 + $0x88] sm:$0xff]
        %v1494 = vld [vmem:[%s5 + $0x90] sm:$0xff]
        %v1495 = vld [vmem:[%s5 + $0x98] sm:$0xff]
        %v1496 = vld [vmem:[%s5 + $0xa0] sm:$0xff]
        %v1497 = vld [vmem:[%s5 + $0xa8] sm:$0xff]
        %v1498 = vld [vmem:[%s5 + $0xb0] sm:$0xff]
        %v1499 = vld [vmem:[%s5 + $0xb8] sm:$0xff]
        %v1500 = vld [vmem:[%s5 + $0xc0] sm:$0xff]
        %v1501 = vld [vmem:[%s5 + $0xc8] sm:$0xff]
        %v1502 = vld [vmem:[%s5 + $0xd0] sm:$0xff]
        %v1503 = vld [vmem:[%s5 + $0xd8] sm:$0xff]
        %v1504 = vld [vmem:[%s5 + $0xe0] sm:$0xff]
        %v1505 = vld [vmem:[%s5 + $0xe8] sm:$0xff]
        %v1506 = vld [vmem:[%s5 + $0xf0] sm:$0xff]
        %v1507 = vld [vmem:[%s5 + $0xf8] sm:$0xff]
        %v1509 = vsel %vm783, %v673, 0
        %v1512 = vsel %vm783, %v678, 0
        %v1515 = vsel %vm783, %v683, 0
        %v1518 = vsel %vm783, %v688, 0
        %v1521 = vsel %vm783, %v693, 0
        %v1524 = vsel %vm783, %v698, 0
        %v1527 = vsel %vm783, %v703, 0
        %v1530 = vsel %vm783, %v708, 0
        %v1533 = vsel %vm783, %v713, 0
        %v1536 = vsel %vm783, %v718, 0
        %v1539 = vsel %vm783, %v723, 0
        %v1542 = vsel %vm783, %v728, 0
        %v1545 = vsel %vm783, %v733, 0
        %v1548 = vsel %vm783, %v738, 0
        %v1551 = vsel %vm783, %v743, 0
        %v1554 = vsel %vm783, %v748, 0
        %1556 = vmatprep.subr.mxu0 %v1477
        %1557 = vmatpush1.msra.mxu0 %v1476
        %1558 = vmatprep.subr.mxu0 %v1485
        %1559 = vmatpush1.msra.mxu0 %v1484
        %1560 = vmatprep.subr.mxu0 %v1493
        %1561 = vmatpush1.msra.mxu0 %v1492
        %1562 = vmatprep.subr.mxu0 %v1501
        %1563 = vmatpush1.msra.mxu0 %v1500
        %1564 = vmatprep.subr.mxu0 0.0
        %1565 = vmatpush1.msra.mxu0 0.0
        %1566 = vmatprep.subr.mxu0 0.0
        %1567 = vmatpush1.msra.mxu0 0.0
        %1568 = vmatprep.subr.mxu0 0.0
        %1569 = vmatpush1.msra.mxu0 0.0
        %1570 = vmatprep.subr.mxu0 0.0
        %1571 = vmatpush1.msra.mxu0 0.0
        %1572 = vmatprep.subr.mxu0 0.0
        %1573 = vmatpush1.msra.mxu0 0.0
        %1574 = vmatprep.subr.mxu0 0.0
        %1575 = vmatpush1.msra.mxu0 0.0
        %1576 = vmatprep.subr.mxu0 0.0
        %1577 = vmatpush1.msra.mxu0 0.0
        %1578 = vmatprep.subr.mxu0 0.0
        %1579 = vmatpush1.msra.mxu0 0.0
        %1580 = vmatprep.subr.mxu0 0.0
        %1581 = vmatpush1.msra.mxu0 0.0
        %1582 = vmatprep.subr.mxu0 0.0
        %1583 = vmatpush1.msra.mxu0 0.0
        %1584 = vmatprep.subr.mxu0 0.0
        %1585 = vmatpush1.msra.mxu0 0.0
        %1586 = vmatprep.subr.mxu0 0.0
        %1587 = vmatpush1.msra.mxu0 0.0
        %1588 = vmatprep.subr.mxu0 0.0
        %1589 = vmatpush1.msra.mxu0 0.0
        %1590 = vmatprep.subr.mxu0 0.0
        %1591 = vmatpush1.msra.mxu0 0.0
        %1592 = vmatprep.subr.mxu0 0.0
        %1593 = vmatpush1.msra.mxu0 0.0
        %1594 = vmatprep.subr.mxu0 0.0
        %1595 = vmatpush1.msra.mxu0 0.0
        %1596 = vmatprep.subr.mxu0 0.0
        %1597 = vmatpush1.msra.mxu0 0.0
        %1598 = vmatprep.subr.mxu0 0.0
        %1599 = vmatpush1.msra.mxu0 0.0
        %1600 = vmatprep.subr.mxu0 0.0
        %1601 = vmatpush1.msra.mxu0 0.0
        %1602 = vmatprep.subr.mxu0 0.0
        %1603 = vmatpush1.msra.mxu0 0.0
        %1604 = vmatprep.subr.mxu0 0.0
        %1605 = vmatpush1.msra.mxu0 0.0
        %1606 = vmatprep.subr.mxu0 0.0
        %1607 = vmatpush1.msra.mxu0 0.0
        %1608 = vmatprep.subr.mxu0 0.0
        %1609 = vmatpush1.msra.mxu0 0.0
        %1610 = vmatprep.subr.mxu0 0.0
        %1611 = vmatpush1.msra.mxu0 0.0
        %1612 = vmatprep.subr.mxu0 0.0
        %1613 = vmatpush1.msra.mxu0 0.0
        %1614 = vmatprep.subr.mxu0 0.0
        %1615 = vmatpush1.msra.mxu0 0.0
        %1616 = vmatprep.subr.mxu0 0.0
        %1617 = vmatpush1.msra.mxu0 0.0
        %1618 = vmatprep.subr.mxu0 0.0
        %1619 = vmatpush1.msra.mxu0 0.0
        %1620 = vmatprep.mubr.f32.mxu0 0.0
        %1621 = vmatmul.mubr.f32.gmra.mrb[0].mxu0 %v1509
        %v1622 = vpop.f32.mrb[0].mxu0
        %v1623 = vadd.f32 0.0, %v1622
        %v1624 = vpop.f32.mrb[0].mxu0
        %v1625 = vadd.f32 0.0, %v1624
        %1626 = vmatprep.mubr.f32.mxu0 0.0
        %1627 = vmatmul.mubr.f32.gmra.mrb[0].mxu0 %v1512
        %v1628 = vpop.f32.mrb[0].mxu0
        %v1629 = vadd.f32 0.0, %v1628
        %v1630 = vpop.f32.mrb[0].mxu0
        %v1631 = vadd.f32 0.0, %v1630
        %1632 = vmatprep.mubr.f32.mxu0 0.0
        %1633 = vmatmul.mubr.f32.gmra.mrb[0].mxu0 %v1515
        %v1634 = vpop.f32.mrb[0].mxu0
        %v1635 = vadd.f32 0.0, %v1634
        %v1636 = vpop.f32.mrb[0].mxu0
        %v1637 = vadd.f32 0.0, %v1636
        %1638 = vmatprep.mubr.f32.mxu0 0.0
        %1639 = vmatmul.mubr.f32.gmra.mrb[0].mxu0 %v1518
        %v1640 = vpop.f32.mrb[0].mxu0
        %v1641 = vadd.f32 0.0, %v1640
        %v1642 = vpop.f32.mrb[0].mxu0
        %v1643 = vadd.f32 0.0, %v1642
        %1644 = vmatprep.mubr.f32.mxu0 0.0
        %1645 = vmatmul.mubr.f32.gmra.mrb[0].mxu0 %v1521
        %v1646 = vpop.f32.mrb[0].mxu0
        %v1647 = vadd.f32 0.0, %v1646
        %v1648 = vpop.f32.mrb[0].mxu0
        %v1649 = vadd.f32 0.0, %v1648
        %1650 = vmatprep.mubr.f32.mxu0 0.0
        %1651 = vmatmul.mubr.f32.gmra.mrb[0].mxu0 %v1524
        %v1652 = vpop.f32.mrb[0].mxu0
        %v1653 = vadd.f32 0.0, %v1652
        %v1654 = vpop.f32.mrb[0].mxu0
        %v1655 = vadd.f32 0.0, %v1654
        %1656 = vmatprep.mubr.f32.mxu0 0.0
        %1657 = vmatmul.mubr.f32.gmra.mrb[0].mxu0 %v1527
        %v1658 = vpop.f32.mrb[0].mxu0
        %v1659 = vadd.f32 0.0, %v1658
        %v1660 = vpop.f32.mrb[0].mxu0
        %v1661 = vadd.f32 0.0, %v1660
        %1662 = vmatprep.mubr.f32.mxu0 0.0
        %1663 = vmatmul.mubr.f32.gmra.mrb[0].mxu0 %v1530
        %v1664 = vpop.f32.mrb[0].mxu0
        %v1665 = vadd.f32 0.0, %v1664
        %v1666 = vpop.f32.mrb[0].mxu0
        %v1667 = vadd.f32 0.0, %v1666
        %1668 = vmatprep.mubr.f32.mxu0 0.0
        %1669 = vmatmul.mubr.f32.gmra.mrb[0].mxu0 %v1533
        %v1670 = vpop.f32.mrb[0].mxu0
        %v1671 = vadd.f32 0.0, %v1670
        %v1672 = vpop.f32.mrb[0].mxu0
        %v1673 = vadd.f32 0.0, %v1672
        %1674 = vmatprep.mubr.f32.mxu0 0.0
        %1675 = vmatmul.mubr.f32.gmra.mrb[0].mxu0 %v1536
        %v1676 = vpop.f32.mrb[0].mxu0
        %v1677 = vadd.f32 0.0, %v1676
        %v1678 = vpop.f32.mrb[0].mxu0
        %v1679 = vadd.f32 0.0, %v1678
        %1680 = vmatprep.mubr.f32.mxu0 0.0
        %1681 = vmatmul.mubr.f32.gmra.mrb[0].mxu0 %v1539
        %v1682 = vpop.f32.mrb[0].mxu0
        %v1683 = vadd.f32 0.0, %v1682
        %v1684 = vpop.f32.mrb[0].mxu0
        %v1685 = vadd.f32 0.0, %v1684
        %1686 = vmatprep.mubr.f32.mxu0 0.0
        %1687 = vmatmul.mubr.f32.gmra.mrb[0].mxu0 %v1542
        %v1688 = vpop.f32.mrb[0].mxu0
        %v1689 = vadd.f32 0.0, %v1688
        %v1690 = vpop.f32.mrb[0].mxu0
        %v1691 = vadd.f32 0.0, %v1690
        %1692 = vmatprep.mubr.f32.mxu0 0.0
        %1693 = vmatmul.mubr.f32.gmra.mrb[0].mxu0 %v1545
        %v1694 = vpop.f32.mrb[0].mxu0
        %v1695 = vadd.f32 0.0, %v1694
        %v1696 = vpop.f32.mrb[0].mxu0
        %v1697 = vadd.f32 0.0, %v1696
        %1698 = vmatprep.mubr.f32.mxu0 0.0
        %1699 = vmatmul.mubr.f32.gmra.mrb[0].mxu0 %v1548
        %v1700 = vpop.f32.mrb[0].mxu0
        %v1701 = vadd.f32 0.0, %v1700
        %v1702 = vpop.f32.mrb[0].mxu0
        %v1703 = vadd.f32 0.0, %v1702
        %1704 = vmatprep.mubr.f32.mxu0 0.0
        %1705 = vmatmul.mubr.f32.gmra.mrb[0].mxu0 %v1551
        %v1706 = vpop.f32.mrb[0].mxu0
        %v1707 = vadd.f32 0.0, %v1706
        %v1708 = vpop.f32.mrb[0].mxu0
        %v1709 = vadd.f32 0.0, %v1708
        %1710 = vmatprep.mubr.f32.mxu0 0.0
        %1711 = vmatmul.mubr.f32.gmra.mrb[0].mxu0 %v1554
        %v1712 = vpop.f32.mrb[0].mxu0
        %v1713 = vadd.f32 0.0, %v1712
        %v1714 = vpop.f32.mrb[0].mxu0
        %v1715 = vadd.f32 0.0, %v1714
        %1716 = vdwg.mxu0
        %1717 = vmatprep.subr.mxu0 %v1479
        %1718 = vmatpush1.msra.mxu0 %v1478
        %1719 = vmatprep.subr.mxu0 %v1487
        %1720 = vmatpush1.msra.mxu0 %v1486
        %1721 = vmatprep.subr.mxu0 %v1495
        %1722 = vmatpush1.msra.mxu0 %v1494
        %1723 = vmatprep.subr.mxu0 %v1503
        %1724 = vmatpush1.msra.mxu0 %v1502
        %1725 = vmatprep.subr.mxu0 0.0
        %1726 = vmatpush1.msra.mxu0 0.0
        %1727 = vmatprep.subr.mxu0 0.0
        %1728 = vmatpush1.msra.mxu0 0.0
        %1729 = vmatprep.subr.mxu0 0.0
        %1730 = vmatpush1.msra.mxu0 0.0
        %1731 = vmatprep.subr.mxu0 0.0
        %1732 = vmatpush1.msra.mxu0 0.0
        %1733 = vmatprep.subr.mxu0 0.0
        %1734 = vmatpush1.msra.mxu0 0.0
        %1735 = vmatprep.subr.mxu0 0.0
        %1736 = vmatpush1.msra.mxu0 0.0
        %1737 = vmatprep.subr.mxu0 0.0
        %1738 = vmatpush1.msra.mxu0 0.0
        %1739 = vmatprep.subr.mxu0 0.0
        %1740 = vmatpush1.msra.mxu0 0.0
        %1741 = vmatprep.subr.mxu0 0.0
        %1742 = vmatpush1.msra.mxu0 0.0
        %1743 = vmatprep.subr.mxu0 0.0
        %1744 = vmatpush1.msra.mxu0 0.0
        %1745 = vmatprep.subr.mxu0 0.0
        %1746 = vmatpush1.msra.mxu0 0.0
        %1747 = vmatprep.subr.mxu0 0.0
        %1748 = vmatpush1.msra.mxu0 0.0
        %1749 = vmatprep.subr.mxu0 0.0
        %1750 = vmatpush1.msra.mxu0 0.0
        %1751 = vmatprep.subr.mxu0 0.0
        %1752 = vmatpush1.msra.mxu0 0.0
        %1753 = vmatprep.subr.mxu0 0.0
        %1754 = vmatpush1.msra.mxu0 0.0
        %1755 = vmatprep.subr.mxu0 0.0
        %1756 = vmatpush1.msra.mxu0 0.0
        %1757 = vmatprep.subr.mxu0 0.0
        %1758 = vmatpush1.msra.mxu0 0.0
        %1759 = vmatprep.subr.mxu0 0.0
        %1760 = vmatpush1.msra.mxu0 0.0
        %1761 = vmatprep.subr.mxu0 0.0
        %1762 = vmatpush1.msra.mxu0 0.0
        %1763 = vmatprep.subr.mxu0 0.0
        %1764 = vmatpush1.msra.mxu0 0.0
        %1765 = vmatprep.subr.mxu0 0.0
        %1766 = vmatpush1.msra.mxu0 0.0
        %1767 = vmatprep.subr.mxu0 0.0
        %1768 = vmatpush1.msra.mxu0 0.0
        %1769 = vmatprep.subr.mxu0 0.0
        %1770 = vmatpush1.msra.mxu0 0.0
        %1771 = vmatprep.subr.mxu0 0.0
        %1772 = vmatpush1.msra.mxu0 0.0
        %1773 = vmatprep.subr.mxu0 0.0
        %1774 = vmatpush1.msra.mxu0 0.0
        %1775 = vmatprep.subr.mxu0 0.0
        %1776 = vmatpush1.msra.mxu0 0.0
        %1777 = vmatprep.subr.mxu0 0.0
        %1778 = vmatpush1.msra.mxu0 0.0
        %1779 = vmatprep.subr.mxu0 0.0
        %1780 = vmatpush1.msra.mxu0 0.0
        %1781 = vmatprep.mubr.f32.mxu0 0.0
        %1782 = vmatmul.mubr.f32.gmra.mrb[0].mxu0 %v1509
        %v1783 = vpop.f32.mrb[0].mxu0
        %v1784 = vadd.f32 0.0, %v1783
        %v1785 = vpop.f32.mrb[0].mxu0
        %v1786 = vadd.f32 0.0, %v1785
        %1787 = vmatprep.mubr.f32.mxu0 0.0
        %1788 = vmatmul.mubr.f32.gmra.mrb[0].mxu0 %v1512
        %v1789 = vpop.f32.mrb[0].mxu0
        %v1790 = vadd.f32 0.0, %v1789
        %v1791 = vpop.f32.mrb[0].mxu0
        %v1792 = vadd.f32 0.0, %v1791
        %1793 = vmatprep.mubr.f32.mxu0 0.0
        %1794 = vmatmul.mubr.f32.gmra.mrb[0].mxu0 %v1515
        %v1795 = vpop.f32.mrb[0].mxu0
        %v1796 = vadd.f32 0.0, %v1795
        %v1797 = vpop.f32.mrb[0].mxu0
        %v1798 = vadd.f32 0.0, %v1797
        %1799 = vmatprep.mubr.f32.mxu0 0.0
        %1800 = vmatmul.mubr.f32.gmra.mrb[0].mxu0 %v1518
        %v1801 = vpop.f32.mrb[0].mxu0
        %v1802 = vadd.f32 0.0, %v1801
        %v1803 = vpop.f32.mrb[0].mxu0
        %v1804 = vadd.f32 0.0, %v1803
        %1805 = vmatprep.mubr.f32.mxu0 0.0
        %1806 = vmatmul.mubr.f32.gmra.mrb[0].mxu0 %v1521
        %v1807 = vpop.f32.mrb[0].mxu0
        %v1808 = vadd.f32 0.0, %v1807
        %v1809 = vpop.f32.mrb[0].mxu0
        %v1810 = vadd.f32 0.0, %v1809
        %1811 = vmatprep.mubr.f32.mxu0 0.0
        %1812 = vmatmul.mubr.f32.gmra.mrb[0].mxu0 %v1524
        %v1813 = vpop.f32.mrb[0].mxu0
        %v1814 = vadd.f32 0.0, %v1813
        %v1815 = vpop.f32.mrb[0].mxu0
        %v1816 = vadd.f32 0.0, %v1815
        %1817 = vmatprep.mubr.f32.mxu0 0.0
        %1818 = vmatmul.mubr.f32.gmra.mrb[0].mxu0 %v1527
        %v1819 = vpop.f32.mrb[0].mxu0
        %v1820 = vadd.f32 0.0, %v1819
        %v1821 = vpop.f32.mrb[0].mxu0
        %v1822 = vadd.f32 0.0, %v1821
        %1823 = vmatprep.mubr.f32.mxu0 0.0
        %1824 = vmatmul.mubr.f32.gmra.mrb[0].mxu0 %v1530
        %v1825 = vpop.f32.mrb[0].mxu0
        %v1826 = vadd.f32 0.0, %v1825
        %v1827 = vpop.f32.mrb[0].mxu0
        %v1828 = vadd.f32 0.0, %v1827
        %1829 = vmatprep.mubr.f32.mxu0 0.0
        %1830 = vmatmul.mubr.f32.gmra.mrb[0].mxu0 %v1533
        %v1831 = vpop.f32.mrb[0].mxu0
        %v1832 = vadd.f32 0.0, %v1831
        %v1833 = vpop.f32.mrb[0].mxu0
        %v1834 = vadd.f32 0.0, %v1833
        %1835 = vmatprep.mubr.f32.mxu0 0.0
        %1836 = vmatmul.mubr.f32.gmra.mrb[0].mxu0 %v1536
        %v1837 = vpop.f32.mrb[0].mxu0
        %v1838 = vadd.f32 0.0, %v1837
        %v1839 = vpop.f32.mrb[0].mxu0
        %v1840 = vadd.f32 0.0, %v1839
        %1841 = vmatprep.mubr.f32.mxu0 0.0
        %1842 = vmatmul.mubr.f32.gmra.mrb[0].mxu0 %v1539
        %v1843 = vpop.f32.mrb[0].mxu0
        %v1844 = vadd.f32 0.0, %v1843
        %v1845 = vpop.f32.mrb[0].mxu0
        %v1846 = vadd.f32 0.0, %v1845
        %1847 = vmatprep.mubr.f32.mxu0 0.0
        %1848 = vmatmul.mubr.f32.gmra.mrb[0].mxu0 %v1542
        %v1849 = vpop.f32.mrb[0].mxu0
        %v1850 = vadd.f32 0.0, %v1849
        %v1851 = vpop.f32.mrb[0].mxu0
        %v1852 = vadd.f32 0.0, %v1851
        %1853 = vmatprep.mubr.f32.mxu0 0.0
        %1854 = vmatmul.mubr.f32.gmra.mrb[0].mxu0 %v1545
        %v1855 = vpop.f32.mrb[0].mxu0
        %v1856 = vadd.f32 0.0, %v1855
        %v1857 = vpop.f32.mrb[0].mxu0
        %v1858 = vadd.f32 0.0, %v1857
        %1859 = vmatprep.mubr.f32.mxu0 0.0
        %1860 = vmatmul.mubr.f32.gmra.mrb[0].mxu0 %v1548
        %v1861 = vpop.f32.mrb[0].mxu0
        %v1862 = vadd.f32 0.0, %v1861
        %v1863 = vpop.f32.mrb[0].mxu0
        %v1864 = vadd.f32 0.0, %v1863
        %1865 = vmatprep.mubr.f32.mxu0 0.0
        %1866 = vmatmul.mubr.f32.gmra.mrb[0].mxu0 %v1551
        %v1867 = vpop.f32.mrb[0].mxu0
        %v1868 = vadd.f32 0.0, %v1867
        %v1869 = vpop.f32.mrb[0].mxu0
        %v1870 = vadd.f32 0.0, %v1869
        %1871 = vmatprep.mubr.f32.mxu0 0.0
        %1872 = vmatmul.mubr.f32.gmra.mrb[0].mxu0 %v1554
        %v1873 = vpop.f32.mrb[0].mxu0
        %v1874 = vadd.f32 0.0, %v1873
        %v1875 = vpop.f32.mrb[0].mxu0
        %v1876 = vadd.f32 0.0, %v1875
        %1877 = vdwg.mxu0
        %1878 = vmatprep.subr.mxu0 %v1481
        %1879 = vmatpush1.msra.mxu0 %v1480
        %1880 = vmatprep.subr.mxu0 %v1489
        %1881 = vmatpush1.msra.mxu0 %v1488
        %1882 = vmatprep.subr.mxu0 %v1497
        %1883 = vmatpush1.msra.mxu0 %v1496
        %1884 = vmatprep.subr.mxu0 %v1505
        %1885 = vmatpush1.msra.mxu0 %v1504
        %1886 = vmatprep.subr.mxu0 0.0
        %1887 = vmatpush1.msra.mxu0 0.0
        %1888 = vmatprep.subr.mxu0 0.0
        %1889 = vmatpush1.msra.mxu0 0.0
        %1890 = vmatprep.subr.mxu0 0.0
        %1891 = vmatpush1.msra.mxu0 0.0
        %1892 = vmatprep.subr.mxu0 0.0
        %1893 = vmatpush1.msra.mxu0 0.0
        %1894 = vmatprep.subr.mxu0 0.0
        %1895 = vmatpush1.msra.mxu0 0.0
        %1896 = vmatprep.subr.mxu0 0.0
        %1897 = vmatpush1.msra.mxu0 0.0
        %1898 = vmatprep.subr.mxu0 0.0
        %1899 = vmatpush1.msra.mxu0 0.0
        %1900 = vmatprep.subr.mxu0 0.0
        %1901 = vmatpush1.msra.mxu0 0.0
        %1902 = vmatprep.subr.mxu0 0.0
        %1903 = vmatpush1.msra.mxu0 0.0
        %1904 = vmatprep.subr.mxu0 0.0
        %1905 = vmatpush1.msra.mxu0 0.0
        %1906 = vmatprep.subr.mxu0 0.0
        %1907 = vmatpush1.msra.mxu0 0.0
        %1908 = vmatprep.subr.mxu0 0.0
        %1909 = vmatpush1.msra.mxu0 0.0
        %1910 = vmatprep.subr.mxu0 0.0
        %1911 = vmatpush1.msra.mxu0 0.0
        %1912 = vmatprep.subr.mxu0 0.0
        %1913 = vmatpush1.msra.mxu0 0.0
        %1914 = vmatprep.subr.mxu0 0.0
        %1915 = vmatpush1.msra.mxu0 0.0
        %1916 = vmatprep.subr.mxu0 0.0
        %1917 = vmatpush1.msra.mxu0 0.0
        %1918 = vmatprep.subr.mxu0 0.0
        %1919 = vmatpush1.msra.mxu0 0.0
        %1920 = vmatprep.subr.mxu0 0.0
        %1921 = vmatpush1.msra.mxu0 0.0
        %1922 = vmatprep.subr.mxu0 0.0
        %1923 = vmatpush1.msra.mxu0 0.0
        %1924 = vmatprep.subr.mxu0 0.0
        %1925 = vmatpush1.msra.mxu0 0.0
        %1926 = vmatprep.subr.mxu0 0.0
        %1927 = vmatpush1.msra.mxu0 0.0
        %1928 = vmatprep.subr.mxu0 0.0
        %1929 = vmatpush1.msra.mxu0 0.0
        %1930 = vmatprep.subr.mxu0 0.0
        %1931 = vmatpush1.msra.mxu0 0.0
        %1932 = vmatprep.subr.mxu0 0.0
        %1933 = vmatpush1.msra.mxu0 0.0
        %1934 = vmatprep.subr.mxu0 0.0
        %1935 = vmatpush1.msra.mxu0 0.0
        %1936 = vmatprep.subr.mxu0 0.0
        %1937 = vmatpush1.msra.mxu0 0.0
        %1938 = vmatprep.subr.mxu0 0.0
        %1939 = vmatpush1.msra.mxu0 0.0
        %1940 = vmatprep.subr.mxu0 0.0
        %1941 = vmatpush1.msra.mxu0 0.0
        %1942 = vmatprep.mubr.f32.mxu0 0.0
        %1943 = vmatmul.mubr.f32.gmra.mrb[0].mxu0 %v1509
        %v1944 = vpop.f32.mrb[0].mxu0
        %v1945 = vadd.f32 0.0, %v1944
        %v1946 = vpop.f32.mrb[0].mxu0
        %v1947 = vadd.f32 0.0, %v1946
        %1948 = vmatprep.mubr.f32.mxu0 0.0
        %1949 = vmatmul.mubr.f32.gmra.mrb[0].mxu0 %v1512
        %v1950 = vpop.f32.mrb[0].mxu0
        %v1951 = vadd.f32 0.0, %v1950
        %v1952 = vpop.f32.mrb[0].mxu0
        %v1953 = vadd.f32 0.0, %v1952
        %1954 = vmatprep.mubr.f32.mxu0 0.0
        %1955 = vmatmul.mubr.f32.gmra.mrb[0].mxu0 %v1515
        %v1956 = vpop.f32.mrb[0].mxu0
        %v1957 = vadd.f32 0.0, %v1956
        %v1958 = vpop.f32.mrb[0].mxu0
        %v1959 = vadd.f32 0.0, %v1958
        %1960 = vmatprep.mubr.f32.mxu0 0.0
        %1961 = vmatmul.mubr.f32.gmra.mrb[0].mxu0 %v1518
        %v1962 = vpop.f32.mrb[0].mxu0
        %v1963 = vadd.f32 0.0, %v1962
        %v1964 = vpop.f32.mrb[0].mxu0
        %v1965 = vadd.f32 0.0, %v1964
        %1966 = vmatprep.mubr.f32.mxu0 0.0
        %1967 = vmatmul.mubr.f32.gmra.mrb[0].mxu0 %v1521
        %v1968 = vpop.f32.mrb[0].mxu0
        %v1969 = vadd.f32 0.0, %v1968
        %v1970 = vpop.f32.mrb[0].mxu0
        %v1971 = vadd.f32 0.0, %v1970
        %1972 = vmatprep.mubr.f32.mxu0 0.0
        %1973 = vmatmul.mubr.f32.gmra.mrb[0].mxu0 %v1524
        %v1974 = vpop.f32.mrb[0].mxu0
        %v1975 = vadd.f32 0.0, %v1974
        %v1976 = vpop.f32.mrb[0].mxu0
        %v1977 = vadd.f32 0.0, %v1976
        %1978 = vmatprep.mubr.f32.mxu0 0.0
        %1979 = vmatmul.mubr.f32.gmra.mrb[0].mxu0 %v1527
        %v1980 = vpop.f32.mrb[0].mxu0
        %v1981 = vadd.f32 0.0, %v1980
        %v1982 = vpop.f32.mrb[0].mxu0
        %v1983 = vadd.f32 0.0, %v1982
        %1984 = vmatprep.mubr.f32.mxu0 0.0
        %1985 = vmatmul.mubr.f32.gmra.mrb[0].mxu0 %v1530
        %v1986 = vpop.f32.mrb[0].mxu0
        %v1987 = vadd.f32 0.0, %v1986
        %v1988 = vpop.f32.mrb[0].mxu0
        %v1989 = vadd.f32 0.0, %v1988
        %1990 = vmatprep.mubr.f32.mxu0 0.0
        %1991 = vmatmul.mubr.f32.gmra.mrb[0].mxu0 %v1533
        %v1992 = vpop.f32.mrb[0].mxu0
        %v1993 = vadd.f32 0.0, %v1992
        %v1994 = vpop.f32.mrb[0].mxu0
        %v1995 = vadd.f32 0.0, %v1994
        %1996 = vmatprep.mubr.f32.mxu0 0.0
        %1997 = vmatmul.mubr.f32.gmra.mrb[0].mxu0 %v1536
        %v1998 = vpop.f32.mrb[0].mxu0
        %v1999 = vadd.f32 0.0, %v1998
        %v2000 = vpop.f32.mrb[0].mxu0
        %v2001 = vadd.f32 0.0, %v2000
        %2002 = vmatprep.mubr.f32.mxu0 0.0
        %2003 = vmatmul.mubr.f32.gmra.mrb[0].mxu0 %v1539
        %v2004 = vpop.f32.mrb[0].mxu0
        %v2005 = vadd.f32 0.0, %v2004
        %v2006 = vpop.f32.mrb[0].mxu0
        %v2007 = vadd.f32 0.0, %v2006
        %2008 = vmatprep.mubr.f32.mxu0 0.0
        %2009 = vmatmul.mubr.f32.gmra.mrb[0].mxu0 %v1542
        %v2010 = vpop.f32.mrb[0].mxu0
        %v2011 = vadd.f32 0.0, %v2010
        %v2012 = vpop.f32.mrb[0].mxu0
        %v2013 = vadd.f32 0.0, %v2012
        %2014 = vmatprep.mubr.f32.mxu0 0.0
        %2015 = vmatmul.mubr.f32.gmra.mrb[0].mxu0 %v1545
        %v2016 = vpop.f32.mrb[0].mxu0
        %v2017 = vadd.f32 0.0, %v2016
        %v2018 = vpop.f32.mrb[0].mxu0
        %v2019 = vadd.f32 0.0, %v2018
        %2020 = vmatprep.mubr.f32.mxu0 0.0
        %2021 = vmatmul.mubr.f32.gmra.mrb[0].mxu0 %v1548
        %v2022 = vpop.f32.mrb[0].mxu0
        %v2023 = vadd.f32 0.0, %v2022
        %v2024 = vpop.f32.mrb[0].mxu0
        %v2025 = vadd.f32 0.0, %v2024
        %2026 = vmatprep.mubr.f32.mxu0 0.0
        %2027 = vmatmul.mubr.f32.gmra.mrb[0].mxu0 %v1551
        %v2028 = vpop.f32.mrb[0].mxu0
        %v2029 = vadd.f32 0.0, %v2028
        %v2030 = vpop.f32.mrb[0].mxu0
        %v2031 = vadd.f32 0.0, %v2030
        %2032 = vmatprep.mubr.f32.mxu0 0.0
        %2033 = vmatmul.mubr.f32.gmra.mrb[0].mxu0 %v1554
        %v2034 = vpop.f32.mrb[0].mxu0
        %v2035 = vadd.f32 0.0, %v2034
        %v2036 = vpop.f32.mrb[0].mxu0
        %v2037 = vadd.f32 0.0, %v2036
        %2038 = vdwg.mxu0
        %2039 = vmatprep.subr.mxu0 %v1483
        %2040 = vmatpush1.msra.mxu0 %v1482
        %2041 = vmatprep.subr.mxu0 %v1491
        %2042 = vmatpush1.msra.mxu0 %v1490
        %2043 = vmatprep.subr.mxu0 %v1499
        %2044 = vmatpush1.msra.mxu0 %v1498
        %2045 = vmatprep.subr.mxu0 %v1507
        %2046 = vmatpush1.msra.mxu0 %v1506
        %2047 = vmatprep.subr.mxu0 0.0
        %2048 = vmatpush1.msra.mxu0 0.0
        %2049 = vmatprep.subr.mxu0 0.0
        %2050 = vmatpush1.msra.mxu0 0.0
        %2051 = vmatprep.subr.mxu0 0.0
        %2052 = vmatpush1.msra.mxu0 0.0
        %2053 = vmatprep.subr.mxu0 0.0
        %2054 = vmatpush1.msra.mxu0 0.0
        %2055 = vmatprep.subr.mxu0 0.0
        %2056 = vmatpush1.msra.mxu0 0.0
        %2057 = vmatprep.subr.mxu0 0.0
        %2058 = vmatpush1.msra.mxu0 0.0
        %2059 = vmatprep.subr.mxu0 0.0
        %2060 = vmatpush1.msra.mxu0 0.0
        %2061 = vmatprep.subr.mxu0 0.0
        %2062 = vmatpush1.msra.mxu0 0.0
        %2063 = vmatprep.subr.mxu0 0.0
        %2064 = vmatpush1.msra.mxu0 0.0
        %2065 = vmatprep.subr.mxu0 0.0
        %2066 = vmatpush1.msra.mxu0 0.0
        %2067 = vmatprep.subr.mxu0 0.0
        %2068 = vmatpush1.msra.mxu0 0.0
        %2069 = vmatprep.subr.mxu0 0.0
        %2070 = vmatpush1.msra.mxu0 0.0
        %2071 = vmatprep.subr.mxu0 0.0
        %2072 = vmatpush1.msra.mxu0 0.0
        %2073 = vmatprep.subr.mxu0 0.0
        %2074 = vmatpush1.msra.mxu0 0.0
        %2075 = vmatprep.subr.mxu0 0.0
        %2076 = vmatpush1.msra.mxu0 0.0
        %2077 = vmatprep.subr.mxu0 0.0
        %2078 = vmatpush1.msra.mxu0 0.0
        %2079 = vmatprep.subr.mxu0 0.0
        %2080 = vmatpush1.msra.mxu0 0.0
        %2081 = vmatprep.subr.mxu0 0.0
        %2082 = vmatpush1.msra.mxu0 0.0
        %2083 = vmatprep.subr.mxu0 0.0
        %2084 = vmatpush1.msra.mxu0 0.0
        %2085 = vmatprep.subr.mxu0 0.0
        %2086 = vmatpush1.msra.mxu0 0.0
        %2087 = vmatprep.subr.mxu0 0.0
        %2088 = vmatpush1.msra.mxu0 0.0
        %2089 = vmatprep.subr.mxu0 0.0
        %2090 = vmatpush1.msra.mxu0 0.0
        %2091 = vmatprep.subr.mxu0 0.0
        %2092 = vmatpush1.msra.mxu0 0.0
        %2093 = vmatprep.subr.mxu0 0.0
        %2094 = vmatpush1.msra.mxu0 0.0
        %2095 = vmatprep.subr.mxu0 0.0
        %2096 = vmatpush1.msra.mxu0 0.0
        %2097 = vmatprep.subr.mxu0 0.0
        %2098 = vmatpush1.msra.mxu0 0.0
        %2099 = vmatprep.subr.mxu0 0.0
        %2100 = vmatpush1.msra.mxu0 0.0
        %2101 = vmatprep.subr.mxu0 0.0
        %2102 = vmatpush1.msra.mxu0 0.0
        %2103 = vmatprep.mubr.f32.mxu0 0.0
        %2104 = vmatmul.mubr.f32.gmra.mrb[0].mxu0 %v1509
        %v2105 = vpop.f32.mrb[0].mxu0
        %v2106 = vadd.f32 0.0, %v2105
        %v2107 = vpop.f32.mrb[0].mxu0
        %v2108 = vadd.f32 0.0, %v2107
        %2109 = vmatprep.mubr.f32.mxu0 0.0
        %2110 = vmatmul.mubr.f32.gmra.mrb[0].mxu0 %v1512
        %v2111 = vpop.f32.mrb[0].mxu0
        %v2112 = vadd.f32 0.0, %v2111
        %v2113 = vpop.f32.mrb[0].mxu0
        %v2114 = vadd.f32 0.0, %v2113
        %2115 = vmatprep.mubr.f32.mxu0 0.0
        %2116 = vmatmul.mubr.f32.gmra.mrb[0].mxu0 %v1515
        %v2117 = vpop.f32.mrb[0].mxu0
        %v2118 = vadd.f32 0.0, %v2117
        %v2119 = vpop.f32.mrb[0].mxu0
        %v2120 = vadd.f32 0.0, %v2119
        %2121 = vmatprep.mubr.f32.mxu0 0.0
        %2122 = vmatmul.mubr.f32.gmra.mrb[0].mxu0 %v1518
        %v2123 = vpop.f32.mrb[0].mxu0
        %v2124 = vadd.f32 0.0, %v2123
        %v2125 = vpop.f32.mrb[0].mxu0
        %v2126 = vadd.f32 0.0, %v2125
        %2127 = vmatprep.mubr.f32.mxu0 0.0
        %2128 = vmatmul.mubr.f32.gmra.mrb[0].mxu0 %v1521
        %v2129 = vpop.f32.mrb[0].mxu0
        %v2130 = vadd.f32 0.0, %v2129
        %v2131 = vpop.f32.mrb[0].mxu0
        %v2132 = vadd.f32 0.0, %v2131
        %2133 = vmatprep.mubr.f32.mxu0 0.0
        %2134 = vmatmul.mubr.f32.gmra.mrb[0].mxu0 %v1524
        %v2135 = vpop.f32.mrb[0].mxu0
        %v2136 = vadd.f32 0.0, %v2135
        %v2137 = vpop.f32.mrb[0].mxu0
        %v2138 = vadd.f32 0.0, %v2137
        %2139 = vmatprep.mubr.f32.mxu0 0.0
        %2140 = vmatmul.mubr.f32.gmra.mrb[0].mxu0 %v1527
        %v2141 = vpop.f32.mrb[0].mxu0
        %v2142 = vadd.f32 0.0, %v2141
        %v2143 = vpop.f32.mrb[0].mxu0
        %v2144 = vadd.f32 0.0, %v2143
        %2145 = vmatprep.mubr.f32.mxu0 0.0
        %2146 = vmatmul.mubr.f32.gmra.mrb[0].mxu0 %v1530
        %v2147 = vpop.f32.mrb[0].mxu0
        %v2148 = vadd.f32 0.0, %v2147
        %v2149 = vpop.f32.mrb[0].mxu0
        %v2150 = vadd.f32 0.0, %v2149
        %2151 = vmatprep.mubr.f32.mxu0 0.0
        %2152 = vmatmul.mubr.f32.gmra.mrb[0].mxu0 %v1533
        %v2153 = vpop.f32.mrb[0].mxu0
        %v2154 = vadd.f32 0.0, %v2153
        %v2155 = vpop.f32.mrb[0].mxu0
        %v2156 = vadd.f32 0.0, %v2155
        %2157 = vmatprep.mubr.f32.mxu0 0.0
        %2158 = vmatmul.mubr.f32.gmra.mrb[0].mxu0 %v1536
        %v2159 = vpop.f32.mrb[0].mxu0
        %v2160 = vadd.f32 0.0, %v2159
        %v2161 = vpop.f32.mrb[0].mxu0
        %v2162 = vadd.f32 0.0, %v2161
        %2163 = vmatprep.mubr.f32.mxu0 0.0
        %2164 = vmatmul.mubr.f32.gmra.mrb[0].mxu0 %v1539
        %v2165 = vpop.f32.mrb[0].mxu0
        %v2166 = vadd.f32 0.0, %v2165
        %v2167 = vpop.f32.mrb[0].mxu0
        %v2168 = vadd.f32 0.0, %v2167
        %2169 = vmatprep.mubr.f32.mxu0 0.0
        %2170 = vmatmul.mubr.f32.gmra.mrb[0].mxu0 %v1542
        %v2171 = vpop.f32.mrb[0].mxu0
        %v2172 = vadd.f32 0.0, %v2171
        %v2173 = vpop.f32.mrb[0].mxu0
        %v2174 = vadd.f32 0.0, %v2173
        %2175 = vmatprep.mubr.f32.mxu0 0.0
        %2176 = vmatmul.mubr.f32.gmra.mrb[0].mxu0 %v1545
        %v2177 = vpop.f32.mrb[0].mxu0
        %v2178 = vadd.f32 0.0, %v2177
        %v2179 = vpop.f32.mrb[0].mxu0
        %v2180 = vadd.f32 0.0, %v2179
        %2181 = vmatprep.mubr.f32.mxu0 0.0
        %2182 = vmatmul.mubr.f32.gmra.mrb[0].mxu0 %v1548
        %v2183 = vpop.f32.mrb[0].mxu0
        %v2184 = vadd.f32 0.0, %v2183
        %v2185 = vpop.f32.mrb[0].mxu0
        %v2186 = vadd.f32 0.0, %v2185
        %2187 = vmatprep.mubr.f32.mxu0 0.0
        %2188 = vmatmul.mubr.f32.gmra.mrb[0].mxu0 %v1551
        %v2189 = vpop.f32.mrb[0].mxu0
        %v2190 = vadd.f32 0.0, %v2189
        %v2191 = vpop.f32.mrb[0].mxu0
        %v2192 = vadd.f32 0.0, %v2191
        %2193 = vmatprep.mubr.f32.mxu0 0.0
        %2194 = vmatmul.mubr.f32.gmra.mrb[0].mxu0 %v1554
        %v2195 = vpop.f32.mrb[0].mxu0
        %v2196 = vadd.f32 0.0, %v2195
        %v2197 = vpop.f32.mrb[0].mxu0
        %v2198 = vadd.f32 0.0, %v2197
        %2199 = vdwg.mxu0
        %v2200 = vmul.f32 %v899, %v1623
        %v2201 = vmul.f32 %v901, %v1625
        %v2202 = vmul.f32 %v1060, %v1784
        %v2203 = vmul.f32 %v1062, %v1786
        %v2204 = vmul.f32 %v1221, %v1945
        %v2205 = vmul.f32 %v1223, %v1947
        %v2206 = vmul.f32 %v1382, %v2106
        %v2207 = vmul.f32 %v1384, %v2108
        %v2208 = vmul.f32 %v905, %v1629
        %v2209 = vmul.f32 %v907, %v1631
        %v2210 = vmul.f32 %v1066, %v1790
        %v2211 = vmul.f32 %v1068, %v1792
        %v2212 = vmul.f32 %v1227, %v1951
        %v2213 = vmul.f32 %v1229, %v1953
        %v2214 = vmul.f32 %v1388, %v2112
        %v2215 = vmul.f32 %v1390, %v2114
        %v2216 = vmul.f32 %v911, %v1635
        %v2217 = vmul.f32 %v913, %v1637
        %v2218 = vmul.f32 %v1072, %v1796
        %v2219 = vmul.f32 %v1074, %v1798
        %v2220 = vmul.f32 %v1233, %v1957
        %v2221 = vmul.f32 %v1235, %v1959
        %v2222 = vmul.f32 %v1394, %v2118
        %v2223 = vmul.f32 %v1396, %v2120
        %v2224 = vmul.f32 %v917, %v1641
        %v2225 = vmul.f32 %v919, %v1643
        %v2226 = vmul.f32 %v1078, %v1802
        %v2227 = vmul.f32 %v1080, %v1804
        %v2228 = vmul.f32 %v1239, %v1963
        %v2229 = vmul.f32 %v1241, %v1965
        %v2230 = vmul.f32 %v1400, %v2124
        %v2231 = vmul.f32 %v1402, %v2126
        %v2232 = vmul.f32 %v923, %v1647
        %v2233 = vmul.f32 %v925, %v1649
        %v2234 = vmul.f32 %v1084, %v1808
        %v2235 = vmul.f32 %v1086, %v1810
        %v2236 = vmul.f32 %v1245, %v1969
        %v2237 = vmul.f32 %v1247, %v1971
        %v2238 = vmul.f32 %v1406, %v2130
        %v2239 = vmul.f32 %v1408, %v2132
        %v2240 = vmul.f32 %v929, %v1653
        %v2241 = vmul.f32 %v931, %v1655
        %v2242 = vmul.f32 %v1090, %v1814
        %v2243 = vmul.f32 %v1092, %v1816
        %v2244 = vmul.f32 %v1251, %v1975
        %v2245 = vmul.f32 %v1253, %v1977
        %v2246 = vmul.f32 %v1412, %v2136
        %v2247 = vmul.f32 %v1414, %v2138
        %v2248 = vmul.f32 %v935, %v1659
        %v2249 = vmul.f32 %v937, %v1661
        %v2250 = vmul.f32 %v1096, %v1820
        %v2251 = vmul.f32 %v1098, %v1822
        %v2252 = vmul.f32 %v1257, %v1981
        %v2253 = vmul.f32 %v1259, %v1983
        %v2254 = vmul.f32 %v1418, %v2142
        %v2255 = vmul.f32 %v1420, %v2144
        %v2256 = vmul.f32 %v941, %v1665
        %v2257 = vmul.f32 %v943, %v1667
        %v2258 = vmul.f32 %v1102, %v1826
        %v2259 = vmul.f32 %v1104, %v1828
        %v2260 = vmul.f32 %v1263, %v1987
        %v2261 = vmul.f32 %v1265, %v1989
        %v2262 = vmul.f32 %v1424, %v2148
        %v2263 = vmul.f32 %v1426, %v2150
        %v2264 = vmul.f32 %v947, %v1671
        %v2265 = vmul.f32 %v949, %v1673
        %v2266 = vmul.f32 %v1108, %v1832
        %v2267 = vmul.f32 %v1110, %v1834
        %v2268 = vmul.f32 %v1269, %v1993
        %v2269 = vmul.f32 %v1271, %v1995
        %v2270 = vmul.f32 %v1430, %v2154
        %v2271 = vmul.f32 %v1432, %v2156
        %v2272 = vmul.f32 %v953, %v1677
        %v2273 = vmul.f32 %v955, %v1679
        %v2274 = vmul.f32 %v1114, %v1838
        %v2275 = vmul.f32 %v1116, %v1840
        %v2276 = vmul.f32 %v1275, %v1999
        %v2277 = vmul.f32 %v1277, %v2001
        %v2278 = vmul.f32 %v1436, %v2160
        %v2279 = vmul.f32 %v1438, %v2162
        %v2280 = vmul.f32 %v959, %v1683
        %v2281 = vmul.f32 %v961, %v1685
        %v2282 = vmul.f32 %v1120, %v1844
        %v2283 = vmul.f32 %v1122, %v1846
        %v2284 = vmul.f32 %v1281, %v2005
        %v2285 = vmul.f32 %v1283, %v2007
        %v2286 = vmul.f32 %v1442, %v2166
        %v2287 = vmul.f32 %v1444, %v2168
        %v2288 = vmul.f32 %v965, %v1689
        %v2289 = vmul.f32 %v967, %v1691
        %v2290 = vmul.f32 %v1126, %v1850
        %v2291 = vmul.f32 %v1128, %v1852
        %v2292 = vmul.f32 %v1287, %v2011
        %v2293 = vmul.f32 %v1289, %v2013
        %v2294 = vmul.f32 %v1448, %v2172
        %v2295 = vmul.f32 %v1450, %v2174
        %v2296 = vmul.f32 %v971, %v1695
        %v2297 = vmul.f32 %v973, %v1697
        %v2298 = vmul.f32 %v1132, %v1856
        %v2299 = vmul.f32 %v1134, %v1858
        %v2300 = vmul.f32 %v1293, %v2017
        %v2301 = vmul.f32 %v1295, %v2019
        %v2302 = vmul.f32 %v1454, %v2178
        %v2303 = vmul.f32 %v1456, %v2180
        %v2304 = vmul.f32 %v977, %v1701
        %v2305 = vmul.f32 %v979, %v1703
        %v2306 = vmul.f32 %v1138, %v1862
        %v2307 = vmul.f32 %v1140, %v1864
        %v2308 = vmul.f32 %v1299, %v2023
        %v2309 = vmul.f32 %v1301, %v2025
        %v2310 = vmul.f32 %v1460, %v2184
        %v2311 = vmul.f32 %v1462, %v2186
        %v2312 = vmul.f32 %v983, %v1707
        %v2313 = vmul.f32 %v985, %v1709
        %v2314 = vmul.f32 %v1144, %v1868
        %v2315 = vmul.f32 %v1146, %v1870
        %v2316 = vmul.f32 %v1305, %v2029
        %v2317 = vmul.f32 %v1307, %v2031
        %v2318 = vmul.f32 %v1466, %v2190
        %v2319 = vmul.f32 %v1468, %v2192
        %v2320 = vmul.f32 %v989, %v1713
        %v2321 = vmul.f32 %v991, %v1715
        %v2322 = vmul.f32 %v1150, %v1874
        %v2323 = vmul.f32 %v1152, %v1876
        %v2324 = vmul.f32 %v1311, %v2035
        %v2325 = vmul.f32 %v1313, %v2037
        %v2326 = vmul.f32 %v1472, %v2196
        %v2327 = vmul.f32 %v1474, %v2198
        %v2328 = vld [vmem:[#allocation2] sm:$0xff]
        %v2329 = vld [vmem:[#allocation2 + $0x8] sm:$0xff]
        %v2330 = vld [vmem:[#allocation2 + $0x10] sm:$0xff]
        %v2331 = vld [vmem:[#allocation2 + $0x18] sm:$0xff]
        %v2332 = vld [vmem:[#allocation2 + $0x20] sm:$0xff]
        %v2333 = vld [vmem:[#allocation2 + $0x28] sm:$0xff]
        %v2334 = vld [vmem:[#allocation2 + $0x30] sm:$0xff]
        %v2335 = vld [vmem:[#allocation2 + $0x38] sm:$0xff]
        %v2336 = vld [vmem:[#allocation2 + $0x40] sm:$0xff]
        %v2337 = vld [vmem:[#allocation2 + $0x48] sm:$0xff]
        %v2338 = vld [vmem:[#allocation2 + $0x50] sm:$0xff]
        %v2339 = vld [vmem:[#allocation2 + $0x58] sm:$0xff]
        %v2340 = vld [vmem:[#allocation2 + $0x60] sm:$0xff]
        %v2341 = vld [vmem:[#allocation2 + $0x68] sm:$0xff]
        %v2342 = vld [vmem:[#allocation2 + $0x70] sm:$0xff]
        %v2343 = vld [vmem:[#allocation2 + $0x78] sm:$0xff]
        %v2344 = vld [vmem:[#allocation2 + $0x80] sm:$0xff]
        %v2345 = vld [vmem:[#allocation2 + $0x88] sm:$0xff]
        %v2346 = vld [vmem:[#allocation2 + $0x90] sm:$0xff]
        %v2347 = vld [vmem:[#allocation2 + $0x98] sm:$0xff]
        %v2348 = vld [vmem:[#allocation2 + $0xa0] sm:$0xff]
        %v2349 = vld [vmem:[#allocation2 + $0xa8] sm:$0xff]
        %v2350 = vld [vmem:[#allocation2 + $0xb0] sm:$0xff]
        %v2351 = vld [vmem:[#allocation2 + $0xb8] sm:$0xff]
        %v2352 = vld [vmem:[#allocation2 + $0xc0] sm:$0xff]
        %v2353 = vld [vmem:[#allocation2 + $0xc8] sm:$0xff]
        %v2354 = vld [vmem:[#allocation2 + $0xd0] sm:$0xff]
        %v2355 = vld [vmem:[#allocation2 + $0xd8] sm:$0xff]
        %v2356 = vld [vmem:[#allocation2 + $0xe0] sm:$0xff]
        %v2357 = vld [vmem:[#allocation2 + $0xe8] sm:$0xff]
        %v2358 = vld [vmem:[#allocation2 + $0xf0] sm:$0xff]
        %v2359 = vld [vmem:[#allocation2 + $0xf8] sm:$0xff]
        %v2360 = vld [vmem:[#allocation2 + $0x100] sm:$0xff]
        %v2361 = vld [vmem:[#allocation2 + $0x108] sm:$0xff]
        %v2362 = vld [vmem:[#allocation2 + $0x110] sm:$0xff]
        %v2363 = vld [vmem:[#allocation2 + $0x118] sm:$0xff]
        %v2364 = vld [vmem:[#allocation2 + $0x120] sm:$0xff]
        %v2365 = vld [vmem:[#allocation2 + $0x128] sm:$0xff]
        %v2366 = vld [vmem:[#allocation2 + $0x130] sm:$0xff]
        %v2367 = vld [vmem:[#allocation2 + $0x138] sm:$0xff]
        %v2368 = vld [vmem:[#allocation2 + $0x140] sm:$0xff]
        %v2369 = vld [vmem:[#allocation2 + $0x148] sm:$0xff]
        %v2370 = vld [vmem:[#allocation2 + $0x150] sm:$0xff]
        %v2371 = vld [vmem:[#allocation2 + $0x158] sm:$0xff]
        %v2372 = vld [vmem:[#allocation2 + $0x160] sm:$0xff]
        %v2373 = vld [vmem:[#allocation2 + $0x168] sm:$0xff]
        %v2374 = vld [vmem:[#allocation2 + $0x170] sm:$0xff]
        %v2375 = vld [vmem:[#allocation2 + $0x178] sm:$0xff]
        %v2376 = vld [vmem:[#allocation2 + $0x180] sm:$0xff]
        %v2377 = vld [vmem:[#allocation2 + $0x188] sm:$0xff]
        %v2378 = vld [vmem:[#allocation2 + $0x190] sm:$0xff]
        %v2379 = vld [vmem:[#allocation2 + $0x198] sm:$0xff]
        %v2380 = vld [vmem:[#allocation2 + $0x1a0] sm:$0xff]
        %v2381 = vld [vmem:[#allocation2 + $0x1a8] sm:$0xff]
        %v2382 = vld [vmem:[#allocation2 + $0x1b0] sm:$0xff]
        %v2383 = vld [vmem:[#allocation2 + $0x1b8] sm:$0xff]
        %v2384 = vld [vmem:[#allocation2 + $0x1c0] sm:$0xff]
        %v2385 = vld [vmem:[#allocation2 + $0x1c8] sm:$0xff]
        %v2386 = vld [vmem:[#allocation2 + $0x1d0] sm:$0xff]
        %v2387 = vld [vmem:[#allocation2 + $0x1d8] sm:$0xff]
        %v2388 = vld [vmem:[#allocation2 + $0x1e0] sm:$0xff]
        %v2389 = vld [vmem:[#allocation2 + $0x1e8] sm:$0xff]
        %v2390 = vld [vmem:[#allocation2 + $0x1f0] sm:$0xff]
        %v2391 = vld [vmem:[#allocation2 + $0x1f8] sm:$0xff]
        %v2392 = vld [vmem:[#allocation2 + $0x200] sm:$0xff]
        %v2393 = vld [vmem:[#allocation2 + $0x208] sm:$0xff]
        %v2394 = vld [vmem:[#allocation2 + $0x210] sm:$0xff]
        %v2395 = vld [vmem:[#allocation2 + $0x218] sm:$0xff]
        %v2396 = vld [vmem:[#allocation2 + $0x220] sm:$0xff]
        %v2397 = vld [vmem:[#allocation2 + $0x228] sm:$0xff]
        %v2398 = vld [vmem:[#allocation2 + $0x230] sm:$0xff]
        %v2399 = vld [vmem:[#allocation2 + $0x238] sm:$0xff]
        %v2400 = vld [vmem:[#allocation2 + $0x240] sm:$0xff]
        %v2401 = vld [vmem:[#allocation2 + $0x248] sm:$0xff]
        %v2402 = vld [vmem:[#allocation2 + $0x250] sm:$0xff]
        %v2403 = vld [vmem:[#allocation2 + $0x258] sm:$0xff]
        %v2404 = vld [vmem:[#allocation2 + $0x260] sm:$0xff]
        %v2405 = vld [vmem:[#allocation2 + $0x268] sm:$0xff]
        %v2406 = vld [vmem:[#allocation2 + $0x270] sm:$0xff]
        %v2407 = vld [vmem:[#allocation2 + $0x278] sm:$0xff]
        %v2408 = vld [vmem:[#allocation2 + $0x280] sm:$0xff]
        %v2409 = vld [vmem:[#allocation2 + $0x288] sm:$0xff]
        %v2410 = vld [vmem:[#allocation2 + $0x290] sm:$0xff]
        %v2411 = vld [vmem:[#allocation2 + $0x298] sm:$0xff]
        %v2412 = vld [vmem:[#allocation2 + $0x2a0] sm:$0xff]
        %v2413 = vld [vmem:[#allocation2 + $0x2a8] sm:$0xff]
        %v2414 = vld [vmem:[#allocation2 + $0x2b0] sm:$0xff]
        %v2415 = vld [vmem:[#allocation2 + $0x2b8] sm:$0xff]
        %v2416 = vld [vmem:[#allocation2 + $0x2c0] sm:$0xff]
        %v2417 = vld [vmem:[#allocation2 + $0x2c8] sm:$0xff]
        %v2418 = vld [vmem:[#allocation2 + $0x2d0] sm:$0xff]
        %v2419 = vld [vmem:[#allocation2 + $0x2d8] sm:$0xff]
        %v2420 = vld [vmem:[#allocation2 + $0x2e0] sm:$0xff]
        %v2421 = vld [vmem:[#allocation2 + $0x2e8] sm:$0xff]
        %v2422 = vld [vmem:[#allocation2 + $0x2f0] sm:$0xff]
        %v2423 = vld [vmem:[#allocation2 + $0x2f8] sm:$0xff]
        %v2424 = vld [vmem:[#allocation2 + $0x300] sm:$0xff]
        %v2425 = vld [vmem:[#allocation2 + $0x308] sm:$0xff]
        %v2426 = vld [vmem:[#allocation2 + $0x310] sm:$0xff]
        %v2427 = vld [vmem:[#allocation2 + $0x318] sm:$0xff]
        %v2428 = vld [vmem:[#allocation2 + $0x320] sm:$0xff]
        %v2429 = vld [vmem:[#allocation2 + $0x328] sm:$0xff]
        %v2430 = vld [vmem:[#allocation2 + $0x330] sm:$0xff]
        %v2431 = vld [vmem:[#allocation2 + $0x338] sm:$0xff]
        %v2432 = vld [vmem:[#allocation2 + $0x340] sm:$0xff]
        %v2433 = vld [vmem:[#allocation2 + $0x348] sm:$0xff]
        %v2434 = vld [vmem:[#allocation2 + $0x350] sm:$0xff]
        %v2435 = vld [vmem:[#allocation2 + $0x358] sm:$0xff]
        %v2436 = vld [vmem:[#allocation2 + $0x360] sm:$0xff]
        %v2437 = vld [vmem:[#allocation2 + $0x368] sm:$0xff]
        %v2438 = vld [vmem:[#allocation2 + $0x370] sm:$0xff]
        %v2439 = vld [vmem:[#allocation2 + $0x378] sm:$0xff]
        %v2440 = vld [vmem:[#allocation2 + $0x380] sm:$0xff]
        %v2441 = vld [vmem:[#allocation2 + $0x388] sm:$0xff]
        %v2442 = vld [vmem:[#allocation2 + $0x390] sm:$0xff]
        %v2443 = vld [vmem:[#allocation2 + $0x398] sm:$0xff]
        %v2444 = vld [vmem:[#allocation2 + $0x3a0] sm:$0xff]
        %v2445 = vld [vmem:[#allocation2 + $0x3a8] sm:$0xff]
        %v2446 = vld [vmem:[#allocation2 + $0x3b0] sm:$0xff]
        %v2447 = vld [vmem:[#allocation2 + $0x3b8] sm:$0xff]
        %v2448 = vld [vmem:[#allocation2 + $0x3c0] sm:$0xff]
        %v2449 = vld [vmem:[#allocation2 + $0x3c8] sm:$0xff]
        %v2450 = vld [vmem:[#allocation2 + $0x3d0] sm:$0xff]
        %v2451 = vld [vmem:[#allocation2 + $0x3d8] sm:$0xff]
        %v2452 = vld [vmem:[#allocation2 + $0x3e0] sm:$0xff]
        %v2453 = vld [vmem:[#allocation2 + $0x3e8] sm:$0xff]
        %v2454 = vld [vmem:[#allocation2 + $0x3f0] sm:$0xff]
        %v2455 = vld [vmem:[#allocation2 + $0x3f8] sm:$0xff]
        %2456 = vmatprep.subr.mxu0 0.0
        %2457 = vmatpush1.msra.mxu0 %v2328
        %2458 = vmatprep.subr.mxu0 0.0
        %2459 = vmatpush1.msra.mxu0 %v2329
        %2460 = vmatprep.subr.mxu0 0.0
        %2461 = vmatpush1.msra.mxu0 %v2330
        %2462 = vmatprep.subr.mxu0 0.0
        %2463 = vmatpush1.msra.mxu0 %v2331
        %2464 = vmatprep.subr.mxu0 0.0
        %2465 = vmatpush1.msra.mxu0 %v2332
        %2466 = vmatprep.subr.mxu0 0.0
        %2467 = vmatpush1.msra.mxu0 %v2333
        %2468 = vmatprep.subr.mxu0 0.0
        %2469 = vmatpush1.msra.mxu0 %v2334
        %2470 = vmatprep.subr.mxu0 0.0
        %2471 = vmatpush1.msra.mxu0 %v2335
        %2472 = vmatprep.subr.mxu0 0.0
        %2473 = vmatpush1.msra.mxu0 %v2336
        %2474 = vmatprep.subr.mxu0 0.0
        %2475 = vmatpush1.msra.mxu0 %v2337
        %2476 = vmatprep.subr.mxu0 0.0
        %2477 = vmatpush1.msra.mxu0 %v2338
        %2478 = vmatprep.subr.mxu0 0.0
        %2479 = vmatpush1.msra.mxu0 %v2339
        %2480 = vmatprep.subr.mxu0 0.0
        %2481 = vmatpush1.msra.mxu0 %v2340
        %2482 = vmatprep.subr.mxu0 0.0
        %2483 = vmatpush1.msra.mxu0 %v2341
        %2484 = vmatprep.subr.mxu0 0.0
        %2485 = vmatpush1.msra.mxu0 %v2342
        %2486 = vmatprep.subr.mxu0 0.0
        %2487 = vmatpush1.msra.mxu0 %v2343
        %2488 = vmatprep.subr.mxu0 0.0
        %2489 = vmatpush1.msra.mxu0 %v2344
        %2490 = vmatprep.subr.mxu0 0.0
        %2491 = vmatpush1.msra.mxu0 %v2345
        %2492 = vmatprep.subr.mxu0 0.0
        %2493 = vmatpush1.msra.mxu0 %v2346
        %2494 = vmatprep.subr.mxu0 0.0
        %2495 = vmatpush1.msra.mxu0 %v2347
        %2496 = vmatprep.subr.mxu0 0.0
        %2497 = vmatpush1.msra.mxu0 %v2348
        %2498 = vmatprep.subr.mxu0 0.0
        %2499 = vmatpush1.msra.mxu0 %v2349
        %2500 = vmatprep.subr.mxu0 0.0
        %2501 = vmatpush1.msra.mxu0 %v2350
        %2502 = vmatprep.subr.mxu0 0.0
        %2503 = vmatpush1.msra.mxu0 %v2351
        %2504 = vmatprep.subr.mxu0 0.0
        %2505 = vmatpush1.msra.mxu0 %v2352
        %2506 = vmatprep.subr.mxu0 0.0
        %2507 = vmatpush1.msra.mxu0 %v2353
        %2508 = vmatprep.subr.mxu0 0.0
        %2509 = vmatpush1.msra.mxu0 %v2354
        %2510 = vmatprep.subr.mxu0 0.0
        %2511 = vmatpush1.msra.mxu0 %v2355
        %2512 = vmatprep.subr.mxu0 0.0
        %2513 = vmatpush1.msra.mxu0 %v2356
        %2514 = vmatprep.subr.mxu0 0.0
        %2515 = vmatpush1.msra.mxu0 %v2357
        %2516 = vmatprep.subr.mxu0 0.0
        %2517 = vmatpush1.msra.mxu0 %v2358
        %2518 = vmatprep.subr.mxu0 0.0
        %2519 = vmatpush1.msra.mxu0 %v2359
        %2520 = vmatprep.mubr.f32.mxu0 %v2201
        %2521 = vmatmul.mubr.f32.gmra.mrb[0].mxu0 %v2200
        %v2522 = vpop.f32.mrb[0].mxu0
        %v2523 = vadd.f32 0.0, %v2522
        %v2524 = vpop.f32.mrb[0].mxu0
        %2525 = vmatprep.mubr.f32.mxu0 %v2209
        %2526 = vmatmul.mubr.f32.gmra.mrb[0].mxu0 %v2208
        %v2527 = vpop.f32.mrb[0].mxu0
        %v2528 = vadd.f32 0.0, %v2527
        %v2529 = vpop.f32.mrb[0].mxu0
        %2530 = vmatprep.mubr.f32.mxu0 %v2217
        %2531 = vmatmul.mubr.f32.gmra.mrb[0].mxu0 %v2216
        %v2532 = vpop.f32.mrb[0].mxu0
        %v2533 = vadd.f32 0.0, %v2532
        %v2534 = vpop.f32.mrb[0].mxu0
        %2535 = vmatprep.mubr.f32.mxu0 %v2225
        %2536 = vmatmul.mubr.f32.gmra.mrb[0].mxu0 %v2224
        %v2537 = vpop.f32.mrb[0].mxu0
        %v2538 = vadd.f32 0.0, %v2537
        %v2539 = vpop.f32.mrb[0].mxu0
        %2540 = vmatprep.mubr.f32.mxu0 %v2233
        %2541 = vmatmul.mubr.f32.gmra.mrb[0].mxu0 %v2232
        %v2542 = vpop.f32.mrb[0].mxu0
        %v2543 = vadd.f32 0.0, %v2542
        %v2544 = vpop.f32.mrb[0].mxu0
        %2545 = vmatprep.mubr.f32.mxu0 %v2241
        %2546 = vmatmul.mubr.f32.gmra.mrb[0].mxu0 %v2240
        %v2547 = vpop.f32.mrb[0].mxu0
        %v2548 = vadd.f32 0.0, %v2547
        %v2549 = vpop.f32.mrb[0].mxu0
        %2550 = vmatprep.mubr.f32.mxu0 %v2249
        %2551 = vmatmul.mubr.f32.gmra.mrb[0].mxu0 %v2248
        %v2552 = vpop.f32.mrb[0].mxu0
        %v2553 = vadd.f32 0.0, %v2552
        %v2554 = vpop.f32.mrb[0].mxu0
        %2555 = vmatprep.mubr.f32.mxu0 %v2257
        %2556 = vmatmul.mubr.f32.gmra.mrb[0].mxu0 %v2256
        %v2557 = vpop.f32.mrb[0].mxu0
        %v2558 = vadd.f32 0.0, %v2557
        %v2559 = vpop.f32.mrb[0].mxu0
        %2560 = vmatprep.mubr.f32.mxu0 %v2265
        %2561 = vmatmul.mubr.f32.gmra.mrb[0].mxu0 %v2264
        %v2562 = vpop.f32.mrb[0].mxu0
        %v2563 = vadd.f32 0.0, %v2562
        %v2564 = vpop.f32.mrb[0].mxu0
        %2565 = vmatprep.mubr.f32.mxu0 %v2273
        %2566 = vmatmul.mubr.f32.gmra.mrb[0].mxu0 %v2272
        %v2567 = vpop.f32.mrb[0].mxu0
        %v2568 = vadd.f32 0.0, %v2567
        %v2569 = vpop.f32.mrb[0].mxu0
        %2570 = vmatprep.mubr.f32.mxu0 %v2281
        %2571 = vmatmul.mubr.f32.gmra.mrb[0].mxu0 %v2280
        %v2572 = vpop.f32.mrb[0].mxu0
        %v2573 = vadd.f32 0.0, %v2572
        %v2574 = vpop.f32.mrb[0].mxu0
        %2575 = vmatprep.mubr.f32.mxu0 %v2289
        %2576 = vmatmul.mubr.f32.gmra.mrb[0].mxu0 %v2288
        %v2577 = vpop.f32.mrb[0].mxu0
        %v2578 = vadd.f32 0.0, %v2577
        %v2579 = vpop.f32.mrb[0].mxu0
        %2580 = vmatprep.mubr.f32.mxu0 %v2297
        %2581 = vmatmul.mubr.f32.gmra.mrb[0].mxu0 %v2296
        %v2582 = vpop.f32.mrb[0].mxu0
        %v2583 = vadd.f32 0.0, %v2582
        %v2584 = vpop.f32.mrb[0].mxu0
        %2585 = vmatprep.mubr.f32.mxu0 %v2305
        %2586 = vmatmul.mubr.f32.gmra.mrb[0].mxu0 %v2304
        %v2587 = vpop.f32.mrb[0].mxu0
        %v2588 = vadd.f32 0.0, %v2587
        %v2589 = vpop.f32.mrb[0].mxu0
        %2590 = vmatprep.mubr.f32.mxu0 %v2313
        %2591 = vmatmul.mubr.f32.gmra.mrb[0].mxu0 %v2312
        %v2592 = vpop.f32.mrb[0].mxu0
        %v2593 = vadd.f32 0.0, %v2592
        %v2594 = vpop.f32.mrb[0].mxu0
        %2595 = vmatprep.mubr.f32.mxu0 %v2321
        %2596 = vmatmul.mubr.f32.gmra.mrb[0].mxu0 %v2320
        %v2597 = vpop.f32.mrb[0].mxu0
        %v2598 = vadd.f32 0.0, %v2597
        %v2599 = vpop.f32.mrb[0].mxu0
        %2600 = vdwg.mxu0
        %2601 = vmatprep.subr.mxu0 0.0
        %2602 = vmatpush1.msra.mxu0 %v2360
        %2603 = vmatprep.subr.mxu0 0.0
        %2604 = vmatpush1.msra.mxu0 %v2361
        %2605 = vmatprep.subr.mxu0 0.0
        %2606 = vmatpush1.msra.mxu0 %v2362
        %2607 = vmatprep.subr.mxu0 0.0
        %2608 = vmatpush1.msra.mxu0 %v2363
        %2609 = vmatprep.subr.mxu0 0.0
        %2610 = vmatpush1.msra.mxu0 %v2364
        %2611 = vmatprep.subr.mxu0 0.0
        %2612 = vmatpush1.msra.mxu0 %v2365
        %2613 = vmatprep.subr.mxu0 0.0
        %2614 = vmatpush1.msra.mxu0 %v2366
        %2615 = vmatprep.subr.mxu0 0.0
        %2616 = vmatpush1.msra.mxu0 %v2367
        %2617 = vmatprep.subr.mxu0 0.0
        %2618 = vmatpush1.msra.mxu0 %v2368
        %2619 = vmatprep.subr.mxu0 0.0
        %2620 = vmatpush1.msra.mxu0 %v2369
        %2621 = vmatprep.subr.mxu0 0.0
        %2622 = vmatpush1.msra.mxu0 %v2370
        %2623 = vmatprep.subr.mxu0 0.0
        %2624 = vmatpush1.msra.mxu0 %v2371
        %2625 = vmatprep.subr.mxu0 0.0
        %2626 = vmatpush1.msra.mxu0 %v2372
        %2627 = vmatprep.subr.mxu0 0.0
        %2628 = vmatpush1.msra.mxu0 %v2373
        %2629 = vmatprep.subr.mxu0 0.0
        %2630 = vmatpush1.msra.mxu0 %v2374
        %2631 = vmatprep.subr.mxu0 0.0
        %2632 = vmatpush1.msra.mxu0 %v2375
        %2633 = vmatprep.subr.mxu0 0.0
        %2634 = vmatpush1.msra.mxu0 %v2376
        %2635 = vmatprep.subr.mxu0 0.0
        %2636 = vmatpush1.msra.mxu0 %v2377
        %2637 = vmatprep.subr.mxu0 0.0
        %2638 = vmatpush1.msra.mxu0 %v2378
        %2639 = vmatprep.subr.mxu0 0.0
        %2640 = vmatpush1.msra.mxu0 %v2379
        %2641 = vmatprep.subr.mxu0 0.0
        %2642 = vmatpush1.msra.mxu0 %v2380
        %2643 = vmatprep.subr.mxu0 0.0
        %2644 = vmatpush1.msra.mxu0 %v2381
        %2645 = vmatprep.subr.mxu0 0.0
        %2646 = vmatpush1.msra.mxu0 %v2382
        %2647 = vmatprep.subr.mxu0 0.0
        %2648 = vmatpush1.msra.mxu0 %v2383
        %2649 = vmatprep.subr.mxu0 0.0
        %2650 = vmatpush1.msra.mxu0 %v2384
        %2651 = vmatprep.subr.mxu0 0.0
        %2652 = vmatpush1.msra.mxu0 %v2385
        %2653 = vmatprep.subr.mxu0 0.0
        %2654 = vmatpush1.msra.mxu0 %v2386
        %2655 = vmatprep.subr.mxu0 0.0
        %2656 = vmatpush1.msra.mxu0 %v2387
        %2657 = vmatprep.subr.mxu0 0.0
        %2658 = vmatpush1.msra.mxu0 %v2388
        %2659 = vmatprep.subr.mxu0 0.0
        %2660 = vmatpush1.msra.mxu0 %v2389
        %2661 = vmatprep.subr.mxu0 0.0
        %2662 = vmatpush1.msra.mxu0 %v2390
        %2663 = vmatprep.subr.mxu0 0.0
        %2664 = vmatpush1.msra.mxu0 %v2391
        %2665 = vmatprep.mubr.f32.mxu0 %v2203
        %2666 = vmatmul.mubr.f32.gmra.mrb[0].mxu0 %v2202
        %v2667 = vpop.f32.mrb[0].mxu0
        %v2668 = vadd.f32 %v2523, %v2667
        %v2669 = vpop.f32.mrb[0].mxu0
        %2670 = vmatprep.mubr.f32.mxu0 %v2211
        %2671 = vmatmul.mubr.f32.gmra.mrb[0].mxu0 %v2210
        %v2672 = vpop.f32.mrb[0].mxu0
        %v2673 = vadd.f32 %v2528, %v2672
        %v2674 = vpop.f32.mrb[0].mxu0
        %2675 = vmatprep.mubr.f32.mxu0 %v2219
        %2676 = vmatmul.mubr.f32.gmra.mrb[0].mxu0 %v2218
        %v2677 = vpop.f32.mrb[0].mxu0
        %v2678 = vadd.f32 %v2533, %v2677
        %v2679 = vpop.f32.mrb[0].mxu0
        %2680 = vmatprep.mubr.f32.mxu0 %v2227
        %2681 = vmatmul.mubr.f32.gmra.mrb[0].mxu0 %v2226
        %v2682 = vpop.f32.mrb[0].mxu0
        %v2683 = vadd.f32 %v2538, %v2682
        %v2684 = vpop.f32.mrb[0].mxu0
        %2685 = vmatprep.mubr.f32.mxu0 %v2235
        %2686 = vmatmul.mubr.f32.gmra.mrb[0].mxu0 %v2234
        %v2687 = vpop.f32.mrb[0].mxu0
        %v2688 = vadd.f32 %v2543, %v2687
        %v2689 = vpop.f32.mrb[0].mxu0
        %2690 = vmatprep.mubr.f32.mxu0 %v2243
        %2691 = vmatmul.mubr.f32.gmra.mrb[0].mxu0 %v2242
        %v2692 = vpop.f32.mrb[0].mxu0
        %v2693 = vadd.f32 %v2548, %v2692
        %v2694 = vpop.f32.mrb[0].mxu0
        %2695 = vmatprep.mubr.f32.mxu0 %v2251
        %2696 = vmatmul.mubr.f32.gmra.mrb[0].mxu0 %v2250
        %v2697 = vpop.f32.mrb[0].mxu0
        %v2698 = vadd.f32 %v2553, %v2697
        %v2699 = vpop.f32.mrb[0].mxu0
        %2700 = vmatprep.mubr.f32.mxu0 %v2259
        %2701 = vmatmul.mubr.f32.gmra.mrb[0].mxu0 %v2258
        %v2702 = vpop.f32.mrb[0].mxu0
        %v2703 = vadd.f32 %v2558, %v2702
        %v2704 = vpop.f32.mrb[0].mxu0
        %2705 = vmatprep.mubr.f32.mxu0 %v2267
        %2706 = vmatmul.mubr.f32.gmra.mrb[0].mxu0 %v2266
        %v2707 = vpop.f32.mrb[0].mxu0
        %v2708 = vadd.f32 %v2563, %v2707
        %v2709 = vpop.f32.mrb[0].mxu0
        %2710 = vmatprep.mubr.f32.mxu0 %v2275
        %2711 = vmatmul.mubr.f32.gmra.mrb[0].mxu0 %v2274
        %v2712 = vpop.f32.mrb[0].mxu0
        %v2713 = vadd.f32 %v2568, %v2712
        %v2714 = vpop.f32.mrb[0].mxu0
        %2715 = vmatprep.mubr.f32.mxu0 %v2283
        %2716 = vmatmul.mubr.f32.gmra.mrb[0].mxu0 %v2282
        %v2717 = vpop.f32.mrb[0].mxu0
        %v2718 = vadd.f32 %v2573, %v2717
        %v2719 = vpop.f32.mrb[0].mxu0
        %2720 = vmatprep.mubr.f32.mxu0 %v2291
        %2721 = vmatmul.mubr.f32.gmra.mrb[0].mxu0 %v2290
        %v2722 = vpop.f32.mrb[0].mxu0
        %v2723 = vadd.f32 %v2578, %v2722
        %v2724 = vpop.f32.mrb[0].mxu0
        %2725 = vmatprep.mubr.f32.mxu0 %v2299
        %2726 = vmatmul.mubr.f32.gmra.mrb[0].mxu0 %v2298
        %v2727 = vpop.f32.mrb[0].mxu0
        %v2728 = vadd.f32 %v2583, %v2727
        %v2729 = vpop.f32.mrb[0].mxu0
        %2730 = vmatprep.mubr.f32.mxu0 %v2307
        %2731 = vmatmul.mubr.f32.gmra.mrb[0].mxu0 %v2306
        %v2732 = vpop.f32.mrb[0].mxu0
        %v2733 = vadd.f32 %v2588, %v2732
        %v2734 = vpop.f32.mrb[0].mxu0
        %2735 = vmatprep.mubr.f32.mxu0 %v2315
        %2736 = vmatmul.mubr.f32.gmra.mrb[0].mxu0 %v2314
        %v2737 = vpop.f32.mrb[0].mxu0
        %v2738 = vadd.f32 %v2593, %v2737
        %v2739 = vpop.f32.mrb[0].mxu0
        %2740 = vmatprep.mubr.f32.mxu0 %v2323
        %2741 = vmatmul.mubr.f32.gmra.mrb[0].mxu0 %v2322
        %v2742 = vpop.f32.mrb[0].mxu0
        %v2743 = vadd.f32 %v2598, %v2742
        %v2744 = vpop.f32.mrb[0].mxu0
        %2745 = vdwg.mxu0
        %2746 = vmatprep.subr.mxu0 0.0
        %2747 = vmatpush1.msra.mxu0 %v2392
        %2748 = vmatprep.subr.mxu0 0.0
        %2749 = vmatpush1.msra.mxu0 %v2393
        %2750 = vmatprep.subr.mxu0 0.0
        %2751 = vmatpush1.msra.mxu0 %v2394
        %2752 = vmatprep.subr.mxu0 0.0
        %2753 = vmatpush1.msra.mxu0 %v2395
        %2754 = vmatprep.subr.mxu0 0.0
        %2755 = vmatpush1.msra.mxu0 %v2396
        %2756 = vmatprep.subr.mxu0 0.0
        %2757 = vmatpush1.msra.mxu0 %v2397
        %2758 = vmatprep.subr.mxu0 0.0
        %2759 = vmatpush1.msra.mxu0 %v2398
        %2760 = vmatprep.subr.mxu0 0.0
        %2761 = vmatpush1.msra.mxu0 %v2399
        %2762 = vmatprep.subr.mxu0 0.0
        %2763 = vmatpush1.msra.mxu0 %v2400
        %2764 = vmatprep.subr.mxu0 0.0
        %2765 = vmatpush1.msra.mxu0 %v2401
        %2766 = vmatprep.subr.mxu0 0.0
        %2767 = vmatpush1.msra.mxu0 %v2402
        %2768 = vmatprep.subr.mxu0 0.0
        %2769 = vmatpush1.msra.mxu0 %v2403
        %2770 = vmatprep.subr.mxu0 0.0
        %2771 = vmatpush1.msra.mxu0 %v2404
        %2772 = vmatprep.subr.mxu0 0.0
        %2773 = vmatpush1.msra.mxu0 %v2405
        %2774 = vmatprep.subr.mxu0 0.0
        %2775 = vmatpush1.msra.mxu0 %v2406
        %2776 = vmatprep.subr.mxu0 0.0
        %2777 = vmatpush1.msra.mxu0 %v2407
        %2778 = vmatprep.subr.mxu0 0.0
        %2779 = vmatpush1.msra.mxu0 %v2408
        %2780 = vmatprep.subr.mxu0 0.0
        %2781 = vmatpush1.msra.mxu0 %v2409
        %2782 = vmatprep.subr.mxu0 0.0
        %2783 = vmatpush1.msra.mxu0 %v2410
        %2784 = vmatprep.subr.mxu0 0.0
        %2785 = vmatpush1.msra.mxu0 %v2411
        %2786 = vmatprep.subr.mxu0 0.0
        %2787 = vmatpush1.msra.mxu0 %v2412
        %2788 = vmatprep.subr.mxu0 0.0
        %2789 = vmatpush1.msra.mxu0 %v2413
        %2790 = vmatprep.subr.mxu0 0.0
        %2791 = vmatpush1.msra.mxu0 %v2414
        %2792 = vmatprep.subr.mxu0 0.0
        %2793 = vmatpush1.msra.mxu0 %v2415
        %2794 = vmatprep.subr.mxu0 0.0
        %2795 = vmatpush1.msra.mxu0 %v2416
        %2796 = vmatprep.subr.mxu0 0.0
        %2797 = vmatpush1.msra.mxu0 %v2417
        %2798 = vmatprep.subr.mxu0 0.0
        %2799 = vmatpush1.msra.mxu0 %v2418
        %2800 = vmatprep.subr.mxu0 0.0
        %2801 = vmatpush1.msra.mxu0 %v2419
        %2802 = vmatprep.subr.mxu0 0.0
        %2803 = vmatpush1.msra.mxu0 %v2420
        %2804 = vmatprep.subr.mxu0 0.0
        %2805 = vmatpush1.msra.mxu0 %v2421
        %2806 = vmatprep.subr.mxu0 0.0
        %2807 = vmatpush1.msra.mxu0 %v2422
        %2808 = vmatprep.subr.mxu0 0.0
        %2809 = vmatpush1.msra.mxu0 %v2423
        %2810 = vmatprep.mubr.f32.mxu0 %v2205
        %2811 = vmatmul.mubr.f32.gmra.mrb[0].mxu0 %v2204
        %v2812 = vpop.f32.mrb[0].mxu0
        %v2813 = vadd.f32 %v2668, %v2812
        %v2814 = vpop.f32.mrb[0].mxu0
        %2815 = vmatprep.mubr.f32.mxu0 %v2213
        %2816 = vmatmul.mubr.f32.gmra.mrb[0].mxu0 %v2212
        %v2817 = vpop.f32.mrb[0].mxu0
        %v2818 = vadd.f32 %v2673, %v2817
        %v2819 = vpop.f32.mrb[0].mxu0
        %2820 = vmatprep.mubr.f32.mxu0 %v2221
        %2821 = vmatmul.mubr.f32.gmra.mrb[0].mxu0 %v2220
        %v2822 = vpop.f32.mrb[0].mxu0
        %v2823 = vadd.f32 %v2678, %v2822
        %v2824 = vpop.f32.mrb[0].mxu0
        %2825 = vmatprep.mubr.f32.mxu0 %v2229
        %2826 = vmatmul.mubr.f32.gmra.mrb[0].mxu0 %v2228
        %v2827 = vpop.f32.mrb[0].mxu0
        %v2828 = vadd.f32 %v2683, %v2827
        %v2829 = vpop.f32.mrb[0].mxu0
        %2830 = vmatprep.mubr.f32.mxu0 %v2237
        %2831 = vmatmul.mubr.f32.gmra.mrb[0].mxu0 %v2236
        %v2832 = vpop.f32.mrb[0].mxu0
        %v2833 = vadd.f32 %v2688, %v2832
        %v2834 = vpop.f32.mrb[0].mxu0
        %2835 = vmatprep.mubr.f32.mxu0 %v2245
        %2836 = vmatmul.mubr.f32.gmra.mrb[0].mxu0 %v2244
        %v2837 = vpop.f32.mrb[0].mxu0
        %v2838 = vadd.f32 %v2693, %v2837
        %v2839 = vpop.f32.mrb[0].mxu0
        %2840 = vmatprep.mubr.f32.mxu0 %v2253
        %2841 = vmatmul.mubr.f32.gmra.mrb[0].mxu0 %v2252
        %v2842 = vpop.f32.mrb[0].mxu0
        %v2843 = vadd.f32 %v2698, %v2842
        %v2844 = vpop.f32.mrb[0].mxu0
        %2845 = vmatprep.mubr.f32.mxu0 %v2261
        %2846 = vmatmul.mubr.f32.gmra.mrb[0].mxu0 %v2260
        %v2847 = vpop.f32.mrb[0].mxu0
        %v2848 = vadd.f32 %v2703, %v2847
        %v2849 = vpop.f32.mrb[0].mxu0
        %2850 = vmatprep.mubr.f32.mxu0 %v2269
        %2851 = vmatmul.mubr.f32.gmra.mrb[0].mxu0 %v2268
        %v2852 = vpop.f32.mrb[0].mxu0
        %v2853 = vadd.f32 %v2708, %v2852
        %v2854 = vpop.f32.mrb[0].mxu0
        %2855 = vmatprep.mubr.f32.mxu0 %v2277
        %2856 = vmatmul.mubr.f32.gmra.mrb[0].mxu0 %v2276
        %v2857 = vpop.f32.mrb[0].mxu0
        %v2858 = vadd.f32 %v2713, %v2857
        %v2859 = vpop.f32.mrb[0].mxu0
        %2860 = vmatprep.mubr.f32.mxu0 %v2285
        %2861 = vmatmul.mubr.f32.gmra.mrb[0].mxu0 %v2284
        %v2862 = vpop.f32.mrb[0].mxu0
        %v2863 = vadd.f32 %v2718, %v2862
        %v2864 = vpop.f32.mrb[0].mxu0
        %2865 = vmatprep.mubr.f32.mxu0 %v2293
        %2866 = vmatmul.mubr.f32.gmra.mrb[0].mxu0 %v2292
        %v2867 = vpop.f32.mrb[0].mxu0
        %v2868 = vadd.f32 %v2723, %v2867
        %v2869 = vpop.f32.mrb[0].mxu0
        %2870 = vmatprep.mubr.f32.mxu0 %v2301
        %2871 = vmatmul.mubr.f32.gmra.mrb[0].mxu0 %v2300
        %v2872 = vpop.f32.mrb[0].mxu0
        %v2873 = vadd.f32 %v2728, %v2872
        %v2874 = vpop.f32.mrb[0].mxu0
        %2875 = vmatprep.mubr.f32.mxu0 %v2309
        %2876 = vmatmul.mubr.f32.gmra.mrb[0].mxu0 %v2308
        %v2877 = vpop.f32.mrb[0].mxu0
        %v2878 = vadd.f32 %v2733, %v2877
        %v2879 = vpop.f32.mrb[0].mxu0
        %2880 = vmatprep.mubr.f32.mxu0 %v2317
        %2881 = vmatmul.mubr.f32.gmra.mrb[0].mxu0 %v2316
        %v2882 = vpop.f32.mrb[0].mxu0
        %v2883 = vadd.f32 %v2738, %v2882
        %v2884 = vpop.f32.mrb[0].mxu0
        %2885 = vmatprep.mubr.f32.mxu0 %v2325
        %2886 = vmatmul.mubr.f32.gmra.mrb[0].mxu0 %v2324
        %v2887 = vpop.f32.mrb[0].mxu0
        %v2888 = vadd.f32 %v2743, %v2887
        %v2889 = vpop.f32.mrb[0].mxu0
        %2890 = vdwg.mxu0
        %2891 = vmatprep.subr.mxu0 0.0
        %2892 = vmatpush1.msra.mxu0 %v2424
        %2893 = vmatprep.subr.mxu0 0.0
        %2894 = vmatpush1.msra.mxu0 %v2425
        %2895 = vmatprep.subr.mxu0 0.0
        %2896 = vmatpush1.msra.mxu0 %v2426
        %2897 = vmatprep.subr.mxu0 0.0
        %2898 = vmatpush1.msra.mxu0 %v2427
        %2899 = vmatprep.subr.mxu0 0.0
        %2900 = vmatpush1.msra.mxu0 %v2428
        %2901 = vmatprep.subr.mxu0 0.0
        %2902 = vmatpush1.msra.mxu0 %v2429
        %2903 = vmatprep.subr.mxu0 0.0
        %2904 = vmatpush1.msra.mxu0 %v2430
        %2905 = vmatprep.subr.mxu0 0.0
        %2906 = vmatpush1.msra.mxu0 %v2431
        %2907 = vmatprep.subr.mxu0 0.0
        %2908 = vmatpush1.msra.mxu0 %v2432
        %2909 = vmatprep.subr.mxu0 0.0
        %2910 = vmatpush1.msra.mxu0 %v2433
        %2911 = vmatprep.subr.mxu0 0.0
        %2912 = vmatpush1.msra.mxu0 %v2434
        %2913 = vmatprep.subr.mxu0 0.0
        %2914 = vmatpush1.msra.mxu0 %v2435
        %2915 = vmatprep.subr.mxu0 0.0
        %2916 = vmatpush1.msra.mxu0 %v2436
        %2917 = vmatprep.subr.mxu0 0.0
        %2918 = vmatpush1.msra.mxu0 %v2437
        %2919 = vmatprep.subr.mxu0 0.0
        %2920 = vmatpush1.msra.mxu0 %v2438
        %2921 = vmatprep.subr.mxu0 0.0
        %2922 = vmatpush1.msra.mxu0 %v2439
        %2923 = vmatprep.subr.mxu0 0.0
        %2924 = vmatpush1.msra.mxu0 %v2440
        %2925 = vmatprep.subr.mxu0 0.0
        %2926 = vmatpush1.msra.mxu0 %v2441
        %2927 = vmatprep.subr.mxu0 0.0
        %2928 = vmatpush1.msra.mxu0 %v2442
        %2929 = vmatprep.subr.mxu0 0.0
        %2930 = vmatpush1.msra.mxu0 %v2443
        %2931 = vmatprep.subr.mxu0 0.0
        %2932 = vmatpush1.msra.mxu0 %v2444
        %2933 = vmatprep.subr.mxu0 0.0
        %2934 = vmatpush1.msra.mxu0 %v2445
        %2935 = vmatprep.subr.mxu0 0.0
        %2936 = vmatpush1.msra.mxu0 %v2446
        %2937 = vmatprep.subr.mxu0 0.0
        %2938 = vmatpush1.msra.mxu0 %v2447
        %2939 = vmatprep.subr.mxu0 0.0
        %2940 = vmatpush1.msra.mxu0 %v2448
        %2941 = vmatprep.subr.mxu0 0.0
        %2942 = vmatpush1.msra.mxu0 %v2449
        %2943 = vmatprep.subr.mxu0 0.0
        %2944 = vmatpush1.msra.mxu0 %v2450
        %2945 = vmatprep.subr.mxu0 0.0
        %2946 = vmatpush1.msra.mxu0 %v2451
        %2947 = vmatprep.subr.mxu0 0.0
        %2948 = vmatpush1.msra.mxu0 %v2452
        %2949 = vmatprep.subr.mxu0 0.0
        %2950 = vmatpush1.msra.mxu0 %v2453
        %2951 = vmatprep.subr.mxu0 0.0
        %2952 = vmatpush1.msra.mxu0 %v2454
        %2953 = vmatprep.subr.mxu0 0.0
        %2954 = vmatpush1.msra.mxu0 %v2455
        %2955 = vmatprep.mubr.f32.mxu0 %v2207
        %2956 = vmatmul.mubr.f32.gmra.mrb[0].mxu0 %v2206
        %v2957 = vpop.f32.mrb[0].mxu0
        %v2958 = vadd.f32 %v2813, %v2957
        %v2959 = vpop.f32.mrb[0].mxu0
        %2960 = vmatprep.mubr.f32.mxu0 %v2215
        %2961 = vmatmul.mubr.f32.gmra.mrb[0].mxu0 %v2214
        %v2962 = vpop.f32.mrb[0].mxu0
        %v2963 = vadd.f32 %v2818, %v2962
        %v2964 = vpop.f32.mrb[0].mxu0
        %2965 = vmatprep.mubr.f32.mxu0 %v2223
        %2966 = vmatmul.mubr.f32.gmra.mrb[0].mxu0 %v2222
        %v2967 = vpop.f32.mrb[0].mxu0
        %v2968 = vadd.f32 %v2823, %v2967
        %v2969 = vpop.f32.mrb[0].mxu0
        %2970 = vmatprep.mubr.f32.mxu0 %v2231
        %2971 = vmatmul.mubr.f32.gmra.mrb[0].mxu0 %v2230
        %v2972 = vpop.f32.mrb[0].mxu0
        %v2973 = vadd.f32 %v2828, %v2972
        %v2974 = vpop.f32.mrb[0].mxu0
        %2975 = vmatprep.mubr.f32.mxu0 %v2239
        %2976 = vmatmul.mubr.f32.gmra.mrb[0].mxu0 %v2238
        %v2977 = vpop.f32.mrb[0].mxu0
        %v2978 = vadd.f32 %v2833, %v2977
        %v2979 = vpop.f32.mrb[0].mxu0
        %2980 = vmatprep.mubr.f32.mxu0 %v2247
        %2981 = vmatmul.mubr.f32.gmra.mrb[0].mxu0 %v2246
        %v2982 = vpop.f32.mrb[0].mxu0
        %v2983 = vadd.f32 %v2838, %v2982
        %v2984 = vpop.f32.mrb[0].mxu0
        %2985 = vmatprep.mubr.f32.mxu0 %v2255
        %2986 = vmatmul.mubr.f32.gmra.mrb[0].mxu0 %v2254
        %v2987 = vpop.f32.mrb[0].mxu0
        %v2988 = vadd.f32 %v2843, %v2987
        %v2989 = vpop.f32.mrb[0].mxu0
        %2990 = vmatprep.mubr.f32.mxu0 %v2263
        %2991 = vmatmul.mubr.f32.gmra.mrb[0].mxu0 %v2262
        %v2992 = vpop.f32.mrb[0].mxu0
        %v2993 = vadd.f32 %v2848, %v2992
        %v2994 = vpop.f32.mrb[0].mxu0
        %2995 = vmatprep.mubr.f32.mxu0 %v2271
        %2996 = vmatmul.mubr.f32.gmra.mrb[0].mxu0 %v2270
        %v2997 = vpop.f32.mrb[0].mxu0
        %v2998 = vadd.f32 %v2853, %v2997
        %v2999 = vpop.f32.mrb[0].mxu0
        %3000 = vmatprep.mubr.f32.mxu0 %v2279
        %3001 = vmatmul.mubr.f32.gmra.mrb[0].mxu0 %v2278
        %v3002 = vpop.f32.mrb[0].mxu0
        %v3003 = vadd.f32 %v2858, %v3002
        %v3004 = vpop.f32.mrb[0].mxu0
        %3005 = vmatprep.mubr.f32.mxu0 %v2287
        %3006 = vmatmul.mubr.f32.gmra.mrb[0].mxu0 %v2286
        %v3007 = vpop.f32.mrb[0].mxu0
        %v3008 = vadd.f32 %v2863, %v3007
        %v3009 = vpop.f32.mrb[0].mxu0
        %3010 = vmatprep.mubr.f32.mxu0 %v2295
        %3011 = vmatmul.mubr.f32.gmra.mrb[0].mxu0 %v2294
        %v3012 = vpop.f32.mrb[0].mxu0
        %v3013 = vadd.f32 %v2868, %v3012
        %v3014 = vpop.f32.mrb[0].mxu0
        %3015 = vmatprep.mubr.f32.mxu0 %v2303
        %3016 = vmatmul.mubr.f32.gmra.mrb[0].mxu0 %v2302
        %v3017 = vpop.f32.mrb[0].mxu0
        %v3018 = vadd.f32 %v2873, %v3017
        %v3019 = vpop.f32.mrb[0].mxu0
        %3020 = vmatprep.mubr.f32.mxu0 %v2311
        %3021 = vmatmul.mubr.f32.gmra.mrb[0].mxu0 %v2310
        %v3022 = vpop.f32.mrb[0].mxu0
        %v3023 = vadd.f32 %v2878, %v3022
        %v3024 = vpop.f32.mrb[0].mxu0
        %3025 = vmatprep.mubr.f32.mxu0 %v2319
        %3026 = vmatmul.mubr.f32.gmra.mrb[0].mxu0 %v2318
        %v3027 = vpop.f32.mrb[0].mxu0
        %v3028 = vadd.f32 %v2883, %v3027
        %v3029 = vpop.f32.mrb[0].mxu0
        %3030 = vmatprep.mubr.f32.mxu0 %v2327
        %3031 = vmatmul.mubr.f32.gmra.mrb[0].mxu0 %v2326
        %v3032 = vpop.f32.mrb[0].mxu0
        %v3033 = vadd.f32 %v2888, %v3032
        %v3034 = vpop.f32.mrb[0].mxu0
        %3035 = vdwg.mxu0
        %3036 = vst [vmem:[%s303] sm:$0xff] %v2958
        %3037 = vst [vmem:[%s303 + $0x8] sm:$0xff] %v2963
        %3038 = vst [vmem:[%s303 + $0x10] sm:$0xff] %v2968
        %3039 = vst [vmem:[%s303 + $0x18] sm:$0xff] %v2973
        %3040 = vst [vmem:[%s303 + $0x20] sm:$0xff] %v2978
        %3041 = vst [vmem:[%s303 + $0x28] sm:$0xff] %v2983
        %3042 = vst [vmem:[%s303 + $0x30] sm:$0xff] %v2988
        %3043 = vst [vmem:[%s303 + $0x38] sm:$0xff] %v2993
        %3044 = vst [vmem:[%s303 + $0x40] sm:$0xff] %v2998
        %3045 = vst [vmem:[%s303 + $0x48] sm:$0xff] %v3003
        %3046 = vst [vmem:[%s303 + $0x50] sm:$0xff] %v3008
        %3047 = vst [vmem:[%s303 + $0x58] sm:$0xff] %v3013
        %3048 = vst [vmem:[%s303 + $0x60] sm:$0xff] %v3018
        %3049 = vst [vmem:[%s303 + $0x68] sm:$0xff] %v3023
        %3050 = vst [vmem:[%s303 + $0x70] sm:$0xff] %v3028
        %3051 = vst [vmem:[%s303 + $0x78] sm:$0xff] %v3033
        %s3052 = sand.u32 %s187, 1
        %s3053 = scalar_lea.sflag [#allocation4], %s3052
        %s3054 = sand.u32 %s187, 1
        %s3055 = smul.addr %s3054, 128
        %s3056 = scalar_lea.vmem [#allocation5], %s3055
        // Predicated region
        $region53: #{tpu_custom_call.1} parent=47 // pred_check
          %p3057 = pneg %p197
        $region54: #{tpu_custom_call.1} parent=47 // pred_check_branch
          %3059 = sbr.rel (%p3057) target = $region56
        $region55: #{tpu_custom_call.1} parent=47 // pred_region
          %s3060 = smul.u32 16, %s22
          %s3062 = ssub.s32 2048, 2048
          %3063 = vsyncadd %s3053, %s3062
          %s3064 = smul.addr %s3060, 128
          %s3065 = scalar_lea.hbm %s7, %s3064
          %s3066 = sshll.u32 %s3056, 4
          %s3067 = int_to_ptr.vmem [resolvable:$true] %s3066
          %3072 = dma.vmem_to_hbm [thread:$0]  %s3067, 2048, %s3065, %s3053, 128, 128, 8
        $region56: #{tpu_custom_call.1} parent=47 // pred_fallthru
          _
      $region48: #{tpu_custom_call.1} parent=5 // pred_fallthru
        _
      %p3073 = scmp.le.s32.totalorder 2, %s17
      // Predicated region
      $region57: #{tpu_custom_call.1} parent=5 // pred_check
        %p3074 = pneg %p3073
      $region58: #{tpu_custom_call.1} parent=5 // pred_check_branch
        %3076 = sbr.rel (%p3074) target = $region60
      $region59: #{tpu_custom_call.1} parent=5 // pred_region
        %s3077 = ssub.s32 %s17, 2
        // Predicated region
        $region61: #{tpu_custom_call.1} parent=59 // pred_check
          %p3078 = pneg %p203
        $region62: #{tpu_custom_call.1} parent=59 // pred_check_branch
          %3080 = sbr.rel (%p3078) target = $region64
        $region63: #{tpu_custom_call.1} parent=59 // pred_region
          %s3081 = sand.u32 %s188, 1
          %s3082 = scalar_lea.sflag [#allocation4], %s3081
          %s3083 = sand.u32 %s188, 1
          %s3084 = smul.addr %s3083, 128
          %s3085 = scalar_lea.vmem [#allocation5], %s3084
          %3086 = dma.done %s3082, 2048
        $region64: #{tpu_custom_call.1} parent=59 // pred_fallthru
          _
      $region60: #{tpu_custom_call.1} parent=5 // pred_fallthru
        _
    $region6: #{tpu_custom_call.1} parent=1 // loop_footer
      %s21 = sadd.s32 1, %s17
    $region7: #{tpu_custom_call.1} parent=1 // loop_footer_branch
      %16 = sbr.rel target = $region3
    $region8: #{tpu_custom_call.1} parent=1 // loop_exit
      _
    %3087 = vsyncpa [#allocation3], 1
    %s3088 = scalar_lea.sflag [#allocation3], 1
    %3089 = vsyncpa %s3088, 1
    %3090 = vsyncpa [#allocation4], 1
    %s3091 = scalar_lea.sflag [#allocation4], 1
    %3092 = vsyncpa %s3091, 1

</llo_original>
